<compile_context>
chip_gen: v7x
topology: tpu7x:2x2x1
jax: 0.10.0
libtpu: 0.0.40
codegen_flags: <defaults>
</compile_context>

<pallas_src>
import functools
import math

import jax
import jax.numpy as jnp
from jax.experimental import pallas as pl
from jax.experimental.pallas import tpu as pltpu


# ------------------------------ configuration ------------------------------

ACT_DTYPE = jnp.bfloat16        # activations stored in HBM / fed to the MXU
WEIGHT_DTYPE = jnp.bfloat16     # matmul weights
WEIGHT_DTYPE_BYTES = 2

TM_TARGET = 512                 # activation row tile (review: 256 -> 512)
TN_TARGET = 512                 # only used when a weight can't stay resident
WEIGHT_RESIDENT_BYTES = 8 * 1024 * 1024   # keep full (K,N) weight in VMEM if <= this


def _default_vmem_limit():
    """Per-generation scoped-VMEM budget; safe fallback if query fails."""
    try:
        info = pltpu.get_tpu_info()
        cap = getattr(info, "vmem_capacity_bytes", None)
        if cap:
            # ~96 MiB on v5e/v6e (128 MiB physical), 48 MiB on v7x (64 MiB).
            return max(32 * 1024 * 1024, (3 * int(cap)) // 4)
    except Exception:
        pass
    return 32 * 1024 * 1024      # conservative floor, safe on every generation


VMEM_LIMIT = _default_vmem_limit()


def _tile(dim, target, align):
    """Largest multiple of `align` that divides `dim` and is <= target.

    Falls back to the full dimension (always legal for BlockSpec)."""
    if dim <= target:
        return dim
    t = (target // align) * align
    while t >= align:
        if dim % t == 0:
            return t
        t -= align
    return dim


def _fit_tm(M, per_row_bytes, fixed_bytes, target=TM_TARGET):
    """Pick a row tile that keeps the estimated VMEM footprint under budget."""
    budget = int(0.7 * VMEM_LIMIT)
    t = target
    while True:
        tm = _tile(M, t, 8)
        if fixed_bytes + tm * per_row_bytes <= budget or t <= 64:
            return tm
        t //= 2


# ----------------------------- Pallas kernels ------------------------------

def _matmul_bias_act_kernel(x_ref, w_ref, b_ref, o_ref, *, act):
    """y = act(x @ W + b); the whole (K, tn) weight strip is VMEM-resident."""
    y = jnp.dot(x_ref[...], w_ref[...], preferred_element_type=jnp.float32)
    y = y + b_ref[...].astype(jnp.float32)
    if act == "gelu":          # exact (erf) gelu, as in BERT
        y = 0.5 * y * (1.0 + jax.lax.erf(y * 0.7071067811865476))
    elif act == "silu":
        y = y * jax.nn.sigmoid(y)
    o_ref[...] = y.astype(o_ref.dtype)


def matmul_bias_act(x, w, b, act="none", out_dtype=None):
    """y = act(x @ w + b).  x: [M,K], w: [K,N], b: [N].  Weight-stationary."""
    M, K = x.shape
    K2, N = w.shape
    assert K2 == K
    out_dtype = out_dtype or ACT_DTYPE

    # Keep the full weight resident if it fits (BERT-scale: always); otherwise
    # tile N and iterate M innermost so each (K, tn) strip stays resident
    # across the whole M sweep (weight HBM traffic paid once per strip).
    if K * N * WEIGHT_DTYPE_BYTES <= WEIGHT_RESIDENT_BYTES:
        tn = N
    else:
        tn = _tile(N, TN_TARGET, 128)
    per_row = 4 * K + 8 * tn + 4 * tn          # x, out (2 bufs bf16) + f32 epilogue
    fixed = 2 * WEIGHT_DTYPE_BYTES * K * tn    # weight (double-buffered)
    tm = _fit_tm(M, per_row, fixed)

    grid = (N // tn, M // tm)                  # M innermost -> weight stays put
    return pl.pallas_call(
        functools.partial(_matmul_bias_act_kernel, act=act),
        out_shape=jax.ShapeDtypeStruct((M, N), out_dtype),
        grid=grid,
        in_specs=[
            pl.BlockSpec((tm, K), lambda j, i: (i, 0)),
            pl.BlockSpec((K, tn), lambda j, i: (0, j)),
            pl.BlockSpec((1, tn), lambda j, i: (0, j)),
        ],
        out_specs=pl.BlockSpec((tm, tn), lambda j, i: (i, j)),
        compiler_params=pltpu.CompilerParams(
            dimension_semantics=("parallel", "parallel"),
            vmem_limit_bytes=VMEM_LIMIT),
    )(x, w, b.reshape(1, N))


def _matmul_res_ln_kernel(x_ref, w_ref, b_ref, r_ref, g_ref, be_ref, o_ref,
                          *, eps):
    """out = LayerNorm(residual + (x @ W + b)); full (K, H) weight resident."""
    y = jnp.dot(x_ref[...], w_ref[...], preferred_element_type=jnp.float32)
    y = y + b_ref[...].astype(jnp.float32) + r_ref[...].astype(jnp.float32)
    mu = jnp.mean(y, axis=-1, keepdims=True)
    var = jnp.mean(jnp.square(y - mu), axis=-1, keepdims=True)
    yn = (y - mu) * jax.lax.rsqrt(var + eps)
    o_ref[...] = (yn * g_ref[...].astype(jnp.float32)
                  + be_ref[...].astype(jnp.float32)).astype(o_ref.dtype)


def matmul_residual_ln(x, w, b, residual, gamma, beta, eps, out_dtype=None):
    """Fused projection + residual add + post-LayerNorm (BERT epilogue)."""
    M, K = x.shape
    K2, H = w.shape
    assert K2 == K and residual.shape == (M, H)
    out_dtype = out_dtype or ACT_DTYPE

    # LN needs full-H rows, so the output dim is untiled; the (K, H) weight
    # (<= ~4.5 MiB bf16 for BERT) stays resident.  tm shrinks automatically if
    # a large-H config would approach the scoped-VMEM budget (v7x guard).
    per_row = 4 * K + 4 * H + 4 * H + 12 * H   # x, residual, out + f32 temps
    fixed = 2 * WEIGHT_DTYPE_BYTES * K * H
    tm = _fit_tm(M, per_row, fixed)

    grid = (M // tm,)
    return pl.pallas_call(
        functools.partial(_matmul_res_ln_kernel, eps=eps),
        out_shape=jax.ShapeDtypeStruct((M, H), out_dtype),
        grid=grid,
        in_specs=[
            pl.BlockSpec((tm, K), lambda i: (i, 0)),
            pl.BlockSpec((K, H), lambda i: (0, 0)),
            pl.BlockSpec((1, H), lambda i: (0, 0)),
            pl.BlockSpec((tm, H), lambda i: (i, 0)),
            pl.BlockSpec((1, H), lambda i: (0, 0)),
            pl.BlockSpec((1, H), lambda i: (0, 0)),
        ],
        out_specs=pl.BlockSpec((tm, H), lambda i: (i, 0)),
        compiler_params=pltpu.CompilerParams(
            dimension_semantics=("parallel",),
            vmem_limit_bytes=VMEM_LIMIT),
    )(x, w, b.reshape(1, H), residual, gamma.reshape(1, H), beta.reshape(1, H))


def _embed_ln_kernel(txt_ref, img_ref, pos_ref, t_ref, g_ref, b_ref, o_ref,
                     *, eps, l_txt):
    """LN(txt/img + pos + time_emb) -- concat done in VMEM, not in HBM."""
    t = t_ref[0].astype(jnp.float32)              # (1, H) broadcast row
    g = g_ref[...].astype(jnp.float32)
    be = b_ref[...].astype(jnp.float32)
    pos = pos_ref[...].astype(jnp.float32)        # (S, H)

    def ln(x):
        mu = jnp.mean(x, axis=-1, keepdims=True)
        var = jnp.mean(jnp.square(x - mu), axis=-1, keepdims=True)
        y = (x - mu) * jax.lax.rsqrt(var + eps)
        return (y * g + be).astype(o_ref.dtype)

    x_txt = txt_ref[0].astype(jnp.float32) + pos[:l_txt] + t
    o_ref[0, :l_txt, :] = ln(x_txt)
    x_img = img_ref[0].astype(jnp.float32) + pos[l_txt:] + t
    o_ref[0, l_txt:, :] = ln(x_img)


def embed_combine_ln(encoded_txt, pixel_values, pos, emb_t, gamma, beta, eps,
                     out_dtype=None):
    """[B,Lt,H] + [B,Li,H] + pos[S,H] + emb_t[B,H] -> LN(sum) as [B,S,H].

    The txt/img concat never hits HBM: both sources are read directly and the
    combined slab is written once (bf16)."""
    B, L_txt, H = encoded_txt.shape
    L_img = pixel_values.shape[1]
    S = L_txt + L_img
    out_dtype = out_dtype or ACT_DTYPE
    return pl.pallas_call(
        functools.partial(_embed_ln_kernel, eps=eps, l_txt=L_txt),
        out_shape=jax.ShapeDtypeStruct((B, S, H), out_dtype),
        grid=(B,),
        in_specs=[
            pl.BlockSpec((1, L_txt, H), lambda b: (b, 0, 0)),
            pl.BlockSpec((1, L_img, H), lambda b: (b, 0, 0)),
            pl.BlockSpec((S, H), lambda b: (0, 0)),
            pl.BlockSpec((1, 1, H), lambda b: (b, 0, 0)),
            pl.BlockSpec((1, H), lambda b: (0, 0)),
            pl.BlockSpec((1, H), lambda b: (0, 0)),
        ],
        out_specs=pl.BlockSpec((1, S, H), lambda b: (b, 0, 0)),
        compiler_params=pltpu.CompilerParams(
            dimension_semantics=("parallel",),
            vmem_limit_bytes=VMEM_LIMIT),
    )(encoded_txt, pixel_values, pos, emb_t.reshape(B, 1, H),
      gamma.reshape(1, H), beta.reshape(1, H))


def _time_mlp_kernel(t_ref, w1_ref, b1_ref, w2_ref, b2_ref, o_ref):
    """Fused time-embedding MLP: Linear -> SiLU -> Linear."""
    t = t_ref[...].astype(w1_ref.dtype)
    h = jnp.dot(t, w1_ref[...], preferred_element_type=jnp.float32)
    h = h + b1_ref[...].astype(jnp.float32)
    h = h * jax.nn.sigmoid(h)                        # SiLU in f32
    y = jnp.dot(h.astype(w2_ref.dtype), w2_ref[...],
                preferred_element_type=jnp.float32)
    y = y + b2_ref[...].astype(jnp.float32)
    o_ref[...] = y.astype(o_ref.dtype)


def time_embed_mlp(t_sin, w1, b1, w2, b2, out_dtype=jnp.float32):
    B, T = t_sin.shape
    T4 = w1.shape[1]
    H = w2.shape[1]
    return pl.pallas_call(
        _time_mlp_kernel,
        out_shape=jax.ShapeDtypeStruct((B, H), out_dtype),
        grid=(1,),
        in_specs=[
            pl.BlockSpec((B, T), lambda i: (0, 0)),
            pl.BlockSpec((T, T4), lambda i: (0, 0)),
            pl.BlockSpec((1, T4), lambda i: (0, 0)),
            pl.BlockSpec((T4, H), lambda i: (0, 0)),
            pl.BlockSpec((1, H), lambda i: (0, 0)),
        ],
        out_specs=pl.BlockSpec((B, H), lambda i: (0, 0)),
        compiler_params=pltpu.CompilerParams(vmem_limit_bytes=VMEM_LIMIT),
    )(t_sin, w1, b1.reshape(1, T4), w2, b2.reshape(1, H))


def _attention_kernel(q_ref, k_ref, v_ref, o_ref, ctx_scratch, *,
                      num_heads, head_dim, q_off, k_off, v_off, scale):
    """Self-attention for one (batch, q-tile) step over the fused QKV slab.

    - 1/sqrt(Dh) is folded into q before the score matmul (tq*Dh muls, not tq*S).
    - each head writes its (tq, Dh) context into a (tq, H) VMEM scratch; the
      output store is a single lane-dense (tq, H) write.
    """
    q = q_ref[0]                                     # (tq, H) or (tq, 3H)
    k = k_ref[0]                                     # (S,  H) or (S,  3H)
    v = v_ref[0]
    for h in range(num_heads):
        qs = q_off + h * head_dim
        ks = k_off + h * head_dim
        vs = v_off + h * head_dim
        qh = (q[:, qs:qs + head_dim].astype(jnp.float32) * scale).astype(k.dtype)
        # contract on head_dim directly (no explicit k.T / XLU transpose)
        s = jax.lax.dot_general(qh, k[:, ks:ks + head_dim],
                                (((1,), (1,)), ((), ())),
                                preferred_element_type=jnp.float32)
        m = jnp.max(s, axis=-1, keepdims=True)
        p = jnp.exp(s - m)
        p = p * pl.reciprocal(jnp.sum(p, axis=-1, keepdims=True), approx=True)
        ctx_scratch[:, h * head_dim:(h + 1) * head_dim] = jnp.dot(
            p.astype(v.dtype), v[:, vs:vs + head_dim],
            preferred_element_type=jnp.float32)
    o_ref[0] = ctx_scratch[...].astype(o_ref.dtype)


def attention(qkv, num_heads, out_dtype=None):
    """qkv: [B, S, 3H] -> [B, S, H]; grid = (batch, q-tile)."""
    B, S, H3 = qkv.shape
    H = H3 // 3
    head_dim = H // num_heads
    out_dtype = out_dtype or ACT_DTYPE
    scale = 1.0 / math.sqrt(head_dim)
    tq = _tile(S, 512, 8)
    grid = (B, S // tq)

    if H % 128 == 0:
        # Lane-aligned Q / K / V column blocks of the fused slab; the K/V
        # blocks have a constant index across the inner q-tile sweep, so they
        # stay resident per batch element.
        in_specs = [
            pl.BlockSpec((1, tq, H), lambda b, qi: (b, qi, 0)),   # Q cols [0,H)
            pl.BlockSpec((1, S, H), lambda b, qi: (b, 0, 1)),     # K cols [H,2H)
            pl.BlockSpec((1, S, H), lambda b, qi: (b, 0, 2)),     # V cols [2H,3H)
        ]
        offs = (0, 0, 0)
    else:
        # Fallback for H not a multiple of 128: full-width blocks, slice inside.
        in_specs = [
            pl.BlockSpec((1, tq, H3), lambda b, qi: (b, qi, 0)),
            pl.BlockSpec((1, S, H3), lambda b, qi: (b, 0, 0)),
            pl.BlockSpec((1, S, H3), lambda b, qi: (b, 0, 0)),
        ]
        offs = (0, H, 2 * H)

    return pl.pallas_call(
        functools.partial(_attention_kernel, num_heads=num_heads,
                          head_dim=head_dim, q_off=offs[0], k_off=offs[1],
                          v_off=offs[2], scale=scale),
        out_shape=jax.ShapeDtypeStruct((B, S, H), out_dtype),
        grid=grid,
        in_specs=in_specs,
        out_specs=pl.BlockSpec((1, tq, H), lambda b, qi: (b, qi, 0)),
        scratch_shapes=[pltpu.VMEM((tq, H), jnp.float32)],
        compiler_params=pltpu.CompilerParams(
            dimension_semantics=("parallel", "parallel"),
            vmem_limit_bytes=VMEM_LIMIT),
    )(qkv, qkv, qkv)


# ------------------------------- model glue --------------------------------

def timestep_embedding(timesteps, dim, max_period=10000):
    half = dim // 2
    freqs = jnp.exp(-math.log(max_period) *
                    jnp.arange(half, dtype=jnp.float32) / half)
    args = timesteps.astype(jnp.float32)[:, None] * freqs[None]
    emb = jnp.concatenate([jnp.cos(args), jnp.sin(args)], axis=-1)
    if dim % 2:
        emb = jnp.concatenate([emb, jnp.zeros_like(emb[:, :1])], axis=-1)
    return emb


def init_params(key, hidden_t_dim, hidden_size, num_layers, intermediate_size,
                max_position_embeddings):
    def nrm(k, shape, scale=0.02):
        return (scale * jax.random.normal(k, shape)).astype(WEIGHT_DTYPE)

    keys = iter(jax.random.split(key, 8 + 12 * num_layers))
    H, I, T = hidden_size, intermediate_size, hidden_t_dim
    f32 = jnp.float32
    p = {
        "t_w1": nrm(next(keys), (T, 4 * T)), "t_b1": jnp.zeros((4 * T,), f32),
        "t_w2": nrm(next(keys), (4 * T, H)), "t_b2": jnp.zeros((H,), f32),
        "pos_emb": (0.02 * jax.random.normal(
            next(keys), (max_position_embeddings, H))).astype(f32),
        "ln_g": jnp.ones((H,), f32), "ln_b": jnp.zeros((H,), f32),
        "layers": [],
    }
    for _ in range(num_layers):
        wq = nrm(next(keys), (H, H))
        wk = nrm(next(keys), (H, H))
        wv = nrm(next(keys), (H, H))
        p["layers"].append({
            # fused QKV projection: one [H, 3H] matmul instead of three [H, H]
            "wqkv": jnp.concatenate([wq, wk, wv], axis=1),
            "bqkv": jnp.zeros((3 * H,), f32),
            "wo": nrm(next(keys), (H, H)), "bo": jnp.zeros((H,), f32),
            "ln1_g": jnp.ones((H,), f32), "ln1_b": jnp.zeros((H,), f32),
            "wi": nrm(next(keys), (H, I)), "bi": jnp.zeros((I,), f32),
            "wf": nrm(next(keys), (I, H)), "bf": jnp.zeros((H,), f32),
            "ln2_g": jnp.ones((H,), f32), "ln2_b": jnp.zeros((H,), f32),
        })
    return p


def bert_layer(x2d, lp, B, S, H, num_heads, eps):
    # fused QKV projection -> [B*S, 3H]  (contiguous reshape, no relayout)
    qkv = matmul_bias_act(x2d, lp["wqkv"], lp["bqkv"])
    ctx = attention(qkv.reshape(B, S, 3 * H), num_heads)           # [B,S,H]
    # attention output projection + residual + LayerNorm, fused
    x2d = matmul_residual_ln(ctx.reshape(B * S, H), lp["wo"], lp["bo"],
                             x2d, lp["ln1_g"], lp["ln1_b"], eps)
    # FFN: up-proj + exact GELU, then down-proj + residual + LayerNorm, fused
    ffn = matmul_bias_act(x2d, lp["wi"], lp["bi"], act="gelu")
    x2d = matmul_residual_ln(ffn, lp["wf"], lp["bf"],
                             x2d, lp["ln2_g"], lp["ln2_b"], eps)
    return x2d


def transformer_net_forward(params, txt, timesteps, pixel_values, encoded_txt,
                            *, hidden_t_dim, num_heads, layer_norm_eps=1e-12):
    B, L_txt, H = encoded_txt.shape
    L_img = pixel_values.shape[1]
    S = L_txt + L_img

    # ---- time embedding MLP (Linear -> SiLU -> Linear), one fused call ----
    t_sin = timestep_embedding(timesteps, hidden_t_dim)            # [B, T] f32
    emb_t = time_embed_mlp(t_sin, params["t_w1"], params["t_b1"],
                           params["t_w2"], params["t_b2"])         # [B, H] f32

    # ---- txt/img + pos + time (no HBM concat, in-kernel broadcast) + LN ----
    x = embed_combine_ln(encoded_txt, pixel_values, params["pos_emb"][:S],
                         emb_t, params["ln_g"], params["ln_b"], layer_norm_eps)
    # dropout(p=0) in eval mode -> identity
    x2d = x.reshape(B * S, H)                                      # ACT_DTYPE

    # ---- BERT encoder (post-LN residual blocks) ----
    # TODO(synk): no attention mask is applied (reference encoder is called
    # without a mask here); padded batches would need a mask term in scores.
    for lp in params["layers"]:
        x2d = bert_layer(x2d, lp, B, S, H, num_heads, layer_norm_eps)

    enc = x2d.reshape(B, S, H).astype(jnp.float32)
    h = enc.astype(txt.dtype)
    hidden_state_img_diff = pixel_values - enc[:, L_txt:, :]
    return h, hidden_state_img_diff


# --------------------------------- driver ----------------------------------

if __name__ == "__main__":
    # Small, forward-consistent shapes (H multiple of 128 exercises the
    # lane-aligned attention path; Dh = 64 like the review scenario).
    B = 2
    L_txt = 8          # encoded_txt sequence length
    L_img = 8          # pixel_values ("hidden_state_img") sequence length
    H = 128            # config.hidden_size
    hidden_t_dim = 16  # time embedding base dim
    num_layers = 2
    num_heads = 2      # head_dim = 64
    intermediate = 256
    max_pos = 64

    key = jax.random.PRNGKey(0)
    k_par, k_txt, k_pix, k_enc = jax.random.split(key, 4)
    params = init_params(k_par, hidden_t_dim, H, num_layers, intermediate, max_pos)

    txt = jax.random.normal(k_txt, (B, L_txt, H), dtype=jnp.float32)   # only dtype is used
    timesteps = jnp.array([3.0, 7.0], dtype=jnp.float32)               # [B]
    pixel_values = jax.random.normal(k_pix, (B, L_img, H), dtype=jnp.float32)
    encoded_txt = jax.random.normal(k_enc, (B, L_txt, H), dtype=jnp.float32)

    fwd = jax.jit(functools.partial(
        transformer_net_forward, hidden_t_dim=hidden_t_dim, num_heads=num_heads))
    h, img_diff = fwd(params, txt, timesteps, pixel_values, encoded_txt)
    jax.block_until_ready((h, img_diff))

    assert h.shape == (B, L_txt + L_img, H) and h.dtype == txt.dtype
    assert img_diff.shape == (B, L_img, H)
    assert bool(jnp.all(jnp.isfinite(h))) and bool(jnp.all(jnp.isfinite(img_diff)))
    print("KERNEL_OK")
</pallas_src>

<mosaic_0001>
module attributes {stable_mosaic.version = 11 : i64} {
  func.func @_time_mlp_kernel(%arg0: i32, %arg1: memref<2x16xf32, #tpu.memory_space<vmem>>, %arg2: memref<16x64xbf16, #tpu.memory_space<vmem>>, %arg3: memref<1x64xf32, #tpu.memory_space<vmem>>, %arg4: memref<64x128xbf16, #tpu.memory_space<vmem>>, %arg5: memref<1x128xf32, #tpu.memory_space<vmem>>, %arg6: memref<2x128xf32, #tpu.memory_space<vmem>>) attributes {dimension_semantics = [#tpu.dimension_semantics<arbitrary>], iteration_bounds = array<i64: 1>, scalar_prefetch = 0 : i64, scratch_operands = 0 : i64, tpu.core_type = #tpu.core_type<tc>, window_params = [{pipeline_mode = #tpu.pipeline_mode<synchronous>, transform_indices = @transform_0, window_bounds = array<i64: 2, 16>}, {pipeline_mode = #tpu.pipeline_mode<synchronous>, transform_indices = @transform_1, window_bounds = array<i64: 16, 64>}, {pipeline_mode = #tpu.pipeline_mode<synchronous>, transform_indices = @transform_2, window_bounds = array<i64: 1, 64>}, {pipeline_mode = #tpu.pipeline_mode<synchronous>, transform_indices = @transform_3, window_bounds = array<i64: 64, 128>}, {pipeline_mode = #tpu.pipeline_mode<synchronous>, transform_indices = @transform_4, window_bounds = array<i64: 1, 128>}, {pipeline_mode = #tpu.pipeline_mode<synchronous>, transform_indices = @transform_5, window_bounds = array<i64: 2, 128>}]} {
    %c0 = arith.constant 0 : index
    %c0_0 = arith.constant 0 : index
    %0 = vector.load %arg1[%c0, %c0_0] : memref<2x16xf32, #tpu.memory_space<vmem>>, vector<2x16xf32>
    %1 = arith.truncf %0 : vector<2x16xf32> to vector<2x16xbf16>
    %c0_1 = arith.constant 0 : index
    %c0_2 = arith.constant 0 : index
    %2 = vector.load %arg2[%c0_1, %c0_2] : memref<16x64xbf16, #tpu.memory_space<vmem>>, vector<16x64xbf16>
    %cst = arith.constant dense<0.000000e+00> : vector<2x64xf32>
    %3 = tpu.matmul %1, %2, %cst {dimension_numbers = #tpu.dot_dimension_numbers<[1], [0], [0], [1], [0, 0, 1, 1], [], []>} : vector<2x16xbf16>, vector<16x64xbf16>, vector<2x64xf32> -> vector<2x64xf32>
    %c0_3 = arith.constant 0 : index
    %c0_4 = arith.constant 0 : index
    %4 = vector.load %arg3[%c0_3, %c0_4] : memref<1x64xf32, #tpu.memory_space<vmem>>, vector<1x64xf32>
    %5 = vector.broadcast %4 : vector<1x64xf32> to vector<2x64xf32>
    %6 = arith.addf %3, %5 : vector<2x64xf32>
    %7 = arith.negf %6 : vector<2x64xf32>
    %8 = math.exp %7 : vector<2x64xf32>
    %cst_5 = arith.constant 1.000000e+00 : f32
    %9 = vector.broadcast %cst_5 : f32 to vector<2x64xf32>
    %10 = arith.addf %9, %8 : vector<2x64xf32>
    %11 = arith.divf %9, %10 : vector<2x64xf32>
    %12 = arith.mulf %6, %11 : vector<2x64xf32>
    %13 = arith.truncf %12 : vector<2x64xf32> to vector<2x64xbf16>
    %c0_6 = arith.constant 0 : index
    %c0_7 = arith.constant 0 : index
    %14 = vector.load %arg4[%c0_6, %c0_7] : memref<64x128xbf16, #tpu.memory_space<vmem>>, vector<64x128xbf16>
    %cst_8 = arith.constant dense<0.000000e+00> : vector<2x128xf32>
    %15 = tpu.matmul %13, %14, %cst_8 {dimension_numbers = #tpu.dot_dimension_numbers<[1], [0], [0], [1], [0, 0, 1, 1], [], []>} : vector<2x64xbf16>, vector<64x128xbf16>, vector<2x128xf32> -> vector<2x128xf32>
    %c0_9 = arith.constant 0 : index
    %c0_10 = arith.constant 0 : index
    %16 = vector.load %arg5[%c0_9, %c0_10] : memref<1x128xf32, #tpu.memory_space<vmem>>, vector<1x128xf32>
    %17 = vector.broadcast %16 : vector<1x128xf32> to vector<2x128xf32>
    %18 = arith.addf %15, %17 : vector<2x128xf32>
    %c0_11 = arith.constant 0 : index
    %c0_12 = arith.constant 0 : index
    %19 = vector.load %arg6[%c0_11, %c0_12] : memref<2x128xf32, #tpu.memory_space<vmem>>, vector<2x128xf32>
    tpu.vector_store %arg6[%c0_11, %c0_12], %18 {strides = array<i32>} : memref<2x128xf32, #tpu.memory_space<vmem>>, vector<2x128xf32>,
    return
  }
  func.func @transform_0(%arg0: i32) -> (i32, i32) {
    %c0_i32 = arith.constant 0 : i32
    %c0_i32_0 = arith.constant 0 : i32
    %c0_i32_1 = arith.constant 0 : i32
    return %c0_i32, %c0_i32_0 : i32, i32
  }
  func.func @transform_1(%arg0: i32) -> (i32, i32) {
    %c0_i32 = arith.constant 0 : i32
    %c0_i32_0 = arith.constant 0 : i32
    %c0_i32_1 = arith.constant 0 : i32
    return %c0_i32, %c0_i32_0 : i32, i32
  }
  func.func @transform_2(%arg0: i32) -> (i32, i32) {
    %c0_i32 = arith.constant 0 : i32
    %c0_i32_0 = arith.constant 0 : i32
    %c0_i32_1 = arith.constant 0 : i32
    return %c0_i32, %c0_i32_0 : i32, i32
  }
  func.func @transform_3(%arg0: i32) -> (i32, i32) {
    %c0_i32 = arith.constant 0 : i32
    %c0_i32_0 = arith.constant 0 : i32
    %c0_i32_1 = arith.constant 0 : i32
    return %c0_i32, %c0_i32_0 : i32, i32
  }
  func.func @transform_4(%arg0: i32) -> (i32, i32) {
    %c0_i32 = arith.constant 0 : i32
    %c0_i32_0 = arith.constant 0 : i32
    %c0_i32_1 = arith.constant 0 : i32
    return %c0_i32, %c0_i32_0 : i32, i32
  }
  func.func @transform_5(%arg0: i32) -> (i32, i32) {
    %c0_i32 = arith.constant 0 : i32
    %c0_i32_0 = arith.constant 0 : i32
    %c0_i32_1 = arith.constant 0 : i32
    return %c0_i32, %c0_i32_0 : i32, i32
  }
}

module attributes {stable_mosaic.version = 11 : i64} {
  func.func @_attention_kernel(%arg0: i32, %arg1: i32, %arg2: memref<1x16x128xbf16, #tpu.memory_space<vmem>>, %arg3: memref<1x16x128xbf16, #tpu.memory_space<vmem>>, %arg4: memref<1x16x128xbf16, #tpu.memory_space<vmem>>, %arg5: memref<1x16x128xbf16, #tpu.memory_space<vmem>>, %arg6: memref<16x128xf32, #tpu.memory_space<vmem>>) attributes {dimension_semantics = [#tpu.dimension_semantics<parallel>, #tpu.dimension_semantics<parallel>], iteration_bounds = array<i64: 2, 1>, scalar_prefetch = 0 : i64, scratch_operands = 1 : i64, tpu.core_type = #tpu.core_type<tc>, window_params = [{transform_indices = @transform_0, window_bounds = array<i64: 1, 16, 128>}, {transform_indices = @transform_1, window_bounds = array<i64: 1, 16, 128>}, {transform_indices = @transform_2, window_bounds = array<i64: 1, 16, 128>}, {transform_indices = @transform_3, window_bounds = array<i64: 1, 16, 128>}]} {
    %c0 = arith.constant 0 : index
    %c0_0 = arith.constant 0 : index
    %c0_1 = arith.constant 0 : index
    %0 = vector.load %arg2[%c0, %c0_0, %c0_1] : memref<1x16x128xbf16, #tpu.memory_space<vmem>>, vector<1x16x128xbf16>
    %1 = vector.shape_cast %0 : vector<1x16x128xbf16> to vector<16x128xbf16>
    %c0_2 = arith.constant 0 : index
    %c0_3 = arith.constant 0 : index
    %c0_4 = arith.constant 0 : index
    %2 = vector.load %arg3[%c0_2, %c0_3, %c0_4] : memref<1x16x128xbf16, #tpu.memory_space<vmem>>, vector<1x16x128xbf16>
    %3 = vector.shape_cast %2 : vector<1x16x128xbf16> to vector<16x128xbf16>
    %c0_5 = arith.constant 0 : index
    %c0_6 = arith.constant 0 : index
    %c0_7 = arith.constant 0 : index
    %4 = vector.load %arg4[%c0_5, %c0_6, %c0_7] : memref<1x16x128xbf16, #tpu.memory_space<vmem>>, vector<1x16x128xbf16>
    %5 = vector.shape_cast %4 : vector<1x16x128xbf16> to vector<16x128xbf16>
    %6 = vector.extract_strided_slice %1 {offsets = [0, 0], sizes = [16, 64], strides = [1, 1]} : vector<16x128xbf16> to vector<16x64xbf16>
    %7 = arith.extf %6 : vector<16x64xbf16> to vector<16x64xf32>
    %cst = arith.constant 1.250000e-01 : f32
    %8 = vector.broadcast %cst : f32 to vector<16x64xf32>
    %9 = arith.mulf %7, %8 : vector<16x64xf32>
    %10 = arith.truncf %9 : vector<16x64xf32> to vector<16x64xbf16>
    %11 = vector.extract_strided_slice %3 {offsets = [0, 0], sizes = [16, 64], strides = [1, 1]} : vector<16x128xbf16> to vector<16x64xbf16>
    %cst_8 = arith.constant dense<0.000000e+00> : vector<16x16xf32>
    %12 = tpu.matmul %10, %11, %cst_8 {dimension_numbers = #tpu.dot_dimension_numbers<[1], [1], [0], [0], [0, 0, 1, 0], [], []>} : vector<16x64xbf16>, vector<16x64xbf16>, vector<16x16xf32> -> vector<16x16xf32>
    %cst_9 = arith.constant dense<0xFF800000> : vector<16xf32>
    %13 = vector.multi_reduction <maximumf>, %12, %cst_9 [1] : vector<16x16xf32> to vector<16xf32>
    %14 = vector.shape_cast %13 : vector<16xf32> to vector<16x1xf32>
    %15 = vector.broadcast %14 : vector<16x1xf32> to vector<16x16xf32>
    %16 = arith.subf %12, %15 : vector<16x16xf32>
    %17 = math.exp %16 : vector<16x16xf32>
    %cst_10 = arith.constant dense<0.000000e+00> : vector<16xf32>
    %18 = vector.multi_reduction <add>, %17, %cst_10 [1] : vector<16x16xf32> to vector<16xf32>
    %19 = vector.shape_cast %18 : vector<16xf32> to vector<16x1xf32>
    %20 = tpu.reciprocal %19 {approx = true} : vector<16x1xf32> -> vector<16x1xf32>
    %21 = vector.broadcast %20 : vector<16x1xf32> to vector<16x16xf32>
    %22 = arith.mulf %17, %21 : vector<16x16xf32>
    %23 = arith.truncf %22 : vector<16x16xf32> to vector<16x16xbf16>
    %24 = vector.extract_strided_slice %5 {offsets = [0, 0], sizes = [16, 64], strides = [1, 1]} : vector<16x128xbf16> to vector<16x64xbf16>
    %cst_11 = arith.constant dense<0.000000e+00> : vector<16x64xf32>
    %25 = tpu.matmul %23, %24, %cst_11 {dimension_numbers = #tpu.dot_dimension_numbers<[1], [0], [0], [1], [0, 0, 1, 1], [], []>} : vector<16x16xbf16>, vector<16x64xbf16>, vector<16x64xf32> -> vector<16x64xf32>
    %c0_12 = arith.constant 0 : index
    %c0_13 = arith.constant 0 : index
    %26 = vector.load %arg6[%c0_12, %c0_13] : memref<16x128xf32, #tpu.memory_space<vmem>>, vector<16x64xf32>
    tpu.vector_store %arg6[%c0_12, %c0_13], %25 {strides = array<i32>} : memref<16x128xf32, #tpu.memory_space<vmem>>, vector<16x64xf32>,
    %27 = vector.extract_strided_slice %1 {offsets = [0, 64], sizes = [16, 64], strides = [1, 1]} : vector<16x128xbf16> to vector<16x64xbf16>
    %28 = arith.extf %27 : vector<16x64xbf16> to vector<16x64xf32>
    %cst_14 = arith.constant 1.250000e-01 : f32
    %29 = vector.broadcast %cst_14 : f32 to vector<16x64xf32>
    %30 = arith.mulf %28, %29 : vector<16x64xf32>
    %31 = arith.truncf %30 : vector<16x64xf32> to vector<16x64xbf16>
    %32 = vector.extract_strided_slice %3 {offsets = [0, 64], sizes = [16, 64], strides = [1, 1]} : vector<16x128xbf16> to vector<16x64xbf16>
    %cst_15 = arith.constant dense<0.000000e+00> : vector<16x16xf32>
    %33 = tpu.matmul %31, %32, %cst_15 {dimension_numbers = #tpu.dot_dimension_numbers<[1], [1], [0], [0], [0, 0, 1, 0], [], []>} : vector<16x64xbf16>, vector<16x64xbf16>, vector<16x16xf32> -> vector<16x16xf32>
    %cst_16 = arith.constant dense<0xFF800000> : vector<16xf32>
    %34 = vector.multi_reduction <maximumf>, %33, %cst_16 [1] : vector<16x16xf32> to vector<16xf32>
    %35 = vector.shape_cast %34 : vector<16xf32> to vector<16x1xf32>
    %36 = vector.broadcast %35 : vector<16x1xf32> to vector<16x16xf32>
    %37 = arith.subf %33, %36 : vector<16x16xf32>
    %38 = math.exp %37 : vector<16x16xf32>
    %cst_17 = arith.constant dense<0.000000e+00> : vector<16xf32>
    %39 = vector.multi_reduction <add>, %38, %cst_17 [1] : vector<16x16xf32> to vector<16xf32>
    %40 = vector.shape_cast %39 : vector<16xf32> to vector<16x1xf32>
    %41 = tpu.reciprocal %40 {approx = true} : vector<16x1xf32> -> vector<16x1xf32>
    %42 = vector.broadcast %41 : vector<16x1xf32> to vector<16x16xf32>
    %43 = arith.mulf %38, %42 : vector<16x16xf32>
    %44 = arith.truncf %43 : vector<16x16xf32> to vector<16x16xbf16>
    %45 = vector.extract_strided_slice %5 {offsets = [0, 64], sizes = [16, 64], strides = [1, 1]} : vector<16x128xbf16> to vector<16x64xbf16>
    %cst_18 = arith.constant dense<0.000000e+00> : vector<16x64xf32>
    %46 = tpu.matmul %44, %45, %cst_18 {dimension_numbers = #tpu.dot_dimension_numbers<[1], [0], [0], [1], [0, 0, 1, 1], [], []>} : vector<16x16xbf16>, vector<16x64xbf16>, vector<16x64xf32> -> vector<16x64xf32>
    %c0_19 = arith.constant 0 : index
    %c64 = arith.constant 64 : index
    %47 = vector.load %arg6[%c0_19, %c64] : memref<16x128xf32, #tpu.memory_space<vmem>>, vector<16x64xf32>
    tpu.vector_store %arg6[%c0_19, %c64], %46 {strides = array<i32>} : memref<16x128xf32, #tpu.memory_space<vmem>>, vector<16x64xf32>,
    %c0_20 = arith.constant 0 : index
    %c0_21 = arith.constant 0 : index
    %48 = vector.load %arg6[%c0_20, %c0_21] : memref<16x128xf32, #tpu.memory_space<vmem>>, vector<16x128xf32>
    %49 = arith.truncf %48 : vector<16x128xf32> to vector<16x128xbf16>
    %c0_22 = arith.constant 0 : index
    %c0_23 = arith.constant 0 : index
    %c0_24 = arith.constant 0 : index
    %50 = vector.load %arg5[%c0_22, %c0_23, %c0_24] : memref<1x16x128xbf16, #tpu.memory_space<vmem>>, vector<1x16x128xbf16>
    %51 = vector.shape_cast %50 : vector<1x16x128xbf16> to vector<16x128xbf16>
    %52 = vector.shape_cast %49 : vector<16x128xbf16> to vector<1x16x128xbf16>
    tpu.vector_store %arg5[%c0_22, %c0_23, %c0_24], %52 {strides = array<i32>} : memref<1x16x128xbf16, #tpu.memory_space<vmem>>, vector<1x16x128xbf16>,
    return
  }
  func.func @transform_0(%arg0: i32, %arg1: i32) -> (i32, i32, i32) {
    %c0_i32 = arith.constant 0 : i32
    %c0_i32_0 = arith.constant 0 : i32
    return %arg0, %arg1, %c0_i32 : i32, i32, i32
  }
  func.func @transform_1(%arg0: i32, %arg1: i32) -> (i32, i32, i32) {
    %c0_i32 = arith.constant 0 : i32
    %c1_i32 = arith.constant 1 : i32
    %c0_i32_0 = arith.constant 0 : i32
    return %arg0, %c0_i32, %c1_i32 : i32, i32, i32
  }
  func.func @transform_2(%arg0: i32, %arg1: i32) -> (i32, i32, i32) {
    %c0_i32 = arith.constant 0 : i32
    %c2_i32 = arith.constant 2 : i32
    %c0_i32_0 = arith.constant 0 : i32
    return %arg0, %c0_i32, %c2_i32 : i32, i32, i32
  }
  func.func @transform_3(%arg0: i32, %arg1: i32) -> (i32, i32, i32) {
    %c0_i32 = arith.constant 0 : i32
    %c0_i32_0 = arith.constant 0 : i32
    return %arg0, %arg1, %c0_i32 : i32, i32, i32
  }
}

module attributes {stable_mosaic.version = 11 : i64} {
  func.func @_matmul_bias_act_kernel(%arg0: i32, %arg1: i32, %arg2: memref<32x128xbf16, #tpu.memory_space<vmem>>, %arg3: memref<128x384xbf16, #tpu.memory_space<vmem>>, %arg4: memref<1x384xf32, #tpu.memory_space<vmem>>, %arg5: memref<32x384xbf16, #tpu.memory_space<vmem>>) attributes {dimension_semantics = [#tpu.dimension_semantics<parallel>, #tpu.dimension_semantics<parallel>], iteration_bounds = array<i64: 1, 1>, scalar_prefetch = 0 : i64, scratch_operands = 0 : i64, tpu.core_type = #tpu.core_type<tc>, window_params = [{transform_indices = @transform_0, window_bounds = array<i64: 32, 128>}, {transform_indices = @transform_1, window_bounds = array<i64: 128, 384>}, {transform_indices = @transform_2, window_bounds = array<i64: 1, 384>}, {transform_indices = @transform_3, window_bounds = array<i64: 32, 384>}]} {
    %c0 = arith.constant 0 : index
    %c0_0 = arith.constant 0 : index
    %0 = vector.load %arg2[%c0, %c0_0] : memref<32x128xbf16, #tpu.memory_space<vmem>>, vector<32x128xbf16>
    %c0_1 = arith.constant 0 : index
    %c0_2 = arith.constant 0 : index
    %1 = vector.load %arg3[%c0_1, %c0_2] : memref<128x384xbf16, #tpu.memory_space<vmem>>, vector<128x384xbf16>
    %cst = arith.constant dense<0.000000e+00> : vector<32x384xf32>
    %2 = tpu.matmul %0, %1, %cst {dimension_numbers = #tpu.dot_dimension_numbers<[1], [0], [0], [1], [0, 0, 1, 1], [], []>} : vector<32x128xbf16>, vector<128x384xbf16>, vector<32x384xf32> -> vector<32x384xf32>
    %c0_3 = arith.constant 0 : index
    %c0_4 = arith.constant 0 : index
    %3 = vector.load %arg4[%c0_3, %c0_4] : memref<1x384xf32, #tpu.memory_space<vmem>>, vector<1x384xf32>
    %4 = vector.broadcast %3 : vector<1x384xf32> to vector<32x384xf32>
    %5 = arith.addf %2, %4 : vector<32x384xf32>
    %6 = arith.truncf %5 : vector<32x384xf32> to vector<32x384xbf16>
    %c0_5 = arith.constant 0 : index
    %c0_6 = arith.constant 0 : index
    %7 = vector.load %arg5[%c0_5, %c0_6] : memref<32x384xbf16, #tpu.memory_space<vmem>>, vector<32x384xbf16>
    tpu.vector_store %arg5[%c0_5, %c0_6], %6 {strides = array<i32>} : memref<32x384xbf16, #tpu.memory_space<vmem>>, vector<32x384xbf16>,
    return
  }
  func.func @transform_0(%arg0: i32, %arg1: i32) -> (i32, i32) {
    %c0_i32 = arith.constant 0 : i32
    %c0_i32_0 = arith.constant 0 : i32
    return %arg1, %c0_i32 : i32, i32
  }
  func.func @transform_1(%arg0: i32, %arg1: i32) -> (i32, i32) {
    %c0_i32 = arith.constant 0 : i32
    %c0_i32_0 = arith.constant 0 : i32
    return %c0_i32, %arg0 : i32, i32
  }
  func.func @transform_2(%arg0: i32, %arg1: i32) -> (i32, i32) {
    %c0_i32 = arith.constant 0 : i32
    %c0_i32_0 = arith.constant 0 : i32
    return %c0_i32, %arg0 : i32, i32
  }
  func.func @transform_3(%arg0: i32, %arg1: i32) -> (i32, i32) {
    %c0_i32 = arith.constant 0 : i32
    return %arg1, %arg0 : i32, i32
  }
}

module attributes {stable_mosaic.version = 11 : i64} {
  func.func @_embed_ln_kernel(%arg0: i32, %arg1: memref<1x8x128xf32, #tpu.memory_space<vmem>>, %arg2: memref<1x8x128xf32, #tpu.memory_space<vmem>>, %arg3: memref<16x128xf32, #tpu.memory_space<vmem>>, %arg4: memref<1x1x128xf32, #tpu.memory_space<vmem>>, %arg5: memref<1x128xf32, #tpu.memory_space<vmem>>, %arg6: memref<1x128xf32, #tpu.memory_space<vmem>>, %arg7: memref<1x16x128xbf16, #tpu.memory_space<vmem>>) attributes {dimension_semantics = [#tpu.dimension_semantics<parallel>], iteration_bounds = array<i64: 2>, scalar_prefetch = 0 : i64, scratch_operands = 0 : i64, tpu.core_type = #tpu.core_type<tc>, window_params = [{transform_indices = @transform_0, window_bounds = array<i64: 1, 8, 128>}, {transform_indices = @transform_1, window_bounds = array<i64: 1, 8, 128>}, {pipeline_mode = #tpu.pipeline_mode<synchronous>, transform_indices = @transform_2, window_bounds = array<i64: 16, 128>}, {transform_indices = @transform_3, window_bounds = array<i64: 1, 1, 128>}, {pipeline_mode = #tpu.pipeline_mode<synchronous>, transform_indices = @transform_4, window_bounds = array<i64: 1, 128>}, {pipeline_mode = #tpu.pipeline_mode<synchronous>, transform_indices = @transform_5, window_bounds = array<i64: 1, 128>}, {transform_indices = @transform_6, window_bounds = array<i64: 1, 16, 128>}]} {
    %c0 = arith.constant 0 : index
    %c0_0 = arith.constant 0 : index
    %c0_1 = arith.constant 0 : index
    %0 = vector.load %arg4[%c0, %c0_0, %c0_1] : memref<1x1x128xf32, #tpu.memory_space<vmem>>, vector<1x1x128xf32>
    %1 = vector.shape_cast %0 : vector<1x1x128xf32> to vector<1x128xf32>
    %c0_2 = arith.constant 0 : index
    %c0_3 = arith.constant 0 : index
    %2 = vector.load %arg5[%c0_2, %c0_3] : memref<1x128xf32, #tpu.memory_space<vmem>>, vector<1x128xf32>
    %c0_4 = arith.constant 0 : index
    %c0_5 = arith.constant 0 : index
    %3 = vector.load %arg6[%c0_4, %c0_5] : memref<1x128xf32, #tpu.memory_space<vmem>>, vector<1x128xf32>
    %c0_6 = arith.constant 0 : index
    %c0_7 = arith.constant 0 : index
    %4 = vector.load %arg3[%c0_6, %c0_7] : memref<16x128xf32, #tpu.memory_space<vmem>>, vector<16x128xf32>
    %c0_8 = arith.constant 0 : index
    %c0_9 = arith.constant 0 : index
    %c0_10 = arith.constant 0 : index
    %5 = vector.load %arg1[%c0_8, %c0_9, %c0_10] : memref<1x8x128xf32, #tpu.memory_space<vmem>>, vector<1x8x128xf32>
    %6 = vector.shape_cast %5 : vector<1x8x128xf32> to vector<8x128xf32>
    %7 = vector.extract_strided_slice %4 {offsets = [0, 0], sizes = [8, 128], strides = [1, 1]} : vector<16x128xf32> to vector<8x128xf32>
    %8 = arith.addf %6, %7 : vector<8x128xf32>
    %9 = vector.broadcast %1 : vector<1x128xf32> to vector<8x128xf32>
    %10 = arith.addf %8, %9 : vector<8x128xf32>
    %cst = arith.constant dense<0.000000e+00> : vector<8xf32>
    %11 = vector.multi_reduction <add>, %10, %cst [1] : vector<8x128xf32> to vector<8xf32>
    %12 = vector.shape_cast %11 : vector<8xf32> to vector<8x1xf32>
    %cst_11 = arith.constant 1.280000e+02 : f32
    %13 = vector.broadcast %cst_11 : f32 to vector<8x1xf32>
    %14 = arith.divf %12, %13 : vector<8x1xf32>
    %15 = vector.broadcast %14 : vector<8x1xf32> to vector<8x128xf32>
    %16 = arith.subf %10, %15 : vector<8x128xf32>
    %17 = arith.mulf %16, %16 : vector<8x128xf32>
    %cst_12 = arith.constant dense<0.000000e+00> : vector<8xf32>
    %18 = vector.multi_reduction <add>, %17, %cst_12 [1] : vector<8x128xf32> to vector<8xf32>
    %19 = vector.shape_cast %18 : vector<8xf32> to vector<8x1xf32>
    %cst_13 = arith.constant 1.280000e+02 : f32
    %20 = vector.broadcast %cst_13 : f32 to vector<8x1xf32>
    %21 = arith.divf %19, %20 : vector<8x1xf32>
    %22 = vector.broadcast %14 : vector<8x1xf32> to vector<8x128xf32>
    %23 = arith.subf %10, %22 : vector<8x128xf32>
    %cst_14 = arith.constant 9.99999996E-13 : f32
    %24 = vector.broadcast %cst_14 : f32 to vector<8x1xf32>
    %25 = arith.addf %21, %24 : vector<8x1xf32>
    %26 = math.rsqrt %25 : vector<8x1xf32>
    %27 = vector.broadcast %26 : vector<8x1xf32> to vector<8x128xf32>
    %28 = arith.mulf %23, %27 : vector<8x128xf32>
    %29 = vector.broadcast %2 : vector<1x128xf32> to vector<8x128xf32>
    %30 = arith.mulf %28, %29 : vector<8x128xf32>
    %31 = vector.broadcast %3 : vector<1x128xf32> to vector<8x128xf32>
    %32 = arith.addf %30, %31 : vector<8x128xf32>
    %33 = arith.truncf %32 : vector<8x128xf32> to vector<8x128xbf16>
    %c0_15 = arith.constant 0 : index
    %c0_16 = arith.constant 0 : index
    %c0_17 = arith.constant 0 : index
    %34 = vector.load %arg7[%c0_15, %c0_16, %c0_17] : memref<1x16x128xbf16, #tpu.memory_space<vmem>>, vector<1x8x128xbf16>
    %35 = vector.shape_cast %34 : vector<1x8x128xbf16> to vector<8x128xbf16>
    %36 = vector.shape_cast %33 : vector<8x128xbf16> to vector<1x8x128xbf16>
    tpu.vector_store %arg7[%c0_15, %c0_16, %c0_17], %36 {strides = array<i32>} : memref<1x16x128xbf16, #tpu.memory_space<vmem>>, vector<1x8x128xbf16>,
    %c0_18 = arith.constant 0 : index
    %c0_19 = arith.constant 0 : index
    %c0_20 = arith.constant 0 : index
    %37 = vector.load %arg2[%c0_18, %c0_19, %c0_20] : memref<1x8x128xf32, #tpu.memory_space<vmem>>, vector<1x8x128xf32>
    %38 = vector.shape_cast %37 : vector<1x8x128xf32> to vector<8x128xf32>
    %39 = vector.extract_strided_slice %4 {offsets = [8, 0], sizes = [8, 128], strides = [1, 1]} : vector<16x128xf32> to vector<8x128xf32>
    %40 = arith.addf %38, %39 : vector<8x128xf32>
    %41 = vector.broadcast %1 : vector<1x128xf32> to vector<8x128xf32>
    %42 = arith.addf %40, %41 : vector<8x128xf32>
    %cst_21 = arith.constant dense<0.000000e+00> : vector<8xf32>
    %43 = vector.multi_reduction <add>, %42, %cst_21 [1] : vector<8x128xf32> to vector<8xf32>
    %44 = vector.shape_cast %43 : vector<8xf32> to vector<8x1xf32>
    %cst_22 = arith.constant 1.280000e+02 : f32
    %45 = vector.broadcast %cst_22 : f32 to vector<8x1xf32>
    %46 = arith.divf %44, %45 : vector<8x1xf32>
    %47 = vector.broadcast %46 : vector<8x1xf32> to vector<8x128xf32>
    %48 = arith.subf %42, %47 : vector<8x128xf32>
    %49 = arith.mulf %48, %48 : vector<8x128xf32>
    %cst_23 = arith.constant dense<0.000000e+00> : vector<8xf32>
    %50 = vector.multi_reduction <add>, %49, %cst_23 [1] : vector<8x128xf32> to vector<8xf32>
    %51 = vector.shape_cast %50 : vector<8xf32> to vector<8x1xf32>
    %cst_24 = arith.constant 1.280000e+02 : f32
    %52 = vector.broadcast %cst_24 : f32 to vector<8x1xf32>
    %53 = arith.divf %51, %52 : vector<8x1xf32>
    %54 = vector.broadcast %46 : vector<8x1xf32> to vector<8x128xf32>
    %55 = arith.subf %42, %54 : vector<8x128xf32>
    %cst_25 = arith.constant 9.99999996E-13 : f32
    %56 = vector.broadcast %cst_25 : f32 to vector<8x1xf32>
    %57 = arith.addf %53, %56 : vector<8x1xf32>
    %58 = math.rsqrt %57 : vector<8x1xf32>
    %59 = vector.broadcast %58 : vector<8x1xf32> to vector<8x128xf32>
    %60 = arith.mulf %55, %59 : vector<8x128xf32>
    %61 = vector.broadcast %2 : vector<1x128xf32> to vector<8x128xf32>
    %62 = arith.mulf %60, %61 : vector<8x128xf32>
    %63 = vector.broadcast %3 : vector<1x128xf32> to vector<8x128xf32>
    %64 = arith.addf %62, %63 : vector<8x128xf32>
    %65 = arith.truncf %64 : vector<8x128xf32> to vector<8x128xbf16>
    %c0_26 = arith.constant 0 : index
    %c8 = arith.constant 8 : index
    %c0_27 = arith.constant 0 : index
    %66 = vector.load %arg7[%c0_26, %c8, %c0_27] : memref<1x16x128xbf16, #tpu.memory_space<vmem>>, vector<1x8x128xbf16>
    %67 = vector.shape_cast %66 : vector<1x8x128xbf16> to vector<8x128xbf16>
    %68 = vector.shape_cast %65 : vector<8x128xbf16> to vector<1x8x128xbf16>
    tpu.vector_store %arg7[%c0_26, %c8, %c0_27], %68 {strides = array<i32>} : memref<1x16x128xbf16, #tpu.memory_space<vmem>>, vector<1x8x128xbf16>,
    return
  }
  func.func @transform_0(%arg0: i32) -> (i32, i32, i32) {
    %c0_i32 = arith.constant 0 : i32
    %c0_i32_0 = arith.constant 0 : i32
    %c0_i32_1 = arith.constant 0 : i32
    return %arg0, %c0_i32, %c0_i32_0 : i32, i32, i32
  }
  func.func @transform_1(%arg0: i32) -> (i32, i32, i32) {
    %c0_i32 = arith.constant 0 : i32
    %c0_i32_0 = arith.constant 0 : i32
    %c0_i32_1 = arith.constant 0 : i32
    return %arg0, %c0_i32, %c0_i32_0 : i32, i32, i32
  }
  func.func @transform_2(%arg0: i32) -> (i32, i32) {
    %c0_i32 = arith.constant 0 : i32
    %c0_i32_0 = arith.constant 0 : i32
    %c0_i32_1 = arith.constant 0 : i32
    return %c0_i32, %c0_i32_0 : i32, i32
  }
  func.func @transform_3(%arg0: i32) -> (i32, i32, i32) {
    %c0_i32 = arith.constant 0 : i32
    %c0_i32_0 = arith.constant 0 : i32
    %c0_i32_1 = arith.constant 0 : i32
    return %arg0, %c0_i32, %c0_i32_0 : i32, i32, i32
  }
  func.func @transform_4(%arg0: i32) -> (i32, i32) {
    %c0_i32 = arith.constant 0 : i32
    %c0_i32_0 = arith.constant 0 : i32
    %c0_i32_1 = arith.constant 0 : i32
    return %c0_i32, %c0_i32_0 : i32, i32
  }
  func.func @transform_5(%arg0: i32) -> (i32, i32) {
    %c0_i32 = arith.constant 0 : i32
    %c0_i32_0 = arith.constant 0 : i32
    %c0_i32_1 = arith.constant 0 : i32
    return %c0_i32, %c0_i32_0 : i32, i32
  }
  func.func @transform_6(%arg0: i32) -> (i32, i32, i32) {
    %c0_i32 = arith.constant 0 : i32
    %c0_i32_0 = arith.constant 0 : i32
    %c0_i32_1 = arith.constant 0 : i32
    return %arg0, %c0_i32, %c0_i32_0 : i32, i32, i32
  }
}

module attributes {stable_mosaic.version = 11 : i64} {
  func.func @_matmul_bias_act_kernel(%arg0: i32, %arg1: i32, %arg2: memref<32x128xbf16, #tpu.memory_space<vmem>>, %arg3: memref<128x256xbf16, #tpu.memory_space<vmem>>, %arg4: memref<1x256xf32, #tpu.memory_space<vmem>>, %arg5: memref<32x256xbf16, #tpu.memory_space<vmem>>) attributes {dimension_semantics = [#tpu.dimension_semantics<parallel>, #tpu.dimension_semantics<parallel>], iteration_bounds = array<i64: 1, 1>, scalar_prefetch = 0 : i64, scratch_operands = 0 : i64, tpu.core_type = #tpu.core_type<tc>, window_params = [{transform_indices = @transform_0, window_bounds = array<i64: 32, 128>}, {transform_indices = @transform_1, window_bounds = array<i64: 128, 256>}, {transform_indices = @transform_2, window_bounds = array<i64: 1, 256>}, {transform_indices = @transform_3, window_bounds = array<i64: 32, 256>}]} {
    %c0 = arith.constant 0 : index
    %c0_0 = arith.constant 0 : index
    %0 = vector.load %arg2[%c0, %c0_0] : memref<32x128xbf16, #tpu.memory_space<vmem>>, vector<32x128xbf16>
    %c0_1 = arith.constant 0 : index
    %c0_2 = arith.constant 0 : index
    %1 = vector.load %arg3[%c0_1, %c0_2] : memref<128x256xbf16, #tpu.memory_space<vmem>>, vector<128x256xbf16>
    %cst = arith.constant dense<0.000000e+00> : vector<32x256xf32>
    %2 = tpu.matmul %0, %1, %cst {dimension_numbers = #tpu.dot_dimension_numbers<[1], [0], [0], [1], [0, 0, 1, 1], [], []>} : vector<32x128xbf16>, vector<128x256xbf16>, vector<32x256xf32> -> vector<32x256xf32>
    %c0_3 = arith.constant 0 : index
    %c0_4 = arith.constant 0 : index
    %3 = vector.load %arg4[%c0_3, %c0_4] : memref<1x256xf32, #tpu.memory_space<vmem>>, vector<1x256xf32>
    %4 = vector.broadcast %3 : vector<1x256xf32> to vector<32x256xf32>
    %5 = arith.addf %2, %4 : vector<32x256xf32>
    %cst_5 = arith.constant 5.000000e-01 : f32
    %6 = vector.broadcast %cst_5 : f32 to vector<32x256xf32>
    %7 = arith.mulf %6, %5 : vector<32x256xf32>
    %cst_6 = arith.constant 0.707106769 : f32
    %8 = vector.broadcast %cst_6 : f32 to vector<32x256xf32>
    %9 = arith.mulf %5, %8 : vector<32x256xf32>
    %10 = math.erf %9 : vector<32x256xf32>
    %cst_7 = arith.constant 1.000000e+00 : f32
    %11 = vector.broadcast %cst_7 : f32 to vector<32x256xf32>
    %12 = arith.addf %11, %10 : vector<32x256xf32>
    %13 = arith.mulf %7, %12 : vector<32x256xf32>
    %14 = arith.truncf %13 : vector<32x256xf32> to vector<32x256xbf16>
    %c0_8 = arith.constant 0 : index
    %c0_9 = arith.constant 0 : index
    %15 = vector.load %arg5[%c0_8, %c0_9] : memref<32x256xbf16, #tpu.memory_space<vmem>>, vector<32x256xbf16>
    tpu.vector_store %arg5[%c0_8, %c0_9], %14 {strides = array<i32>} : memref<32x256xbf16, #tpu.memory_space<vmem>>, vector<32x256xbf16>,
    return
  }
  func.func @transform_0(%arg0: i32, %arg1: i32) -> (i32, i32) {
    %c0_i32 = arith.constant 0 : i32
    %c0_i32_0 = arith.constant 0 : i32
    return %arg1, %c0_i32 : i32, i32
  }
  func.func @transform_1(%arg0: i32, %arg1: i32) -> (i32, i32) {
    %c0_i32 = arith.constant 0 : i32
    %c0_i32_0 = arith.constant 0 : i32
    return %c0_i32, %arg0 : i32, i32
  }
  func.func @transform_2(%arg0: i32, %arg1: i32) -> (i32, i32) {
    %c0_i32 = arith.constant 0 : i32
    %c0_i32_0 = arith.constant 0 : i32
    return %c0_i32, %arg0 : i32, i32
  }
  func.func @transform_3(%arg0: i32, %arg1: i32) -> (i32, i32) {
    %c0_i32 = arith.constant 0 : i32
    return %arg1, %arg0 : i32, i32
  }
}

module attributes {stable_mosaic.version = 11 : i64} {
  func.func @_matmul_res_ln_kernel(%arg0: i32, %arg1: memref<32x256xbf16, #tpu.memory_space<vmem>>, %arg2: memref<256x128xbf16, #tpu.memory_space<vmem>>, %arg3: memref<1x128xf32, #tpu.memory_space<vmem>>, %arg4: memref<32x128xbf16, #tpu.memory_space<vmem>>, %arg5: memref<1x128xf32, #tpu.memory_space<vmem>>, %arg6: memref<1x128xf32, #tpu.memory_space<vmem>>, %arg7: memref<32x128xbf16, #tpu.memory_space<vmem>>) attributes {dimension_semantics = [#tpu.dimension_semantics<parallel>], iteration_bounds = array<i64: 1>, scalar_prefetch = 0 : i64, scratch_operands = 0 : i64, tpu.core_type = #tpu.core_type<tc>, window_params = [{transform_indices = @transform_0, window_bounds = array<i64: 32, 256>}, {pipeline_mode = #tpu.pipeline_mode<synchronous>, transform_indices = @transform_1, window_bounds = array<i64: 256, 128>}, {pipeline_mode = #tpu.pipeline_mode<synchronous>, transform_indices = @transform_2, window_bounds = array<i64: 1, 128>}, {transform_indices = @transform_3, window_bounds = array<i64: 32, 128>}, {pipeline_mode = #tpu.pipeline_mode<synchronous>, transform_indices = @transform_4, window_bounds = array<i64: 1, 128>}, {pipeline_mode = #tpu.pipeline_mode<synchronous>, transform_indices = @transform_5, window_bounds = array<i64: 1, 128>}, {transform_indices = @transform_6, window_bounds = array<i64: 32, 128>}]} {
    %c0 = arith.constant 0 : index
    %c0_0 = arith.constant 0 : index
    %0 = vector.load %arg1[%c0, %c0_0] : memref<32x256xbf16, #tpu.memory_space<vmem>>, vector<32x256xbf16>
    %c0_1 = arith.constant 0 : index
    %c0_2 = arith.constant 0 : index
    %1 = vector.load %arg2[%c0_1, %c0_2] : memref<256x128xbf16, #tpu.memory_space<vmem>>, vector<256x128xbf16>
    %cst = arith.constant dense<0.000000e+00> : vector<32x128xf32>
    %2 = tpu.matmul %0, %1, %cst {dimension_numbers = #tpu.dot_dimension_numbers<[1], [0], [0], [1], [0, 0, 1, 1], [], []>} : vector<32x256xbf16>, vector<256x128xbf16>, vector<32x128xf32> -> vector<32x128xf32>
    %c0_3 = arith.constant 0 : index
    %c0_4 = arith.constant 0 : index
    %3 = vector.load %arg3[%c0_3, %c0_4] : memref<1x128xf32, #tpu.memory_space<vmem>>, vector<1x128xf32>
    %4 = vector.broadcast %3 : vector<1x128xf32> to vector<32x128xf32>
    %5 = arith.addf %2, %4 : vector<32x128xf32>
    %c0_5 = arith.constant 0 : index
    %c0_6 = arith.constant 0 : index
    %6 = vector.load %arg4[%c0_5, %c0_6] : memref<32x128xbf16, #tpu.memory_space<vmem>>, vector<32x128xbf16>
    %7 = arith.extf %6 : vector<32x128xbf16> to vector<32x128xf32>
    %8 = arith.addf %5, %7 : vector<32x128xf32>
    %cst_7 = arith.constant dense<0.000000e+00> : vector<32xf32>
    %9 = vector.multi_reduction <add>, %8, %cst_7 [1] : vector<32x128xf32> to vector<32xf32>
    %10 = vector.shape_cast %9 : vector<32xf32> to vector<32x1xf32>
    %cst_8 = arith.constant 1.280000e+02 : f32
    %11 = vector.broadcast %cst_8 : f32 to vector<32x1xf32>
    %12 = arith.divf %10, %11 : vector<32x1xf32>
    %13 = vector.broadcast %12 : vector<32x1xf32> to vector<32x128xf32>
    %14 = arith.subf %8, %13 : vector<32x128xf32>
    %15 = arith.mulf %14, %14 : vector<32x128xf32>
    %cst_9 = arith.constant dense<0.000000e+00> : vector<32xf32>
    %16 = vector.multi_reduction <add>, %15, %cst_9 [1] : vector<32x128xf32> to vector<32xf32>
    %17 = vector.shape_cast %16 : vector<32xf32> to vector<32x1xf32>
    %cst_10 = arith.constant 1.280000e+02 : f32
    %18 = vector.broadcast %cst_10 : f32 to vector<32x1xf32>
    %19 = arith.divf %17, %18 : vector<32x1xf32>
    %20 = vector.broadcast %12 : vector<32x1xf32> to vector<32x128xf32>
    %21 = arith.subf %8, %20 : vector<32x128xf32>
    %cst_11 = arith.constant 9.99999996E-13 : f32
    %22 = vector.broadcast %cst_11 : f32 to vector<32x1xf32>
    %23 = arith.addf %19, %22 : vector<32x1xf32>
    %24 = math.rsqrt %23 : vector<32x1xf32>
    %25 = vector.broadcast %24 : vector<32x1xf32> to vector<32x128xf32>
    %26 = arith.mulf %21, %25 : vector<32x128xf32>
    %c0_12 = arith.constant 0 : index
    %c0_13 = arith.constant 0 : index
    %27 = vector.load %arg5[%c0_12, %c0_13] : memref<1x128xf32, #tpu.memory_space<vmem>>, vector<1x128xf32>
    %28 = vector.broadcast %27 : vector<1x128xf32> to vector<32x128xf32>
    %29 = arith.mulf %26, %28 : vector<32x128xf32>
    %c0_14 = arith.constant 0 : index
    %c0_15 = arith.constant 0 : index
    %30 = vector.load %arg6[%c0_14, %c0_15] : memref<1x128xf32, #tpu.memory_space<vmem>>, vector<1x128xf32>
    %31 = vector.broadcast %30 : vector<1x128xf32> to vector<32x128xf32>
    %32 = arith.addf %29, %31 : vector<32x128xf32>
    %33 = arith.truncf %32 : vector<32x128xf32> to vector<32x128xbf16>
    %c0_16 = arith.constant 0 : index
    %c0_17 = arith.constant 0 : index
    %34 = vector.load %arg7[%c0_16, %c0_17] : memref<32x128xbf16, #tpu.memory_space<vmem>>, vector<32x128xbf16>
    tpu.vector_store %arg7[%c0_16, %c0_17], %33 {strides = array<i32>} : memref<32x128xbf16, #tpu.memory_space<vmem>>, vector<32x128xbf16>,
    return
  }
  func.func @transform_0(%arg0: i32) -> (i32, i32) {
    %c0_i32 = arith.constant 0 : i32
    %c0_i32_0 = arith.constant 0 : i32
    return %arg0, %c0_i32 : i32, i32
  }
  func.func @transform_1(%arg0: i32) -> (i32, i32) {
    %c0_i32 = arith.constant 0 : i32
    %c0_i32_0 = arith.constant 0 : i32
    %c0_i32_1 = arith.constant 0 : i32
    return %c0_i32, %c0_i32_0 : i32, i32
  }
  func.func @transform_2(%arg0: i32) -> (i32, i32) {
    %c0_i32 = arith.constant 0 : i32
    %c0_i32_0 = arith.constant 0 : i32
    %c0_i32_1 = arith.constant 0 : i32
    return %c0_i32, %c0_i32_0 : i32, i32
  }
  func.func @transform_3(%arg0: i32) -> (i32, i32) {
    %c0_i32 = arith.constant 0 : i32
    %c0_i32_0 = arith.constant 0 : i32
    return %arg0, %c0_i32 : i32, i32
  }
  func.func @transform_4(%arg0: i32) -> (i32, i32) {
    %c0_i32 = arith.constant 0 : i32
    %c0_i32_0 = arith.constant 0 : i32
    %c0_i32_1 = arith.constant 0 : i32
    return %c0_i32, %c0_i32_0 : i32, i32
  }
  func.func @transform_5(%arg0: i32) -> (i32, i32) {
    %c0_i32 = arith.constant 0 : i32
    %c0_i32_0 = arith.constant 0 : i32
    %c0_i32_1 = arith.constant 0 : i32
    return %c0_i32, %c0_i32_0 : i32, i32
  }
  func.func @transform_6(%arg0: i32) -> (i32, i32) {
    %c0_i32 = arith.constant 0 : i32
    %c0_i32_0 = arith.constant 0 : i32
    return %arg0, %c0_i32 : i32, i32
  }
}

module attributes {stable_mosaic.version = 11 : i64} {
  func.func @_matmul_res_ln_kernel(%arg0: i32, %arg1: memref<32x128xbf16, #tpu.memory_space<vmem>>, %arg2: memref<128x128xbf16, #tpu.memory_space<vmem>>, %arg3: memref<1x128xf32, #tpu.memory_space<vmem>>, %arg4: memref<32x128xbf16, #tpu.memory_space<vmem>>, %arg5: memref<1x128xf32, #tpu.memory_space<vmem>>, %arg6: memref<1x128xf32, #tpu.memory_space<vmem>>, %arg7: memref<32x128xbf16, #tpu.memory_space<vmem>>) attributes {dimension_semantics = [#tpu.dimension_semantics<parallel>], iteration_bounds = array<i64: 1>, scalar_prefetch = 0 : i64, scratch_operands = 0 : i64, tpu.core_type = #tpu.core_type<tc>, window_params = [{transform_indices = @transform_0, window_bounds = array<i64: 32, 128>}, {pipeline_mode = #tpu.pipeline_mode<synchronous>, transform_indices = @transform_1, window_bounds = array<i64: 128, 128>}, {pipeline_mode = #tpu.pipeline_mode<synchronous>, transform_indices = @transform_2, window_bounds = array<i64: 1, 128>}, {transform_indices = @transform_3, window_bounds = array<i64: 32, 128>}, {pipeline_mode = #tpu.pipeline_mode<synchronous>, transform_indices = @transform_4, window_bounds = array<i64: 1, 128>}, {pipeline_mode = #tpu.pipeline_mode<synchronous>, transform_indices = @transform_5, window_bounds = array<i64: 1, 128>}, {transform_indices = @transform_6, window_bounds = array<i64: 32, 128>}]} {
    %c0 = arith.constant 0 : index
    %c0_0 = arith.constant 0 : index
    %0 = vector.load %arg1[%c0, %c0_0] : memref<32x128xbf16, #tpu.memory_space<vmem>>, vector<32x128xbf16>
    %c0_1 = arith.constant 0 : index
    %c0_2 = arith.constant 0 : index
    %1 = vector.load %arg2[%c0_1, %c0_2] : memref<128x128xbf16, #tpu.memory_space<vmem>>, vector<128x128xbf16>
    %cst = arith.constant dense<0.000000e+00> : vector<32x128xf32>
    %2 = tpu.matmul %0, %1, %cst {dimension_numbers = #tpu.dot_dimension_numbers<[1], [0], [0], [1], [0, 0, 1, 1], [], []>} : vector<32x128xbf16>, vector<128x128xbf16>, vector<32x128xf32> -> vector<32x128xf32>
    %c0_3 = arith.constant 0 : index
    %c0_4 = arith.constant 0 : index
    %3 = vector.load %arg3[%c0_3, %c0_4] : memref<1x128xf32, #tpu.memory_space<vmem>>, vector<1x128xf32>
    %4 = vector.broadcast %3 : vector<1x128xf32> to vector<32x128xf32>
    %5 = arith.addf %2, %4 : vector<32x128xf32>
    %c0_5 = arith.constant 0 : index
    %c0_6 = arith.constant 0 : index
    %6 = vector.load %arg4[%c0_5, %c0_6] : memref<32x128xbf16, #tpu.memory_space<vmem>>, vector<32x128xbf16>
    %7 = arith.extf %6 : vector<32x128xbf16> to vector<32x128xf32>
    %8 = arith.addf %5, %7 : vector<32x128xf32>
    %cst_7 = arith.constant dense<0.000000e+00> : vector<32xf32>
    %9 = vector.multi_reduction <add>, %8, %cst_7 [1] : vector<32x128xf32> to vector<32xf32>
    %10 = vector.shape_cast %9 : vector<32xf32> to vector<32x1xf32>
    %cst_8 = arith.constant 1.280000e+02 : f32
    %11 = vector.broadcast %cst_8 : f32 to vector<32x1xf32>
    %12 = arith.divf %10, %11 : vector<32x1xf32>
    %13 = vector.broadcast %12 : vector<32x1xf32> to vector<32x128xf32>
    %14 = arith.subf %8, %13 : vector<32x128xf32>
    %15 = arith.mulf %14, %14 : vector<32x128xf32>
    %cst_9 = arith.constant dense<0.000000e+00> : vector<32xf32>
    %16 = vector.multi_reduction <add>, %15, %cst_9 [1] : vector<32x128xf32> to vector<32xf32>
    %17 = vector.shape_cast %16 : vector<32xf32> to vector<32x1xf32>
    %cst_10 = arith.constant 1.280000e+02 : f32
    %18 = vector.broadcast %cst_10 : f32 to vector<32x1xf32>
    %19 = arith.divf %17, %18 : vector<32x1xf32>
    %20 = vector.broadcast %12 : vector<32x1xf32> to vector<32x128xf32>
    %21 = arith.subf %8, %20 : vector<32x128xf32>
    %cst_11 = arith.constant 9.99999996E-13 : f32
    %22 = vector.broadcast %cst_11 : f32 to vector<32x1xf32>
    %23 = arith.addf %19, %22 : vector<32x1xf32>
    %24 = math.rsqrt %23 : vector<32x1xf32>
    %25 = vector.broadcast %24 : vector<32x1xf32> to vector<32x128xf32>
    %26 = arith.mulf %21, %25 : vector<32x128xf32>
    %c0_12 = arith.constant 0 : index
    %c0_13 = arith.constant 0 : index
    %27 = vector.load %arg5[%c0_12, %c0_13] : memref<1x128xf32, #tpu.memory_space<vmem>>, vector<1x128xf32>
    %28 = vector.broadcast %27 : vector<1x128xf32> to vector<32x128xf32>
    %29 = arith.mulf %26, %28 : vector<32x128xf32>
    %c0_14 = arith.constant 0 : index
    %c0_15 = arith.constant 0 : index
    %30 = vector.load %arg6[%c0_14, %c0_15] : memref<1x128xf32, #tpu.memory_space<vmem>>, vector<1x128xf32>
    %31 = vector.broadcast %30 : vector<1x128xf32> to vector<32x128xf32>
    %32 = arith.addf %29, %31 : vector<32x128xf32>
    %33 = arith.truncf %32 : vector<32x128xf32> to vector<32x128xbf16>
    %c0_16 = arith.constant 0 : index
    %c0_17 = arith.constant 0 : index
    %34 = vector.load %arg7[%c0_16, %c0_17] : memref<32x128xbf16, #tpu.memory_space<vmem>>, vector<32x128xbf16>
    tpu.vector_store %arg7[%c0_16, %c0_17], %33 {strides = array<i32>} : memref<32x128xbf16, #tpu.memory_space<vmem>>, vector<32x128xbf16>,
    return
  }
  func.func @transform_0(%arg0: i32) -> (i32, i32) {
    %c0_i32 = arith.constant 0 : i32
    %c0_i32_0 = arith.constant 0 : i32
    return %arg0, %c0_i32 : i32, i32
  }
  func.func @transform_1(%arg0: i32) -> (i32, i32) {
    %c0_i32 = arith.constant 0 : i32
    %c0_i32_0 = arith.constant 0 : i32
    %c0_i32_1 = arith.constant 0 : i32
    return %c0_i32, %c0_i32_0 : i32, i32
  }
  func.func @transform_2(%arg0: i32) -> (i32, i32) {
    %c0_i32 = arith.constant 0 : i32
    %c0_i32_0 = arith.constant 0 : i32
    %c0_i32_1 = arith.constant 0 : i32
    return %c0_i32, %c0_i32_0 : i32, i32
  }
  func.func @transform_3(%arg0: i32) -> (i32, i32) {
    %c0_i32 = arith.constant 0 : i32
    %c0_i32_0 = arith.constant 0 : i32
    return %arg0, %c0_i32 : i32, i32
  }
  func.func @transform_4(%arg0: i32) -> (i32, i32) {
    %c0_i32 = arith.constant 0 : i32
    %c0_i32_0 = arith.constant 0 : i32
    %c0_i32_1 = arith.constant 0 : i32
    return %c0_i32, %c0_i32_0 : i32, i32
  }
  func.func @transform_5(%arg0: i32) -> (i32, i32) {
    %c0_i32 = arith.constant 0 : i32
    %c0_i32_0 = arith.constant 0 : i32
    %c0_i32_1 = arith.constant 0 : i32
    return %c0_i32, %c0_i32_0 : i32, i32
  }
  func.func @transform_6(%arg0: i32) -> (i32, i32) {
    %c0_i32 = arith.constant 0 : i32
    %c0_i32_0 = arith.constant 0 : i32
    return %arg0, %c0_i32 : i32, i32
  }
}

</mosaic_0001>

<llo_original>
// kernel: transformer_net_forward.12
$region0: #{transformer_net_forward.12}
  #allocation0 [shape = 'u32[]', space=smem, size = 0x4, offset = 0x4, fixed_abs, tag = 'smem constant byte address 0x4 - core index']
  #allocation1 [shape = 'u32[144,128]{1,0:T(1,128)}', space=vmem, size = 0x12000, scoped, tag = 'internal scratch']
  %s0 = inlined_call_operand.vmem [shape: f32[2,16], index: 0, kind: input, shape index: {}]
  %s1 = inlined_call_operand.vmem [shape: bf16[16,64], index: 1, kind: input, shape index: {}]
  %s2 = inlined_call_operand.vmem [shape: f32[1,64], index: 2, kind: input, shape index: {}]
  %s3 = inlined_call_operand.vmem [shape: bf16[64,128], index: 3, kind: input, shape index: {}]
  %s4 = inlined_call_operand.vmem [shape: f32[1,128], index: 4, kind: input, shape index: {}]
  %s5 = inlined_call_operand.vmem [shape: f32[2,128], index: 5, kind: output, shape index: {}]
  %s6 = sld [smem:[#allocation0]]
  $region30: #{transformer_net_forward.12} parent=0
    _
  %s8 = ssub.s32 1, %s6
  %s9 = scalar_select 0, %s8, %s6
  // Predicated region
  $region2: #{transformer_net_forward.12} parent=0 // pred_check
    _
  $region3: #{transformer_net_forward.12} parent=0 // pred_check_branch
    %11 = sbr.rel (0) target = $region5
  $region4: #{transformer_net_forward.12} parent=0 // pred_region
    _
  $region5: #{transformer_net_forward.12} parent=0 // pred_fallthru
    _
  // Predicated region
  $region6: #{transformer_net_forward.12} parent=0 // pred_check
    _
  $region7: #{transformer_net_forward.12} parent=0 // pred_check_branch
    %13 = sbr.rel (0) target = $region9
  $region8: #{transformer_net_forward.12} parent=0 // pred_region
    _
  $region9: #{transformer_net_forward.12} parent=0 // pred_fallthru
    _
  // Predicated region
  $region10: #{transformer_net_forward.12} parent=0 // pred_check
    _
  $region11: #{transformer_net_forward.12} parent=0 // pred_check_branch
    %15 = sbr.rel (0) target = $region13
  $region12: #{transformer_net_forward.12} parent=0 // pred_region
    _
  $region13: #{transformer_net_forward.12} parent=0 // pred_fallthru
    _
  // Predicated region
  $region14: #{transformer_net_forward.12} parent=0 // pred_check
    _
  $region15: #{transformer_net_forward.12} parent=0 // pred_check_branch
    %17 = sbr.rel (0) target = $region17
  $region16: #{transformer_net_forward.12} parent=0 // pred_region
    _
  $region17: #{transformer_net_forward.12} parent=0 // pred_fallthru
    _
  // Predicated region
  $region18: #{transformer_net_forward.12} parent=0 // pred_check
    _
  $region19: #{transformer_net_forward.12} parent=0 // pred_check_branch
    %19 = sbr.rel (0) target = $region21
  $region20: #{transformer_net_forward.12} parent=0 // pred_region
    _
  $region21: #{transformer_net_forward.12} parent=0 // pred_fallthru
    _
  %v21 = vld [vmem:[%s0] sm:$0x3]
  %v22 = vpack.c.bf16 %v21, %v21
  %v23 = vld [vmem:[%s1] sm:$0xf]
  %v24 = vld [vmem:[%s1 + $0x4] sm:$0xf]
  %v25 = vld [vmem:[%s2] sm:$0x1]
  %v27 = vlaneseq
  %v28 = vshrl.u32 %v27, 7
  %v29 = vsub.s32 0, %v28
  %v30 = vrot.slane %v25, %v29
  %v34 = vunpack.c.l.b16 %v23
  %v35 = vunpack.c.l.b16 %v24
  %v36 = vpack.c.b16 %v35, %v34
  %vm38 = vcmask 130048
  %v40 = vsel %vm38, %v22, 0
  %42 = vmatprep.subr.bf16.mxu0 0
  %43 = vmatpush1.bf16.msra.mxu0 %v36
  %44 = vmatprep.subr.bf16.mxu0 0
  %45 = vmatpush1.bf16.msra.mxu0 0
  %46 = vmatprep.subr.bf16.mxu0 0
  %47 = vmatpush1.bf16.msra.mxu0 0
  %48 = vmatprep.subr.bf16.mxu0 0
  %49 = vmatpush1.bf16.msra.mxu0 0
  %50 = vmatprep.subr.bf16.mxu0 0
  %51 = vmatpush1.bf16.msra.mxu0 0
  %52 = vmatprep.subr.bf16.mxu0 0
  %53 = vmatpush1.bf16.msra.mxu0 0
  %54 = vmatprep.subr.bf16.mxu0 0
  %55 = vmatpush1.bf16.msra.mxu0 0
  %56 = vmatprep.subr.bf16.mxu0 0
  %57 = vmatpush1.bf16.msra.mxu0 0
  %58 = vmatprep.subr.bf16.mxu0 0
  %59 = vmatpush1.bf16.msra.mxu0 0
  %60 = vmatprep.subr.bf16.mxu0 0
  %61 = vmatpush1.bf16.msra.mxu0 0
  %62 = vmatprep.subr.bf16.mxu0 0
  %63 = vmatpush1.bf16.msra.mxu0 0
  %64 = vmatprep.subr.bf16.mxu0 0
  %65 = vmatpush1.bf16.msra.mxu0 0
  %66 = vmatprep.subr.bf16.mxu0 0
  %67 = vmatpush1.bf16.msra.mxu0 0
  %68 = vmatprep.subr.bf16.mxu0 0
  %69 = vmatpush1.bf16.msra.mxu0 0
  %70 = vmatprep.subr.bf16.mxu0 0
  %71 = vmatpush1.bf16.msra.mxu0 0
  %72 = vmatprep.subr.bf16.mxu0 0
  %73 = vmatpush1.bf16.msra.mxu0 0
  %74 = vmatprep.mubr.bf16.mxu0 0
  %75 = vmatmul.mubr.bf16.gmra.mrb[0].mxu0 %v40
  %v76 = vpop.f32.mrb[0].mxu0
  %v77 = vadd.f32 %v30, %v76
  %v78 = vpop.f32.mrb[0].mxu0
  %v79 = vpop.f32.mrb[0].mxu0
  %v80 = vpop.f32.mrb[0].mxu0
  %81 = vdwg.mxu0
  %v82 = vxor.u32 %v77, 2147483648
  %v83 = vmul.f32 %v82, 1.442695
  %v84 = vpow.pop %v83
  %v85 = vadd.f32 %v84, 1.0
  %v86 = vrcp.pop %v85
  %v87 = vmul.f32 1.0, %v86
  %v88 = vmul.f32 %v77, %v87
  %v89 = vpack.c.bf16 %v88, %v88
  %v90 = vld [vmem:[%s3] sm:$0xf]
  %v91 = vld [vmem:[%s3 + $0x4] sm:$0xf]
  %v92 = vld [vmem:[%s3 + $0x8] sm:$0xf]
  %v93 = vld [vmem:[%s3 + $0xc] sm:$0xf]
  %v94 = vld [vmem:[%s3 + $0x10] sm:$0xf]
  %v95 = vld [vmem:[%s3 + $0x14] sm:$0xf]
  %v96 = vld [vmem:[%s3 + $0x18] sm:$0xf]
  %v97 = vld [vmem:[%s3 + $0x1c] sm:$0xf]
  %v98 = vld [vmem:[%s4] sm:$0x1]
  %v100 = vlaneseq
  %v101 = vshrl.u32 %v100, 7
  %v102 = vsub.s32 0, %v101
  %v103 = vrot.slane %v98, %v102
  %v113 = vunpack.c.l.b16 %v90
  %v114 = vunpack.c.l.b16 %v91
  %v115 = vunpack.c.l.b16 %v92
  %v116 = vunpack.c.l.b16 %v93
  %v117 = vunpack.c.l.b16 %v94
  %v118 = vunpack.c.l.b16 %v95
  %v119 = vunpack.c.l.b16 %v96
  %v120 = vunpack.c.l.b16 %v97
  %v121 = vpack.c.b16 %v114, %v113
  %v122 = vpack.c.b16 %v116, %v115
  %v123 = vpack.c.b16 %v118, %v117
  %v124 = vpack.c.b16 %v120, %v119
  %vm129 = vcmask 523264
  %v131 = vsel %vm129, %v89, 0
  %133 = vmatprep.subr.bf16.mxu0 0
  %134 = vmatpush1.bf16.msra.mxu0 %v121
  %135 = vmatprep.subr.bf16.mxu0 0
  %136 = vmatpush1.bf16.msra.mxu0 %v122
  %137 = vmatprep.subr.bf16.mxu0 0
  %138 = vmatpush1.bf16.msra.mxu0 %v123
  %139 = vmatprep.subr.bf16.mxu0 0
  %140 = vmatpush1.bf16.msra.mxu0 %v124
  %141 = vmatprep.subr.bf16.mxu0 0
  %142 = vmatpush1.bf16.msra.mxu0 0
  %143 = vmatprep.subr.bf16.mxu0 0
  %144 = vmatpush1.bf16.msra.mxu0 0
  %145 = vmatprep.subr.bf16.mxu0 0
  %146 = vmatpush1.bf16.msra.mxu0 0
  %147 = vmatprep.subr.bf16.mxu0 0
  %148 = vmatpush1.bf16.msra.mxu0 0
  %149 = vmatprep.subr.bf16.mxu0 0
  %150 = vmatpush1.bf16.msra.mxu0 0
  %151 = vmatprep.subr.bf16.mxu0 0
  %152 = vmatpush1.bf16.msra.mxu0 0
  %153 = vmatprep.subr.bf16.mxu0 0
  %154 = vmatpush1.bf16.msra.mxu0 0
  %155 = vmatprep.subr.bf16.mxu0 0
  %156 = vmatpush1.bf16.msra.mxu0 0
  %157 = vmatprep.subr.bf16.mxu0 0
  %158 = vmatpush1.bf16.msra.mxu0 0
  %159 = vmatprep.subr.bf16.mxu0 0
  %160 = vmatpush1.bf16.msra.mxu0 0
  %161 = vmatprep.subr.bf16.mxu0 0
  %162 = vmatpush1.bf16.msra.mxu0 0
  %163 = vmatprep.subr.bf16.mxu0 0
  %164 = vmatpush1.bf16.msra.mxu0 0
  %165 = vmatprep.mubr.bf16.mxu0 0
  %166 = vmatmul.mubr.bf16.gmra.mrb[0].mxu0 %v131
  %v167 = vpop.f32.mrb[0].mxu0
  %v168 = vadd.f32 %v103, %v167
  %v169 = vpop.f32.mrb[0].mxu0
  %v170 = vpop.f32.mrb[0].mxu0
  %v171 = vpop.f32.mrb[0].mxu0
  %172 = vdwg.mxu0
  %173 = vst [vmem:[%s5] sm:$0x3] %v168
  // Predicated region
  $region22: #{transformer_net_forward.12} parent=0 // pred_check
    _
  $region23: #{transformer_net_forward.12} parent=0 // pred_check_branch
    %175 = sbr.rel (0) target = $region25
  $region24: #{transformer_net_forward.12} parent=0 // pred_region
    _
  $region25: #{transformer_net_forward.12} parent=0 // pred_fallthru
    _
  // Predicated region
  $region26: #{transformer_net_forward.12} parent=0 // pred_check
    _
  $region27: #{transformer_net_forward.12} parent=0 // pred_check_branch
    %177 = sbr.rel (0) target = $region29
  $region28: #{transformer_net_forward.12} parent=0 // pred_region
    _
  $region29: #{transformer_net_forward.12} parent=0 // pred_fallthru
    _

// kernel: transformer_net_forward.13
$region0: #{transformer_net_forward.13}
  #allocation0 [shape = 'u32[]', space=smem, size = 0x4, offset = 0x4, fixed_abs, tag = 'smem constant byte address 0x4 - core index']
  #allocation1 [shape = 'u32[144,128]{1,0:T(1,128)}', space=vmem, size = 0x12000, scoped, tag = 'internal scratch']
  %s0 = inlined_call_operand.vmem [shape: f32[2,8,128], index: 0, kind: input, shape index: {}]
  %s1 = inlined_call_operand.vmem [shape: f32[2,8,128], index: 1, kind: input, shape index: {}]
  %s2 = inlined_call_operand.vmem [shape: f32[16,128], index: 2, kind: input, shape index: {}]
  %s3 = inlined_call_operand.vmem [shape: f32[2,1,128], index: 3, kind: input, shape index: {}]
  %s4 = inlined_call_operand.vmem [shape: f32[1,128], index: 4, kind: input, shape index: {}]
  %s5 = inlined_call_operand.vmem [shape: f32[1,128], index: 5, kind: input, shape index: {}]
  %s6 = inlined_call_operand.vmem [shape: bf16[2,16,128], index: 6, kind: output, shape index: {}]
  %s7 = sld [smem:[#allocation0]]
  $region57: #{transformer_net_forward.13} parent=0
    _
  %s9 = ssub.s32 1, %s7
  %s10 = scalar_select 0, %s9, %s7
  loop: start=0, step=1, limit=4
  $region2: #{transformer_net_forward.13} parent=0 // loop_pre_header
    _
  $region3: #{transformer_net_forward.13} parent=0 // loop_header
    %s12 = sphi 0, %s16
    %p13 = scmp.ge.s32.totalorder %s12, 4
    %s22 = sphi 0, %s24
    %s25 = sphi 0, %s22
    %s26 = sphi 0, %s25
    %s42 = sphi 0, %s26
    %s48 = sphi 0, %s50
    %s51 = sphi 0, %s48
    %s52 = sphi 0, %s51
    %s68 = sphi 0, %s52
    %s72 = sphi 0, %s72
    %s74 = sphi 0, %s72
    %s75 = sphi 0, %s74
    %s89 = sphi 0, %s75
    %s95 = sphi 0, %s97
    %s98 = sphi 0, %s95
    %s99 = sphi 0, %s98
    %s115 = sphi 0, %s99
    %s119 = sphi 0, %s119
    %s121 = sphi 0, %s119
    %s122 = sphi 0, %s121
    %s136 = sphi 0, %s122
    %s140 = sphi 0, %s140
    %s142 = sphi 0, %s140
    %s143 = sphi 0, %s142
    %s157 = sphi 0, %s143
    %s163 = sphi 0, %s165
    %s166 = sphi 0, %s163
    %s167 = sphi 0, %s166
    %s183 = sphi 0, %s167
  $region4: #{transformer_net_forward.13} parent=0 // loop_header_branch
    %15 = sbr.rel (%p13) target = $region8
  $region5: #{transformer_net_forward.13} parent=0 // loop_body
    %s17 = ssub.s32 %s12, 1
    %s18 = ssub.s32 %s12, 2
    %s19 = sadd.s32 %s12, 1
    %s20 = ssub.s32 %s12, %s19
    %p21 = scmp.eq.s32.totalorder %s20, 0
    %s23 = sadd.s32 %s22, 1
    %s24 = scalar_select %p21, %s22, %s23
    %p27 = pneg %p21
    %p28 = scmp.eq.s32.totalorder %s12, 1
    %p29 = por %p27, %p28
    %p30 = scmp.ne.s32.totalorder %s22, %s25
    %p31 = scmp.eq.s32.totalorder %s12, 0
    %p32 = por %p30, %p31
    %p33 = scmp.ne.s32.totalorder %s22, %s25
    %p34 = scmp.eq.s32.totalorder %s17, 1
    %p35 = por %p33, %p34
    %p36 = scmp.ne.s32.totalorder %s25, %s26
    %p37 = scmp.eq.s32.totalorder %s17, 0
    %p38 = por %p36, %p37
    %p39 = scmp.ne.s32.totalorder %s25, %s26
    %p40 = scmp.eq.s32.totalorder %s18, 1
    %p41 = por %p39, %p40
    %p43 = scmp.ne.s32.totalorder %s26, %s42
    %p44 = scmp.eq.s32.totalorder %s18, 0
    %p45 = por %p43, %p44
    %s46 = ssub.s32 %s12, %s19
    %p47 = scmp.eq.s32.totalorder %s46, 0
    %s49 = sadd.s32 %s48, 1
    %s50 = scalar_select %p47, %s48, %s49
    %p53 = pneg %p47
    %p54 = scmp.eq.s32.totalorder %s12, 1
    %p55 = por %p53, %p54
    %p56 = scmp.ne.s32.totalorder %s48, %s51
    %p57 = scmp.eq.s32.totalorder %s12, 0
    %p58 = por %p56, %p57
    %p59 = scmp.ne.s32.totalorder %s48, %s51
    %p60 = scmp.eq.s32.totalorder %s17, 1
    %p61 = por %p59, %p60
    %p62 = scmp.ne.s32.totalorder %s51, %s52
    %p63 = scmp.eq.s32.totalorder %s17, 0
    %p64 = por %p62, %p63
    %p65 = scmp.ne.s32.totalorder %s51, %s52
    %p66 = scmp.eq.s32.totalorder %s18, 1
    %p67 = por %p65, %p66
    %p69 = scmp.ne.s32.totalorder %s52, %s68
    %p70 = scmp.eq.s32.totalorder %s18, 0
    %p71 = por %p69, %p70
    %s73 = sadd.s32 %s72, 1
    %p76 = scmp.eq.s32.totalorder %s12, 1
    %p77 = scmp.ne.s32.totalorder %s72, %s74
    %p78 = scmp.eq.s32.totalorder %s12, 0
    %p79 = por %p77, %p78
    %p80 = scmp.ne.s32.totalorder %s72, %s74
    %p81 = scmp.eq.s32.totalorder %s17, 1
    %p82 = por %p80, %p81
    %p83 = scmp.ne.s32.totalorder %s74, %s75
    %p84 = scmp.eq.s32.totalorder %s17, 0
    %p85 = por %p83, %p84
    %p86 = scmp.ne.s32.totalorder %s74, %s75
    %p87 = scmp.eq.s32.totalorder %s18, 1
    %p88 = por %p86, %p87
    %p90 = scmp.ne.s32.totalorder %s75, %s89
    %p91 = scmp.eq.s32.totalorder %s18, 0
    %p92 = por %p90, %p91
    %s93 = ssub.s32 %s12, %s19
    %p94 = scmp.eq.s32.totalorder %s93, 0
    %s96 = sadd.s32 %s95, 1
    %s97 = scalar_select %p94, %s95, %s96
    %p100 = pneg %p94
    %p101 = scmp.eq.s32.totalorder %s12, 1
    %p102 = por %p100, %p101
    %p103 = scmp.ne.s32.totalorder %s95, %s98
    %p104 = scmp.eq.s32.totalorder %s12, 0
    %p105 = por %p103, %p104
    %p106 = scmp.ne.s32.totalorder %s95, %s98
    %p107 = scmp.eq.s32.totalorder %s17, 1
    %p108 = por %p106, %p107
    %p109 = scmp.ne.s32.totalorder %s98, %s99
    %p110 = scmp.eq.s32.totalorder %s17, 0
    %p111 = por %p109, %p110
    %p112 = scmp.ne.s32.totalorder %s98, %s99
    %p113 = scmp.eq.s32.totalorder %s18, 1
    %p114 = por %p112, %p113
    %p116 = scmp.ne.s32.totalorder %s99, %s115
    %p117 = scmp.eq.s32.totalorder %s18, 0
    %p118 = por %p116, %p117
    %s120 = sadd.s32 %s119, 1
    %p123 = scmp.eq.s32.totalorder %s12, 1
    %p124 = scmp.ne.s32.totalorder %s119, %s121
    %p125 = scmp.eq.s32.totalorder %s12, 0
    %p126 = por %p124, %p125
    %p127 = scmp.ne.s32.totalorder %s119, %s121
    %p128 = scmp.eq.s32.totalorder %s17, 1
    %p129 = por %p127, %p128
    %p130 = scmp.ne.s32.totalorder %s121, %s122
    %p131 = scmp.eq.s32.totalorder %s17, 0
    %p132 = por %p130, %p131
    %p133 = scmp.ne.s32.totalorder %s121, %s122
    %p134 = scmp.eq.s32.totalorder %s18, 1
    %p135 = por %p133, %p134
    %p137 = scmp.ne.s32.totalorder %s122, %s136
    %p138 = scmp.eq.s32.totalorder %s18, 0
    %p139 = por %p137, %p138
    %s141 = sadd.s32 %s140, 1
    %p144 = scmp.eq.s32.totalorder %s12, 1
    %p145 = scmp.ne.s32.totalorder %s140, %s142
    %p146 = scmp.eq.s32.totalorder %s12, 0
    %p147 = por %p145, %p146
    %p148 = scmp.ne.s32.totalorder %s140, %s142
    %p149 = scmp.eq.s32.totalorder %s17, 1
    %p150 = por %p148, %p149
    %p151 = scmp.ne.s32.totalorder %s142, %s143
    %p152 = scmp.eq.s32.totalorder %s17, 0
    %p153 = por %p151, %p152
    %p154 = scmp.ne.s32.totalorder %s142, %s143
    %p155 = scmp.eq.s32.totalorder %s18, 1
    %p156 = por %p154, %p155
    %p158 = scmp.ne.s32.totalorder %s143, %s157
    %p159 = scmp.eq.s32.totalorder %s18, 0
    %p160 = por %p158, %p159
    %s161 = ssub.s32 %s12, %s19
    %p162 = scmp.eq.s32.totalorder %s161, 0
    %s164 = sadd.s32 %s163, 1
    %s165 = scalar_select %p162, %s163, %s164
    %p168 = pneg %p162
    %p169 = scmp.eq.s32.totalorder %s12, 1
    %p170 = por %p168, %p169
    %p171 = scmp.ne.s32.totalorder %s163, %s166
    %p172 = scmp.eq.s32.totalorder %s12, 0
    %p173 = por %p171, %p172
    %p174 = scmp.ne.s32.totalorder %s163, %s166
    %p175 = scmp.eq.s32.totalorder %s17, 1
    %p176 = por %p174, %p175
    %p177 = scmp.ne.s32.totalorder %s166, %s167
    %p178 = scmp.eq.s32.totalorder %s17, 0
    %p179 = por %p177, %p178
    %p180 = scmp.ne.s32.totalorder %s166, %s167
    %p181 = scmp.eq.s32.totalorder %s18, 1
    %p182 = por %p180, %p181
    %p184 = scmp.ne.s32.totalorder %s167, %s183
    %p185 = scmp.eq.s32.totalorder %s18, 0
    %p186 = por %p184, %p185
    %p187 = scmp.le.s32.totalorder 1, %s12
    %p188 = scmp.lt.s32.totalorder %s12, 3
    %p189 = pnand %p187, %p188
    %p190 = pneg %p189
    // Predicated region
    $region9: #{transformer_net_forward.13} parent=5 // pred_check
      _
    $region10: #{transformer_net_forward.13} parent=5 // pred_check_branch
      %192 = sbr.rel (%p189) target = $region12
    $region11: #{transformer_net_forward.13} parent=5 // pred_region
      %s193 = ssub.s32 %s12, 1
      // Predicated region
      $region13: #{transformer_net_forward.13} parent=11 // pred_check
        %p194 = pneg %p85
      $region14: #{transformer_net_forward.13} parent=11 // pred_check_branch
        %196 = sbr.rel (%p194) target = $region16
      $region15: #{transformer_net_forward.13} parent=11 // pred_region
        _
      $region16: #{transformer_net_forward.13} parent=11 // pred_fallthru
        _
      // Predicated region
      $region17: #{transformer_net_forward.13} parent=11 // pred_check
        %p197 = pneg %p132
      $region18: #{transformer_net_forward.13} parent=11 // pred_check_branch
        %199 = sbr.rel (%p197) target = $region20
      $region19: #{transformer_net_forward.13} parent=11 // pred_region
        _
      $region20: #{transformer_net_forward.13} parent=11 // pred_fallthru
        _
      // Predicated region
      $region21: #{transformer_net_forward.13} parent=11 // pred_check
        %p200 = pneg %p153
      $region22: #{transformer_net_forward.13} parent=11 // pred_check_branch
        %202 = sbr.rel (%p200) target = $region24
      $region23: #{transformer_net_forward.13} parent=11 // pred_region
        _
      $region24: #{transformer_net_forward.13} parent=11 // pred_fallthru
        _
    $region12: #{transformer_net_forward.13} parent=5 // pred_fallthru
      _
    %p203 = scmp.lt.s32.totalorder %s12, 2
    // Predicated region
    $region25: #{transformer_net_forward.13} parent=5 // pred_check
      %p204 = pneg %p203
    $region26: #{transformer_net_forward.13} parent=5 // pred_check_branch
      %206 = sbr.rel (%p204) target = $region28
    $region27: #{transformer_net_forward.13} parent=5 // pred_region
      // Predicated region
      $region29: #{transformer_net_forward.13} parent=27 // pred_check
        %p207 = pneg %p32
      $region30: #{transformer_net_forward.13} parent=27 // pred_check_branch
        %209 = sbr.rel (%p207) target = $region32
      $region31: #{transformer_net_forward.13} parent=27 // pred_region
        %p210 = scmp.lt.s32.totalorder %s12, 1
        %s211 = scalar_select %p210, %s12, 1
        %s212 = smul.addr %s211, 8
        %s213 = scalar_lea.vmem %s0, %s212
      $region32: #{transformer_net_forward.13} parent=27 // pred_fallthru
        _
      // Predicated region
      $region33: #{transformer_net_forward.13} parent=27 // pred_check
        %p214 = pneg %p58
      $region34: #{transformer_net_forward.13} parent=27 // pred_check_branch
        %216 = sbr.rel (%p214) target = $region36
      $region35: #{transformer_net_forward.13} parent=27 // pred_region
        %p217 = scmp.lt.s32.totalorder %s12, 1
        %s218 = scalar_select %p217, %s12, 1
        %s219 = smul.addr %s218, 8
        %s220 = scalar_lea.vmem %s1, %s219
      $region36: #{transformer_net_forward.13} parent=27 // pred_fallthru
        _
      // Predicated region
      $region37: #{transformer_net_forward.13} parent=27 // pred_check
        %p221 = pneg %p105
      $region38: #{transformer_net_forward.13} parent=27 // pred_check_branch
        %223 = sbr.rel (%p221) target = $region40
      $region39: #{transformer_net_forward.13} parent=27 // pred_region
        %p224 = scmp.lt.s32.totalorder %s12, 1
        %s225 = scalar_select %p224, %s12, 1
        %s226 = scalar_lea.vmem %s3, %s225
      $region40: #{transformer_net_forward.13} parent=27 // pred_fallthru
        _
    $region28: #{transformer_net_forward.13} parent=5 // pred_fallthru
      _
    %p227 = scmp.le.s32.totalorder 1, %s12
    %p228 = scmp.lt.s32.totalorder %s12, 3
    %p229 = pnand %p227, %p228
    %p230 = pneg %p229
    // Predicated region
    $region41: #{transformer_net_forward.13} parent=5 // pred_check
      _
    $region42: #{transformer_net_forward.13} parent=5 // pred_check_branch
      %232 = sbr.rel (%p229) target = $region44
    $region43: #{transformer_net_forward.13} parent=5 // pred_region
      %s233 = ssub.s32 %s12, 1
      %p234 = scmp.lt.s32.totalorder %s17, 1
      %s235 = scalar_select %p234, %s17, 1
      %s236 = smul.addr %s235, 8
      %s237 = scalar_lea.vmem %s0, %s236
      %p238 = pneg %p38
      %p239 = pneg %p35
      %p240 = scmp.lt.s32.totalorder %s17, 1
      %s241 = scalar_select %p240, %s17, 1
      %s242 = smul.addr %s241, 8
      %s243 = scalar_lea.vmem %s1, %s242
      %p244 = pneg %p64
      %p245 = pneg %p61
      %p246 = pneg %p85
      %p247 = pneg %p82
      %p248 = scmp.lt.s32.totalorder %s17, 1
      %s249 = scalar_select %p248, %s17, 1
      %s250 = scalar_lea.vmem %s3, %s249
      %p251 = pneg %p111
      %p252 = pneg %p108
      %p253 = pneg %p132
      %p254 = pneg %p129
      %p255 = pneg %p153
      %p256 = pneg %p150
      %p257 = pneg %p179
      %p258 = pneg %p176
      %p259 = scmp.lt.s32.totalorder %s17, 1
      %s260 = scalar_select %p259, %s17, 1
      %s261 = smul.addr %s260, 2
      %s262 = smul.addr %s261, 4
      %s263 = scalar_lea.vmem %s6, %s262
      %p264 = scmp.lt.s32.totalorder %s17, 1
      %s265 = scalar_select %p264, %s17, 1
      %s266 = smul.addr %s265, 8
      %s267 = scalar_lea.vmem %s0, %s266
      %p268 = scmp.lt.s32.totalorder %s17, 1
      %s269 = scalar_select %p268, %s17, 1
      %s270 = smul.addr %s269, 8
      %s271 = scalar_lea.vmem %s1, %s270
      %p272 = scmp.lt.s32.totalorder %s17, 1
      %s273 = scalar_select %p272, %s17, 1
      %s274 = scalar_lea.vmem %s3, %s273
      %p275 = scmp.lt.s32.totalorder %s17, 1
      %s276 = scalar_select %p275, %s17, 1
      %s277 = smul.addr %s276, 2
      %s278 = smul.addr %s277, 4
      %s279 = scalar_lea.vmem %s6, %s278
      %v280 = vld [vmem:[%s274] sm:$0x1]
      %v281 = vld [vmem:[%s4] sm:$0x1]
      %v282 = vld [vmem:[%s5] sm:$0x1]
      %v283 = vld [vmem:[%s2] sm:$0xff]
      %v284 = vld [vmem:[%s2 + $0x8] sm:$0xff]
      %v285 = vld [vmem:[%s267] sm:$0xff]
      %v286 = vadd.f32 %v285, %v283
      %v288 = vlaneseq
      %v289 = vshrl.u32 %v288, 7
      %v290 = vsub.s32 0, %v289
      %v291 = vrot.slane %v280, %v290
      %v293 = vadd.f32 %v286, %v291
      %294 = vadd.xlane.f32.xlu0 %v293
      %v295 = vpop.xlane.xlu0 %294
      %v296 = vrcp.pop 128.0
      %v297 = vmul.f32 %v295, %v296
      %v298 = vsub.f32 %v293, %v297
      %v299 = vmul.f32 %v298, %v298
      %300 = vadd.xlane.f32.xlu0 %v299
      %v301 = vpop.xlane.xlu0 %300
      %v302 = vmul.f32 %v301, %v296
      %v303 = vadd.f32 %v302, 1e-12
      %v304 = vrsqrt.pop %v303
      %v305 = vmul.f32 %v298, %v304
      %v307 = vlaneseq
      %v308 = vshrl.u32 %v307, 7
      %v309 = vsub.s32 0, %v308
      %v310 = vrot.slane %v281, %v309
      %v312 = vmul.f32 %v305, %v310
      %v314 = vlaneseq
      %v315 = vshrl.u32 %v314, 7
      %v316 = vsub.s32 0, %v315
      %v317 = vrot.slane %v282, %v316
      %v319 = vadd.f32 %v312, %v317
      %v320 = vpack.c.bf16 %v319, %v319
      %321 = vst [vmem:[%s279] sm:$0xf] %v320
      %v322 = vld [vmem:[%s271] sm:$0xff]
      %v323 = vadd.f32 %v322, %v284
      %v324 = vadd.f32 %v323, %v291
      %325 = vadd.xlane.f32.xlu0 %v324
      %v326 = vpop.xlane.xlu0 %325
      %v327 = vmul.f32 %v326, %v296
      %v328 = vsub.f32 %v324, %v327
      %v329 = vmul.f32 %v328, %v328
      %330 = vadd.xlane.f32.xlu0 %v329
      %v331 = vpop.xlane.xlu0 %330
      %v332 = vmul.f32 %v331, %v296
      %v333 = vadd.f32 %v332, 1e-12
      %v334 = vrsqrt.pop %v333
      %v335 = vmul.f32 %v328, %v334
      %v336 = vmul.f32 %v335, %v310
      %v337 = vadd.f32 %v336, %v317
      %v338 = vpack.c.bf16 %v337, %v337
      %339 = vst [vmem:[%s279 + $0x4] sm:$0xf] %v338
      %p340 = scmp.lt.s32.totalorder %s17, 1
      %s341 = scalar_select %p340, %s17, 1
      %s342 = smul.addr %s341, 2
      %s343 = smul.addr %s342, 4
      %s344 = scalar_lea.vmem %s6, %s343
      // Predicated region
      $region45: #{transformer_net_forward.13} parent=43 // pred_check
        %p345 = pneg %p176
      $region46: #{transformer_net_forward.13} parent=43 // pred_check_branch
        %347 = sbr.rel (%p345) target = $region48
      $region47: #{transformer_net_forward.13} parent=43 // pred_region
        _
      $region48: #{transformer_net_forward.13} parent=43 // pred_fallthru
        _
    $region44: #{transformer_net_forward.13} parent=5 // pred_fallthru
      _
    %p348 = scmp.le.s32.totalorder 2, %s12
    // Predicated region
    $region49: #{transformer_net_forward.13} parent=5 // pred_check
      %p349 = pneg %p348
    $region50: #{transformer_net_forward.13} parent=5 // pred_check_branch
      %351 = sbr.rel (%p349) target = $region52
    $region51: #{transformer_net_forward.13} parent=5 // pred_region
      %s352 = ssub.s32 %s12, 2
      // Predicated region
      $region53: #{transformer_net_forward.13} parent=51 // pred_check
        %p353 = pneg %p182
      $region54: #{transformer_net_forward.13} parent=51 // pred_check_branch
        %355 = sbr.rel (%p353) target = $region56
      $region55: #{transformer_net_forward.13} parent=51 // pred_region
        %p356 = scmp.lt.s32.totalorder %s18, 1
        %s357 = scalar_select %p356, %s18, 1
        %s358 = smul.addr %s357, 2
        %s359 = smul.addr %s358, 4
        %s360 = scalar_lea.vmem %s6, %s359
      $region56: #{transformer_net_forward.13} parent=51 // pred_fallthru
        _
    $region52: #{transformer_net_forward.13} parent=5 // pred_fallthru
      _
  $region6: #{transformer_net_forward.13} parent=0 // loop_footer
    %s16 = sadd.s32 1, %s12
  $region7: #{transformer_net_forward.13} parent=0 // loop_footer_branch
    %11 = sbr.rel target = $region3
  $region8: #{transformer_net_forward.13} parent=0 // loop_exit
    _

// kernel: transformer_net_forward.15
$region0: #{transformer_net_forward.15}
  #allocation0 [shape = 'u32[]', space=smem, size = 0x4, offset = 0x4, fixed_abs, tag = 'smem constant byte address 0x4 - core index']
  #allocation1 [shape = 'u32[144,128]{1,0:T(1,128)}', space=vmem, size = 0x12000, scoped, tag = 'internal scratch']
  #allocation2 [shape = 'f32[16,128]{1,0:T(8,128)}', space=vmem, size = 0x2000, scoped, tag = 'scratch operand']
  %s0 = inlined_call_operand.vmem [shape: bf16[2,16,384], index: 0, kind: input, shape index: {}, may-alias: {0,1,2}]
  %s1 = inlined_call_operand.vmem [shape: bf16[2,16,384], index: 1, kind: input, shape index: {}, may-alias: {0,1,2}]
  %s2 = inlined_call_operand.vmem [shape: bf16[2,16,384], index: 2, kind: input, shape index: {}, may-alias: {0,1,2}]
  %s3 = inlined_call_operand.vmem [shape: bf16[2,16,128], index: 3, kind: output, shape index: {}]
  %s4 = sld [smem:[#allocation0]]
  $region168: #{transformer_net_forward.15} parent=0
    _
  %s6 = ssub.s32 1, %s4
  %s7 = scalar_select 0, %s6, %s4
  $region1: #{transformer_net_forward.15} parent=0
    #allocation3 [shape = 'u8[8192]{0}', space=vmem, size = 0x2000, scoped, tag = 'input window, operand 0']
    #allocation4 [shape = 'u8[8192]{0}', space=vmem, size = 0x2000, scoped, tag = 'input window, operand 1']
    #allocation5 [shape = 'u8[8192]{0}', space=vmem, size = 0x2000, scoped, tag = 'input window, operand 2']
    loop: start=0, step=1, limit=4
    $region2: #{transformer_net_forward.15} parent=1 // loop_pre_header
      _
    $region3: #{transformer_net_forward.15} parent=1 // loop_header
      %s9 = sphi 0, %s13
      %p10 = scmp.ge.s32.totalorder %s9, 4
      %s16 = sphi 0, %s28
      %s17 = sphi 0, %s24
      %s18 = sphi 0, %s16
      %s19 = sphi 0, %s17
      %s20 = sphi 0, %s18
      %s21 = sphi 0, %s19
      %s33 = sphi 0, %s35
      %s36 = sphi 0, %s33
      %s37 = sphi 0, %s36
      %s53 = sphi 0, %s37
      %s59 = sphi 0, %s61
      %s62 = sphi 0, %s59
      %s63 = sphi 0, %s62
      %s79 = sphi 0, %s63
      %s85 = sphi 0, %s87
      %s88 = sphi 0, %s85
      %s89 = sphi 0, %s88
      %s105 = sphi 0, %s89
      %s113 = sphi 0, %s115
      %s116 = sphi 0, %s113
      %s117 = sphi 0, %s116
      %s133 = sphi 0, %s117
    $region4: #{transformer_net_forward.15} parent=1 // loop_header_branch
      %12 = sbr.rel (%p10) target = $region8
    $region5: #{transformer_net_forward.15} parent=1 // loop_body
      %s14 = ssub.s32 %s9, 1
      %s15 = ssub.s32 %s9, 2
      %s22 = sadd.s32 1, %s17
      %p23 = scmp.ge.s32.totalorder %s22, 1
      %s24 = scalar_select %p23, 0, %s22
      %s25 = sadd.s32 1, %s16
      %s26 = scalar_select %p23, %s25, %s16
      %p27 = scmp.ge.s32.totalorder %s26, 2
      %s28 = scalar_select %p27, 0, %s26
      %s29 = ssub.s32 %s16, %s28
      %s30 = ssub.s32 %s17, %s24
      %s31 = sor.u32 %s29, %s30
      %p32 = scmp.eq.s32.totalorder %s31, 0
      %s34 = sadd.s32 %s33, 1
      %s35 = scalar_select %p32, %s33, %s34
      %p38 = pneg %p32
      %p39 = scmp.eq.s32.totalorder %s9, 1
      %p40 = por %p38, %p39
      %p41 = scmp.ne.s32.totalorder %s33, %s36
      %p42 = scmp.eq.s32.totalorder %s9, 0
      %p43 = por %p41, %p42
      %p44 = scmp.ne.s32.totalorder %s33, %s36
      %p45 = scmp.eq.s32.totalorder %s14, 1
      %p46 = por %p44, %p45
      %p47 = scmp.ne.s32.totalorder %s36, %s37
      %p48 = scmp.eq.s32.totalorder %s14, 0
      %p49 = por %p47, %p48
      %p50 = scmp.ne.s32.totalorder %s36, %s37
      %p51 = scmp.eq.s32.totalorder %s15, 1
      %p52 = por %p50, %p51
      %p54 = scmp.ne.s32.totalorder %s37, %s53
      %p55 = scmp.eq.s32.totalorder %s15, 0
      %p56 = por %p54, %p55
      %s57 = ssub.s32 %s16, %s28
      %p58 = scmp.eq.s32.totalorder %s57, 0
      %s60 = sadd.s32 %s59, 1
      %s61 = scalar_select %p58, %s59, %s60
      %p64 = pneg %p58
      %p65 = scmp.eq.s32.totalorder %s9, 1
      %p66 = por %p64, %p65
      %p67 = scmp.ne.s32.totalorder %s59, %s62
      %p68 = scmp.eq.s32.totalorder %s9, 0
      %p69 = por %p67, %p68
      %p70 = scmp.ne.s32.totalorder %s59, %s62
      %p71 = scmp.eq.s32.totalorder %s14, 1
      %p72 = por %p70, %p71
      %p73 = scmp.ne.s32.totalorder %s62, %s63
      %p74 = scmp.eq.s32.totalorder %s14, 0
      %p75 = por %p73, %p74
      %p76 = scmp.ne.s32.totalorder %s62, %s63
      %p77 = scmp.eq.s32.totalorder %s15, 1
      %p78 = por %p76, %p77
      %p80 = scmp.ne.s32.totalorder %s63, %s79
      %p81 = scmp.eq.s32.totalorder %s15, 0
      %p82 = por %p80, %p81
      %s83 = ssub.s32 %s16, %s28
      %p84 = scmp.eq.s32.totalorder %s83, 0
      %s86 = sadd.s32 %s85, 1
      %s87 = scalar_select %p84, %s85, %s86
      %p90 = pneg %p84
      %p91 = scmp.eq.s32.totalorder %s9, 1
      %p92 = por %p90, %p91
      %p93 = scmp.ne.s32.totalorder %s85, %s88
      %p94 = scmp.eq.s32.totalorder %s9, 0
      %p95 = por %p93, %p94
      %p96 = scmp.ne.s32.totalorder %s85, %s88
      %p97 = scmp.eq.s32.totalorder %s14, 1
      %p98 = por %p96, %p97
      %p99 = scmp.ne.s32.totalorder %s88, %s89
      %p100 = scmp.eq.s32.totalorder %s14, 0
      %p101 = por %p99, %p100
      %p102 = scmp.ne.s32.totalorder %s88, %s89
      %p103 = scmp.eq.s32.totalorder %s15, 1
      %p104 = por %p102, %p103
      %p106 = scmp.ne.s32.totalorder %s89, %s105
      %p107 = scmp.eq.s32.totalorder %s15, 0
      %p108 = por %p106, %p107
      %s109 = ssub.s32 %s16, %s28
      %s110 = ssub.s32 %s17, %s24
      %s111 = sor.u32 %s109, %s110
      %p112 = scmp.eq.s32.totalorder %s111, 0
      %s114 = sadd.s32 %s113, 1
      %s115 = scalar_select %p112, %s113, %s114
      %p118 = pneg %p112
      %p119 = scmp.eq.s32.totalorder %s9, 1
      %p120 = por %p118, %p119
      %p121 = scmp.ne.s32.totalorder %s113, %s116
      %p122 = scmp.eq.s32.totalorder %s9, 0
      %p123 = por %p121, %p122
      %p124 = scmp.ne.s32.totalorder %s113, %s116
      %p125 = scmp.eq.s32.totalorder %s14, 1
      %p126 = por %p124, %p125
      %p127 = scmp.ne.s32.totalorder %s116, %s117
      %p128 = scmp.eq.s32.totalorder %s14, 0
      %p129 = por %p127, %p128
      %p130 = scmp.ne.s32.totalorder %s116, %s117
      %p131 = scmp.eq.s32.totalorder %s15, 1
      %p132 = por %p130, %p131
      %p134 = scmp.ne.s32.totalorder %s117, %s133
      %p135 = scmp.eq.s32.totalorder %s15, 0
      %p136 = por %p134, %p135
      %p137 = scmp.le.s32.totalorder 1, %s9
      %p138 = scmp.lt.s32.totalorder %s9, 3
      %p139 = pnand %p137, %p138
      %p140 = pneg %p139
      // Predicated region
      $region9: #{transformer_net_forward.15} parent=5 // pred_check
        _
      $region10: #{transformer_net_forward.15} parent=5 // pred_check_branch
        %142 = sbr.rel (%p139) target = $region12
      $region11: #{transformer_net_forward.15} parent=5 // pred_region
        %s143 = ssub.s32 %s9, 1
      $region12: #{transformer_net_forward.15} parent=5 // pred_fallthru
        _
      %p144 = scmp.lt.s32.totalorder %s9, 2
      // Predicated region
      $region13: #{transformer_net_forward.15} parent=5 // pred_check
        %p145 = pneg %p144
      $region14: #{transformer_net_forward.15} parent=5 // pred_check_branch
        %147 = sbr.rel (%p145) target = $region16
      $region15: #{transformer_net_forward.15} parent=5 // pred_region
        // Predicated region
        $region17: #{transformer_net_forward.15} parent=15 // pred_check
          %p148 = pneg %p43
        $region18: #{transformer_net_forward.15} parent=15 // pred_check_branch
          %150 = sbr.rel (%p148) target = $region20
        $region19: #{transformer_net_forward.15} parent=15 // pred_region
          %s151 = sand.u32 %s33, 1
          %s152 = sand.u32 %s33, 1
          %s153 = smul.addr %s152, 8
          %s154 = scalar_lea.vmem [#allocation3], %s153
          %s155 = smul.u32 2, %s17
          %s156 = smul.addr %s155, 3
          %s157 = smul.addr %s16, 6
          %s158 = sadd.s32 %s156, %s157
          %s159 = smul.addr %s158, 4
          %s160 = scalar_lea.vmem %s0, %s159
          // Predicated region
          $region21: #{transformer_net_forward.15} parent=19 // pred_check
            _
          $region22: #{transformer_net_forward.15} parent=19 // pred_check_branch
            %162 = sbr.rel (0) target = $region24
          $region23: #{transformer_net_forward.15} parent=19 // pred_region
            // Predicated region
            $region25: #{transformer_net_forward.15} parent=23 // pred_check
              _
            $region26: #{transformer_net_forward.15} parent=23 // pred_check_branch
              %164 = sbr.rel target = $region28
            $region27: #{transformer_net_forward.15} parent=23 // pred_region
              // Predicated region
              $region40: #{transformer_net_forward.15} parent=27 // pred_check
                _
              $region41: #{transformer_net_forward.15} parent=27 // pred_check_branch
                %181 = sbr.rel (0) target = $region43
              $region42: #{transformer_net_forward.15} parent=27 // pred_region
                loop: start=0, step=1, limit=1
                $region44: #{transformer_net_forward.15} parent=42 // loop_pre_header
                  _
                $region45: #{transformer_net_forward.15} parent=42 // loop_header
                  %s183 = sphi 0, %s187
                  %p184 = scmp.ge.s32.totalorder %s183, 1
                  %s188 = sphi %s160, %s160
                  %s189 = sphi %s154, %s154
                $region46: #{transformer_net_forward.15} parent=42 // loop_header_branch
                  %186 = sbr.rel (%p184) target = $region50
                $region47: #{transformer_net_forward.15} parent=42 // loop_body
                  _
                $region48: #{transformer_net_forward.15} parent=42 // loop_footer
                  %s187 = sadd.s32 1, %s183
                $region49: #{transformer_net_forward.15} parent=42 // loop_footer_branch
                  %182 = sbr.rel target = $region45
                $region50: #{transformer_net_forward.15} parent=42 // loop_exit
                  _
                loop: start=0, step=1, limit=1
                $region51: #{transformer_net_forward.15} parent=42 // loop_pre_header
                  _
                $region52: #{transformer_net_forward.15} parent=42 // loop_header
                  %s192 = sphi 0, %s196
                  %p193 = scmp.ge.s32.totalorder %s192, 1
                  %s197 = sphi %s160, %s160
                  %s198 = sphi %s154, %s154
                $region53: #{transformer_net_forward.15} parent=42 // loop_header_branch
                  %195 = sbr.rel (%p193) target = $region57
                $region54: #{transformer_net_forward.15} parent=42 // loop_body
                  %v199 = vld [vmem:[%s197] sm:$0xf]
                  %200 = vst [vmem:[%s198] sm:$0xf] %v199
                  %v201 = vld [vmem:[%s197 + $0xc] sm:$0xf]
                  %202 = vst [vmem:[%s198 + $0x4] sm:$0xf] %v201
                $region55: #{transformer_net_forward.15} parent=42 // loop_footer
                  %s196 = sadd.s32 1, %s192
                $region56: #{transformer_net_forward.15} parent=42 // loop_footer_branch
                  %191 = sbr.rel target = $region52
                $region57: #{transformer_net_forward.15} parent=42 // loop_exit
                  _
              $region43: #{transformer_net_forward.15} parent=27 // pred_fallthru
                _
            $region28: #{transformer_net_forward.15} parent=23 // pred_fallthru
              _
            // Predicated region
            $region29: #{transformer_net_forward.15} parent=23 // pred_check
              _
            $region30: #{transformer_net_forward.15} parent=23 // pred_check_branch
              %166 = sbr.rel (0) target = $region32
            $region31: #{transformer_net_forward.15} parent=23 // pred_region
              loop: start=0, step=1, limit=1
              $region33: #{transformer_net_forward.15} parent=31 // loop_pre_header
                _
              $region34: #{transformer_net_forward.15} parent=31 // loop_header
                %s169 = sphi 0, %s173
                %p170 = scmp.ge.s32.totalorder %s169, 1
                %s174 = sphi %s160, %s160
                %s175 = sphi %s154, %s154
              $region35: #{transformer_net_forward.15} parent=31 // loop_header_branch
                %172 = sbr.rel (%p170) target = $region39
              $region36: #{transformer_net_forward.15} parent=31 // loop_body
                %v176 = vld [vmem:[%s174] sm:$0xf]
                %177 = vst [vmem:[%s175] sm:$0xf] %v176
                %v178 = vld [vmem:[%s174 + $0xc] sm:$0xf]
                %179 = vst [vmem:[%s175 + $0x4] sm:$0xf] %v178
              $region37: #{transformer_net_forward.15} parent=31 // loop_footer
                %s173 = sadd.s32 1, %s169
              $region38: #{transformer_net_forward.15} parent=31 // loop_footer_branch
                %168 = sbr.rel target = $region34
              $region39: #{transformer_net_forward.15} parent=31 // loop_exit
                _
            $region32: #{transformer_net_forward.15} parent=23 // pred_fallthru
              _
          $region24: #{transformer_net_forward.15} parent=19 // pred_fallthru
            _
          %203 = vnop
        $region20: #{transformer_net_forward.15} parent=15 // pred_fallthru
          _
        // Predicated region
        $region58: #{transformer_net_forward.15} parent=15 // pred_check
          %p204 = pneg %p69
        $region59: #{transformer_net_forward.15} parent=15 // pred_check_branch
          %206 = sbr.rel (%p204) target = $region61
        $region60: #{transformer_net_forward.15} parent=15 // pred_region
          %s207 = sand.u32 %s59, 1
          %s208 = sand.u32 %s59, 1
          %s209 = smul.addr %s208, 8
          %s210 = scalar_lea.vmem [#allocation4], %s209
          %s211 = smul.addr %s16, 6
          %s212 = sadd.s32 1, %s211
          %s213 = smul.addr %s212, 4
          %s214 = scalar_lea.vmem %s1, %s213
          // Predicated region
          $region62: #{transformer_net_forward.15} parent=60 // pred_check
            _
          $region63: #{transformer_net_forward.15} parent=60 // pred_check_branch
            %216 = sbr.rel (0) target = $region65
          $region64: #{transformer_net_forward.15} parent=60 // pred_region
            // Predicated region
            $region66: #{transformer_net_forward.15} parent=64 // pred_check
              _
            $region67: #{transformer_net_forward.15} parent=64 // pred_check_branch
              %218 = sbr.rel target = $region69
            $region68: #{transformer_net_forward.15} parent=64 // pred_region
              // Predicated region
              $region81: #{transformer_net_forward.15} parent=68 // pred_check
                _
              $region82: #{transformer_net_forward.15} parent=68 // pred_check_branch
                %235 = sbr.rel (0) target = $region84
              $region83: #{transformer_net_forward.15} parent=68 // pred_region
                loop: start=0, step=1, limit=1
                $region85: #{transformer_net_forward.15} parent=83 // loop_pre_header
                  _
                $region86: #{transformer_net_forward.15} parent=83 // loop_header
                  %s237 = sphi 0, %s241
                  %p238 = scmp.ge.s32.totalorder %s237, 1
                  %s242 = sphi %s214, %s214
                  %s243 = sphi %s210, %s210
                $region87: #{transformer_net_forward.15} parent=83 // loop_header_branch
                  %240 = sbr.rel (%p238) target = $region91
                $region88: #{transformer_net_forward.15} parent=83 // loop_body
                  _
                $region89: #{transformer_net_forward.15} parent=83 // loop_footer
                  %s241 = sadd.s32 1, %s237
                $region90: #{transformer_net_forward.15} parent=83 // loop_footer_branch
                  %236 = sbr.rel target = $region86
                $region91: #{transformer_net_forward.15} parent=83 // loop_exit
                  _
                loop: start=0, step=1, limit=1
                $region92: #{transformer_net_forward.15} parent=83 // loop_pre_header
                  _
                $region93: #{transformer_net_forward.15} parent=83 // loop_header
                  %s246 = sphi 0, %s250
                  %p247 = scmp.ge.s32.totalorder %s246, 1
                  %s251 = sphi %s214, %s214
                  %s252 = sphi %s210, %s210
                $region94: #{transformer_net_forward.15} parent=83 // loop_header_branch
                  %249 = sbr.rel (%p247) target = $region98
                $region95: #{transformer_net_forward.15} parent=83 // loop_body
                  %v253 = vld [vmem:[%s251] sm:$0xf]
                  %254 = vst [vmem:[%s252] sm:$0xf] %v253
                  %v255 = vld [vmem:[%s251 + $0xc] sm:$0xf]
                  %256 = vst [vmem:[%s252 + $0x4] sm:$0xf] %v255
                $region96: #{transformer_net_forward.15} parent=83 // loop_footer
                  %s250 = sadd.s32 1, %s246
                $region97: #{transformer_net_forward.15} parent=83 // loop_footer_branch
                  %245 = sbr.rel target = $region93
                $region98: #{transformer_net_forward.15} parent=83 // loop_exit
                  _
              $region84: #{transformer_net_forward.15} parent=68 // pred_fallthru
                _
            $region69: #{transformer_net_forward.15} parent=64 // pred_fallthru
              _
            // Predicated region
            $region70: #{transformer_net_forward.15} parent=64 // pred_check
              _
            $region71: #{transformer_net_forward.15} parent=64 // pred_check_branch
              %220 = sbr.rel (0) target = $region73
            $region72: #{transformer_net_forward.15} parent=64 // pred_region
              loop: start=0, step=1, limit=1
              $region74: #{transformer_net_forward.15} parent=72 // loop_pre_header
                _
              $region75: #{transformer_net_forward.15} parent=72 // loop_header
                %s223 = sphi 0, %s227
                %p224 = scmp.ge.s32.totalorder %s223, 1
                %s228 = sphi %s214, %s214
                %s229 = sphi %s210, %s210
              $region76: #{transformer_net_forward.15} parent=72 // loop_header_branch
                %226 = sbr.rel (%p224) target = $region80
              $region77: #{transformer_net_forward.15} parent=72 // loop_body
                %v230 = vld [vmem:[%s228] sm:$0xf]
                %231 = vst [vmem:[%s229] sm:$0xf] %v230
                %v232 = vld [vmem:[%s228 + $0xc] sm:$0xf]
                %233 = vst [vmem:[%s229 + $0x4] sm:$0xf] %v232
              $region78: #{transformer_net_forward.15} parent=72 // loop_footer
                %s227 = sadd.s32 1, %s223
              $region79: #{transformer_net_forward.15} parent=72 // loop_footer_branch
                %222 = sbr.rel target = $region75
              $region80: #{transformer_net_forward.15} parent=72 // loop_exit
                _
            $region73: #{transformer_net_forward.15} parent=64 // pred_fallthru
              _
          $region65: #{transformer_net_forward.15} parent=60 // pred_fallthru
            _
          %257 = vnop
        $region61: #{transformer_net_forward.15} parent=15 // pred_fallthru
          _
        // Predicated region
        $region99: #{transformer_net_forward.15} parent=15 // pred_check
          %p258 = pneg %p95
        $region100: #{transformer_net_forward.15} parent=15 // pred_check_branch
          %260 = sbr.rel (%p258) target = $region102
        $region101: #{transformer_net_forward.15} parent=15 // pred_region
          %s261 = sand.u32 %s85, 1
          %s262 = sand.u32 %s85, 1
          %s263 = smul.addr %s262, 8
          %s264 = scalar_lea.vmem [#allocation5], %s263
          %s265 = smul.addr %s16, 6
          %s266 = sadd.s32 2, %s265
          %s267 = smul.addr %s266, 4
          %s268 = scalar_lea.vmem %s2, %s267
          // Predicated region
          $region103: #{transformer_net_forward.15} parent=101 // pred_check
            _
          $region104: #{transformer_net_forward.15} parent=101 // pred_check_branch
            %270 = sbr.rel (0) target = $region106
          $region105: #{transformer_net_forward.15} parent=101 // pred_region
            // Predicated region
            $region107: #{transformer_net_forward.15} parent=105 // pred_check
              _
            $region108: #{transformer_net_forward.15} parent=105 // pred_check_branch
              %272 = sbr.rel target = $region110
            $region109: #{transformer_net_forward.15} parent=105 // pred_region
              // Predicated region
              $region122: #{transformer_net_forward.15} parent=109 // pred_check
                _
              $region123: #{transformer_net_forward.15} parent=109 // pred_check_branch
                %289 = sbr.rel (0) target = $region125
              $region124: #{transformer_net_forward.15} parent=109 // pred_region
                loop: start=0, step=1, limit=1
                $region126: #{transformer_net_forward.15} parent=124 // loop_pre_header
                  _
                $region127: #{transformer_net_forward.15} parent=124 // loop_header
                  %s291 = sphi 0, %s295
                  %p292 = scmp.ge.s32.totalorder %s291, 1
                  %s296 = sphi %s268, %s268
                  %s297 = sphi %s264, %s264
                $region128: #{transformer_net_forward.15} parent=124 // loop_header_branch
                  %294 = sbr.rel (%p292) target = $region132
                $region129: #{transformer_net_forward.15} parent=124 // loop_body
                  _
                $region130: #{transformer_net_forward.15} parent=124 // loop_footer
                  %s295 = sadd.s32 1, %s291
                $region131: #{transformer_net_forward.15} parent=124 // loop_footer_branch
                  %290 = sbr.rel target = $region127
                $region132: #{transformer_net_forward.15} parent=124 // loop_exit
                  _
                loop: start=0, step=1, limit=1
                $region133: #{transformer_net_forward.15} parent=124 // loop_pre_header
                  _
                $region134: #{transformer_net_forward.15} parent=124 // loop_header
                  %s300 = sphi 0, %s304
                  %p301 = scmp.ge.s32.totalorder %s300, 1
                  %s305 = sphi %s268, %s268
                  %s306 = sphi %s264, %s264
                $region135: #{transformer_net_forward.15} parent=124 // loop_header_branch
                  %303 = sbr.rel (%p301) target = $region139
                $region136: #{transformer_net_forward.15} parent=124 // loop_body
                  %v307 = vld [vmem:[%s305] sm:$0xf]
                  %308 = vst [vmem:[%s306] sm:$0xf] %v307
                  %v309 = vld [vmem:[%s305 + $0xc] sm:$0xf]
                  %310 = vst [vmem:[%s306 + $0x4] sm:$0xf] %v309
                $region137: #{transformer_net_forward.15} parent=124 // loop_footer
                  %s304 = sadd.s32 1, %s300
                $region138: #{transformer_net_forward.15} parent=124 // loop_footer_branch
                  %299 = sbr.rel target = $region134
                $region139: #{transformer_net_forward.15} parent=124 // loop_exit
                  _
              $region125: #{transformer_net_forward.15} parent=109 // pred_fallthru
                _
            $region110: #{transformer_net_forward.15} parent=105 // pred_fallthru
              _
            // Predicated region
            $region111: #{transformer_net_forward.15} parent=105 // pred_check
              _
            $region112: #{transformer_net_forward.15} parent=105 // pred_check_branch
              %274 = sbr.rel (0) target = $region114
            $region113: #{transformer_net_forward.15} parent=105 // pred_region
              loop: start=0, step=1, limit=1
              $region115: #{transformer_net_forward.15} parent=113 // loop_pre_header
                _
              $region116: #{transformer_net_forward.15} parent=113 // loop_header
                %s277 = sphi 0, %s281
                %p278 = scmp.ge.s32.totalorder %s277, 1
                %s282 = sphi %s268, %s268
                %s283 = sphi %s264, %s264
              $region117: #{transformer_net_forward.15} parent=113 // loop_header_branch
                %280 = sbr.rel (%p278) target = $region121
              $region118: #{transformer_net_forward.15} parent=113 // loop_body
                %v284 = vld [vmem:[%s282] sm:$0xf]
                %285 = vst [vmem:[%s283] sm:$0xf] %v284
                %v286 = vld [vmem:[%s282 + $0xc] sm:$0xf]
                %287 = vst [vmem:[%s283 + $0x4] sm:$0xf] %v286
              $region119: #{transformer_net_forward.15} parent=113 // loop_footer
                %s281 = sadd.s32 1, %s277
              $region120: #{transformer_net_forward.15} parent=113 // loop_footer_branch
                %276 = sbr.rel target = $region116
              $region121: #{transformer_net_forward.15} parent=113 // loop_exit
                _
            $region114: #{transformer_net_forward.15} parent=105 // pred_fallthru
              _
          $region106: #{transformer_net_forward.15} parent=101 // pred_fallthru
            _
          %311 = vnop
        $region102: #{transformer_net_forward.15} parent=15 // pred_fallthru
          _
      $region16: #{transformer_net_forward.15} parent=5 // pred_fallthru
        _
      %p312 = scmp.le.s32.totalorder 1, %s9
      %p313 = scmp.lt.s32.totalorder %s9, 3
      %p314 = pnand %p312, %p313
      %p315 = pneg %p314
      // Predicated region
      $region140: #{transformer_net_forward.15} parent=5 // pred_check
        _
      $region141: #{transformer_net_forward.15} parent=5 // pred_check_branch
        %317 = sbr.rel (%p314) target = $region143
      $region142: #{transformer_net_forward.15} parent=5 // pred_region
        %s318 = ssub.s32 %s9, 1
        %s319 = sand.u32 %s36, 1
        %s320 = sand.u32 %s36, 1
        %s321 = smul.addr %s320, 8
        %s322 = scalar_lea.vmem [#allocation3], %s321
        // Predicated region
        $region144: #{transformer_net_forward.15} parent=142 // pred_check
          %p323 = pneg %p49
        $region145: #{transformer_net_forward.15} parent=142 // pred_check_branch
          %325 = sbr.rel (%p323) target = $region147
        $region146: #{transformer_net_forward.15} parent=142 // pred_region
          _
        $region147: #{transformer_net_forward.15} parent=142 // pred_fallthru
          _
        %s326 = sand.u32 %s62, 1
        %s327 = sand.u32 %s62, 1
        %s328 = smul.addr %s327, 8
        %s329 = scalar_lea.vmem [#allocation4], %s328
        // Predicated region
        $region148: #{transformer_net_forward.15} parent=142 // pred_check
          %p330 = pneg %p75
        $region149: #{transformer_net_forward.15} parent=142 // pred_check_branch
          %332 = sbr.rel (%p330) target = $region151
        $region150: #{transformer_net_forward.15} parent=142 // pred_region
          _
        $region151: #{transformer_net_forward.15} parent=142 // pred_fallthru
          _
        %s333 = sand.u32 %s88, 1
        %s334 = sand.u32 %s88, 1
        %s335 = smul.addr %s334, 8
        %s336 = scalar_lea.vmem [#allocation5], %s335
        // Predicated region
        $region152: #{transformer_net_forward.15} parent=142 // pred_check
          %p337 = pneg %p101
        $region153: #{transformer_net_forward.15} parent=142 // pred_check_branch
          %339 = sbr.rel (%p337) target = $region155
        $region154: #{transformer_net_forward.15} parent=142 // pred_region
          _
        $region155: #{transformer_net_forward.15} parent=142 // pred_fallthru
          _
        %s340 = sand.u32 %s36, 1
        %s341 = sand.u32 %s36, 1
        %s342 = smul.addr %s341, 8
        %s343 = scalar_lea.vmem [#allocation3], %s342
        %p344 = pneg %p49
        %p345 = pneg %p46
        %s346 = sand.u32 %s62, 1
        %s347 = sand.u32 %s62, 1
        %s348 = smul.addr %s347, 8
        %s349 = scalar_lea.vmem [#allocation4], %s348
        %p350 = pneg %p75
        %p351 = pneg %p72
        %s352 = sand.u32 %s88, 1
        %s353 = sand.u32 %s88, 1
        %s354 = smul.addr %s353, 8
        %s355 = scalar_lea.vmem [#allocation5], %s354
        %p356 = pneg %p101
        %p357 = pneg %p98
        %p358 = pneg %p129
        %p359 = pneg %p126
        %s360 = smul.u32 2, %s19
        %p361 = scmp.lt.s32.totalorder %s18, 1
        %s362 = scalar_select %p361, %s18, 1
        %p363 = scmp.lt.s32.totalorder %s360, 1
        %s364 = scalar_select %p363, %s360, 1
        %s365 = smul.addr %s362, 2
        %s366 = sadd.s32 %s364, %s365
        %s367 = smul.addr %s366, 4
        %s368 = scalar_lea.vmem %s3, %s367
        %s369 = smul.u32 2, %s19
        %s370 = smul.u32 2, %s19
        %p371 = scmp.lt.s32.totalorder %s18, 1
        %s372 = scalar_select %p371, %s18, 1
        %p373 = scmp.lt.s32.totalorder %s370, 1
        %s374 = scalar_select %p373, %s370, 1
        %s375 = smul.addr %s372, 2
        %s376 = sadd.s32 %s374, %s375
        %s377 = smul.addr %s376, 4
        %s378 = scalar_lea.vmem %s3, %s377
        %s379 = smul.u32 2, %s19
        %v381 = vld [vmem:[%s322] sm:$0xf]
        %v382 = vld [vmem:[%s322 + $0x4] sm:$0xf]
        %v383 = vld [vmem:[%s329] sm:$0xf]
        %v384 = vld [vmem:[%s329 + $0x4] sm:$0xf]
        %v385 = vld [vmem:[%s336] sm:$0xf]
        %v386 = vld [vmem:[%s336 + $0x4] sm:$0xf]
        %v387 = vunpack.c.l.bf16 %v381
        %v388 = vunpack.c.l.bf16 %v382
        %v389 = vmul.f32 %v387, 0.125
        %v390 = vmul.f32 %v388, 0.125
        %v391 = vpack.c.bf16 %v390, %v389
        %v394 = vunpack.c.l.b16 %v383
        %v395 = vunpack.c.l.b16 %v384
        %v396 = vpack.c.b16 %v395, %v394
        %vm397 = vcmask 523264
        %v399 = vsel %vm397, %v391, 0
        %v402 = vsel %vm397, %v396, 0
        %404 = vmatprep.subr.bf16.mxu0 0
        %405 = vmatpush1.bf16.xpose.msra.mxu0 %v402
        %406 = vmatprep.subr.bf16.mxu0 0
        %407 = vmatpush1.bf16.xpose.msra.mxu0 0
        %408 = vmatprep.subr.bf16.mxu0 0
        %409 = vmatpush1.bf16.xpose.msra.mxu0 0
        %410 = vmatprep.subr.bf16.mxu0 0
        %411 = vmatpush1.bf16.xpose.msra.mxu0 0
        %412 = vmatprep.subr.bf16.mxu0 0
        %413 = vmatpush1.bf16.xpose.msra.mxu0 0
        %414 = vmatprep.subr.bf16.mxu0 0
        %415 = vmatpush1.bf16.xpose.msra.mxu0 0
        %416 = vmatprep.subr.bf16.mxu0 0
        %417 = vmatpush1.bf16.xpose.msra.mxu0 0
        %418 = vmatprep.subr.bf16.mxu0 0
        %419 = vmatpush1.bf16.xpose.msra.mxu0 0
        %420 = vmatprep.subr.bf16.mxu0 0
        %421 = vmatpush1.bf16.xpose.msra.mxu0 0
        %422 = vmatprep.subr.bf16.mxu0 0
        %423 = vmatpush1.bf16.xpose.msra.mxu0 0
        %424 = vmatprep.subr.bf16.mxu0 0
        %425 = vmatpush1.bf16.xpose.msra.mxu0 0
        %426 = vmatprep.subr.bf16.mxu0 0
        %427 = vmatpush1.bf16.xpose.msra.mxu0 0
        %428 = vmatprep.subr.bf16.mxu0 0
        %429 = vmatpush1.bf16.xpose.msra.mxu0 0
        %430 = vmatprep.subr.bf16.mxu0 0
        %431 = vmatpush1.bf16.xpose.msra.mxu0 0
        %432 = vmatprep.subr.bf16.mxu0 0
        %433 = vmatpush1.bf16.xpose.msra.mxu0 0
        %434 = vmatprep.subr.bf16.mxu0 0
        %435 = vmatpush1.bf16.xpose.msra.mxu0 0
        %436 = vmatprep.mubr.bf16.mxu0 0
        %437 = vmatmul.mubr.bf16.gmra.mrb[0].mxu0 %v399
        %v438 = vpop.f32.mrb[0].mxu0
        %v439 = vadd.f32 0.0, %v438
        %v440 = vpop.f32.mrb[0].mxu0
        %v441 = vpop.f32.mrb[0].mxu0
        %v442 = vadd.f32 0.0, %v441
        %v443 = vpop.f32.mrb[0].mxu0
        %444 = vdwg.mxu0
        %vm445 = vcmask 130048
        %v446 = vsel %vm445, %v439, -inf
        %447 = vmax.xlane.f32.xlu0 %v446
        %v448 = vpop.xlane.xlu0 %447
        %v449 = vsel %vm445, %v442, -inf
        %450 = vmax.xlane.f32.xlu0 %v449
        %v451 = vpop.xlane.xlu0 %450
        %v452 = vsub.f32 %v439, %v448
        %v453 = vsub.f32 %v442, %v451
        %v454 = vmul.f32 %v452, 1.442695
        %v455 = vpow.pop %v454
        %v456 = vmul.f32 %v453, 1.442695
        %v457 = vpow.pop %v456
        %v458 = vsel %vm445, %v455, 0.0
        %459 = vadd.xlane.f32.xlu0 %v458
        %v460 = vpop.xlane.xlu0 %459
        %v461 = vsel %vm445, %v457, 0.0
        %462 = vadd.xlane.f32.xlu0 %v461
        %v463 = vpop.xlane.xlu0 %462
        %v464 = vrcp.pop %v460
        %v465 = vrcp.pop %v463
        %v466 = vmul.f32 %v455, %v464
        %v467 = vmul.f32 %v457, %v465
        %v468 = vpack.c.bf16 %v467, %v466
        %v471 = vunpack.c.l.b16 %v385
        %v472 = vunpack.c.l.b16 %v386
        %v473 = vpack.c.b16 %v472, %v471
        %v476 = vsel %vm445, %v468, 0
        %478 = vmatprep.subr.bf16.mxu0 0
        %479 = vmatpush1.bf16.msra.mxu0 %v473
        %480 = vmatprep.subr.bf16.mxu0 0
        %481 = vmatpush1.bf16.msra.mxu0 0
        %482 = vmatprep.subr.bf16.mxu0 0
        %483 = vmatpush1.bf16.msra.mxu0 0
        %484 = vmatprep.subr.bf16.mxu0 0
        %485 = vmatpush1.bf16.msra.mxu0 0
        %486 = vmatprep.subr.bf16.mxu0 0
        %487 = vmatpush1.bf16.msra.mxu0 0
        %488 = vmatprep.subr.bf16.mxu0 0
        %489 = vmatpush1.bf16.msra.mxu0 0
        %490 = vmatprep.subr.bf16.mxu0 0
        %491 = vmatpush1.bf16.msra.mxu0 0
        %492 = vmatprep.subr.bf16.mxu0 0
        %493 = vmatpush1.bf16.msra.mxu0 0
        %494 = vmatprep.subr.bf16.mxu0 0
        %495 = vmatpush1.bf16.msra.mxu0 0
        %496 = vmatprep.subr.bf16.mxu0 0
        %497 = vmatpush1.bf16.msra.mxu0 0
        %498 = vmatprep.subr.bf16.mxu0 0
        %499 = vmatpush1.bf16.msra.mxu0 0
        %500 = vmatprep.subr.bf16.mxu0 0
        %501 = vmatpush1.bf16.msra.mxu0 0
        %502 = vmatprep.subr.bf16.mxu0 0
        %503 = vmatpush1.bf16.msra.mxu0 0
        %504 = vmatprep.subr.bf16.mxu0 0
        %505 = vmatpush1.bf16.msra.mxu0 0
        %506 = vmatprep.subr.bf16.mxu0 0
        %507 = vmatpush1.bf16.msra.mxu0 0
        %508 = vmatprep.subr.bf16.mxu0 0
        %509 = vmatpush1.bf16.msra.mxu0 0
        %510 = vmatprep.mubr.bf16.mxu0 0
        %511 = vmatmul.mubr.bf16.gmra.mrb[0].mxu0 %v476
        %v512 = vpop.f32.mrb[0].mxu0
        %v513 = vadd.f32 0.0, %v512
        %v514 = vpop.f32.mrb[0].mxu0
        %v515 = vpop.f32.mrb[0].mxu0
        %v516 = vadd.f32 0.0, %v515
        %v517 = vpop.f32.mrb[0].mxu0
        %518 = vdwg.mxu0
        %519 = vst.msk [vmem:[#allocation2] sm:$0xff] %vm397, %v513
        %520 = vst.msk [vmem:[#allocation2 + $0x8] sm:$0xff] %vm397, %v516
        %522 = vrot.lane.b32.xlu0 %v391, 64
        %v523 = vpop.permute.xlu0 %522
        %524 = vrot.lane.b32.xlu0 %v396, 64
        %v525 = vpop.permute.xlu0 %524
        %v527 = vsel %vm397, %v523, 0
        %v530 = vsel %vm397, %v525, 0
        %532 = vmatprep.subr.bf16.mxu0 0
        %533 = vmatpush1.bf16.xpose.msra.mxu0 %v530
        %534 = vmatprep.subr.bf16.mxu0 0
        %535 = vmatpush1.bf16.xpose.msra.mxu0 0
        %536 = vmatprep.subr.bf16.mxu0 0
        %537 = vmatpush1.bf16.xpose.msra.mxu0 0
        %538 = vmatprep.subr.bf16.mxu0 0
        %539 = vmatpush1.bf16.xpose.msra.mxu0 0
        %540 = vmatprep.subr.bf16.mxu0 0
        %541 = vmatpush1.bf16.xpose.msra.mxu0 0
        %542 = vmatprep.subr.bf16.mxu0 0
        %543 = vmatpush1.bf16.xpose.msra.mxu0 0
        %544 = vmatprep.subr.bf16.mxu0 0
        %545 = vmatpush1.bf16.xpose.msra.mxu0 0
        %546 = vmatprep.subr.bf16.mxu0 0
        %547 = vmatpush1.bf16.xpose.msra.mxu0 0
        %548 = vmatprep.subr.bf16.mxu0 0
        %549 = vmatpush1.bf16.xpose.msra.mxu0 0
        %550 = vmatprep.subr.bf16.mxu0 0
        %551 = vmatpush1.bf16.xpose.msra.mxu0 0
        %552 = vmatprep.subr.bf16.mxu0 0
        %553 = vmatpush1.bf16.xpose.msra.mxu0 0
        %554 = vmatprep.subr.bf16.mxu0 0
        %555 = vmatpush1.bf16.xpose.msra.mxu0 0
        %556 = vmatprep.subr.bf16.mxu0 0
        %557 = vmatpush1.bf16.xpose.msra.mxu0 0
        %558 = vmatprep.subr.bf16.mxu0 0
        %559 = vmatpush1.bf16.xpose.msra.mxu0 0
        %560 = vmatprep.subr.bf16.mxu0 0
        %561 = vmatpush1.bf16.xpose.msra.mxu0 0
        %562 = vmatprep.subr.bf16.mxu0 0
        %563 = vmatpush1.bf16.xpose.msra.mxu0 0
        %564 = vmatprep.mubr.bf16.mxu0 0
        %565 = vmatmul.mubr.bf16.gmra.mrb[0].mxu0 %v527
        %v566 = vpop.f32.mrb[0].mxu0
        %v567 = vadd.f32 0.0, %v566
        %v568 = vpop.f32.mrb[0].mxu0
        %v569 = vpop.f32.mrb[0].mxu0
        %v570 = vadd.f32 0.0, %v569
        %v571 = vpop.f32.mrb[0].mxu0
        %572 = vdwg.mxu0
        %v573 = vsel %vm445, %v567, -inf
        %574 = vmax.xlane.f32.xlu0 %v573
        %v575 = vpop.xlane.xlu0 %574
        %v576 = vsel %vm445, %v570, -inf
        %577 = vmax.xlane.f32.xlu0 %v576
        %v578 = vpop.xlane.xlu0 %577
        %v579 = vsub.f32 %v567, %v575
        %v580 = vsub.f32 %v570, %v578
        %v581 = vmul.f32 %v579, 1.442695
        %v582 = vpow.pop %v581
        %v583 = vmul.f32 %v580, 1.442695
        %v584 = vpow.pop %v583
        %v585 = vsel %vm445, %v582, 0.0
        %586 = vadd.xlane.f32.xlu0 %v585
        %v587 = vpop.xlane.xlu0 %586
        %v588 = vsel %vm445, %v584, 0.0
        %589 = vadd.xlane.f32.xlu0 %v588
        %v590 = vpop.xlane.xlu0 %589
        %v591 = vrcp.pop %v587
        %v592 = vrcp.pop %v590
        %v593 = vmul.f32 %v582, %v591
        %v594 = vmul.f32 %v584, %v592
        %v595 = vpack.c.bf16 %v594, %v593
        %596 = vrot.lane.b32.xlu0 %v473, 64
        %v597 = vpop.permute.xlu0 %596
        %v600 = vsel %vm445, %v595, 0
        %602 = vmatprep.subr.bf16.mxu0 0
        %603 = vmatpush1.bf16.msra.mxu0 %v597
        %604 = vmatprep.subr.bf16.mxu0 0
        %605 = vmatpush1.bf16.msra.mxu0 0
        %606 = vmatprep.subr.bf16.mxu0 0
        %607 = vmatpush1.bf16.msra.mxu0 0
        %608 = vmatprep.subr.bf16.mxu0 0
        %609 = vmatpush1.bf16.msra.mxu0 0
        %610 = vmatprep.subr.bf16.mxu0 0
        %611 = vmatpush1.bf16.msra.mxu0 0
        %612 = vmatprep.subr.bf16.mxu0 0
        %613 = vmatpush1.bf16.msra.mxu0 0
        %614 = vmatprep.subr.bf16.mxu0 0
        %615 = vmatpush1.bf16.msra.mxu0 0
        %616 = vmatprep.subr.bf16.mxu0 0
        %617 = vmatpush1.bf16.msra.mxu0 0
        %618 = vmatprep.subr.bf16.mxu0 0
        %619 = vmatpush1.bf16.msra.mxu0 0
        %620 = vmatprep.subr.bf16.mxu0 0
        %621 = vmatpush1.bf16.msra.mxu0 0
        %622 = vmatprep.subr.bf16.mxu0 0
        %623 = vmatpush1.bf16.msra.mxu0 0
        %624 = vmatprep.subr.bf16.mxu0 0
        %625 = vmatpush1.bf16.msra.mxu0 0
        %626 = vmatprep.subr.bf16.mxu0 0
        %627 = vmatpush1.bf16.msra.mxu0 0
        %628 = vmatprep.subr.bf16.mxu0 0
        %629 = vmatpush1.bf16.msra.mxu0 0
        %630 = vmatprep.subr.bf16.mxu0 0
        %631 = vmatpush1.bf16.msra.mxu0 0
        %632 = vmatprep.subr.bf16.mxu0 0
        %633 = vmatpush1.bf16.msra.mxu0 0
        %634 = vmatprep.mubr.bf16.mxu0 0
        %635 = vmatmul.mubr.bf16.gmra.mrb[0].mxu0 %v600
        %v636 = vpop.f32.mrb[0].mxu0
        %v637 = vadd.f32 0.0, %v636
        %v638 = vpop.f32.mrb[0].mxu0
        %v639 = vpop.f32.mrb[0].mxu0
        %v640 = vadd.f32 0.0, %v639
        %v641 = vpop.f32.mrb[0].mxu0
        %642 = vdwg.mxu0
        %645 = vrot.lane.b32.xlu0 %v637, 64
        %v646 = vpop.permute.xlu0 %645
        %647 = vrot.lane.b32.xlu0 %v640, 64
        %v648 = vpop.permute.xlu0 %647
        %vm651 = vcmask 1048064
        %652 = vst.msk [vmem:[#allocation2] sm:$0xff] %vm651, %v646
        %653 = vst.msk [vmem:[#allocation2 + $0x8] sm:$0xff] %vm651, %v648
        %v654 = vld [vmem:[#allocation2] sm:$0xff]
        %v655 = vld [vmem:[#allocation2 + $0x8] sm:$0xff]
        %v656 = vpack.c.bf16 %v655, %v654
        %v658 = vunpack.c.l.b16 %v656
        %v659 = vunpack.c.h.b16 %v656
        %v660 = vpack.c.b16 %v658, %v658
        %v661 = vpack.c.b16 %v659, %v659
        %664 = vst [vmem:[%s378] sm:$0xf] %v660
        %665 = vst [vmem:[%s378 + $0x4] sm:$0xf] %v661
        %s666 = smul.u32 2, %s19
        %p667 = scmp.lt.s32.totalorder %s18, 1
        %s668 = scalar_select %p667, %s18, 1
        %p669 = scmp.lt.s32.totalorder %s666, 1
        %s670 = scalar_select %p669, %s666, 1
        %s671 = smul.addr %s668, 2
        %s672 = sadd.s32 %s670, %s671
        %s673 = smul.addr %s672, 4
        %s674 = scalar_lea.vmem %s3, %s673
        // Predicated region
        $region156: #{transformer_net_forward.15} parent=142 // pred_check
          %p675 = pneg %p126
        $region157: #{transformer_net_forward.15} parent=142 // pred_check_branch
          %677 = sbr.rel (%p675) target = $region159
        $region158: #{transformer_net_forward.15} parent=142 // pred_region
          %s678 = smul.u32 2, %s19
        $region159: #{transformer_net_forward.15} parent=142 // pred_fallthru
          _
      $region143: #{transformer_net_forward.15} parent=5 // pred_fallthru
        _
      %p679 = scmp.le.s32.totalorder 2, %s9
      // Predicated region
      $region160: #{transformer_net_forward.15} parent=5 // pred_check
        %p680 = pneg %p679
      $region161: #{transformer_net_forward.15} parent=5 // pred_check_branch
        %682 = sbr.rel (%p680) target = $region163
      $region162: #{transformer_net_forward.15} parent=5 // pred_region
        %s683 = ssub.s32 %s9, 2
        // Predicated region
        $region164: #{transformer_net_forward.15} parent=162 // pred_check
          %p684 = pneg %p132
        $region165: #{transformer_net_forward.15} parent=162 // pred_check_branch
          %686 = sbr.rel (%p684) target = $region167
        $region166: #{transformer_net_forward.15} parent=162 // pred_region
          %s687 = smul.u32 2, %s21
          %p688 = scmp.lt.s32.totalorder %s20, 1
          %s689 = scalar_select %p688, %s20, 1
          %p690 = scmp.lt.s32.totalorder %s687, 1
          %s691 = scalar_select %p690, %s687, 1
          %s692 = smul.addr %s689, 2
          %s693 = sadd.s32 %s691, %s692
          %s694 = smul.addr %s693, 4
          %s695 = scalar_lea.vmem %s3, %s694
        $region167: #{transformer_net_forward.15} parent=162 // pred_fallthru
          _
      $region163: #{transformer_net_forward.15} parent=5 // pred_fallthru
        _
    $region6: #{transformer_net_forward.15} parent=1 // loop_footer
      %s13 = sadd.s32 1, %s9
    $region7: #{transformer_net_forward.15} parent=1 // loop_footer_branch
      %8 = sbr.rel target = $region3
    $region8: #{transformer_net_forward.15} parent=1 // loop_exit
      _

// kernel: transformer_net_forward.14
$region0: #{transformer_net_forward.14}
  #allocation0 [shape = 'u32[]', space=smem, size = 0x4, offset = 0x4, fixed_abs, tag = 'smem constant byte address 0x4 - core index']
  #allocation1 [shape = 'u32[144,128]{1,0:T(1,128)}', space=vmem, size = 0x12000, scoped, tag = 'internal scratch']
  %s0 = inlined_call_operand.vmem [shape: bf16[32,128], index: 0, kind: input, shape index: {}]
  %s1 = inlined_call_operand.vmem [shape: bf16[128,384], index: 1, kind: input, shape index: {}]
  %s2 = inlined_call_operand.vmem [shape: f32[1,384], index: 2, kind: input, shape index: {}]
  %s3 = inlined_call_operand.vmem [shape: bf16[32,384], index: 3, kind: output, shape index: {}]
  %s4 = sld [smem:[#allocation0]]
  $region22: #{transformer_net_forward.14} parent=0
    _
  %s6 = ssub.s32 1, %s4
  %s7 = scalar_select 0, %s6, %s4
  // Predicated region
  $region2: #{transformer_net_forward.14} parent=0 // pred_check
    _
  $region3: #{transformer_net_forward.14} parent=0 // pred_check_branch
    %9 = sbr.rel (0) target = $region5
  $region4: #{transformer_net_forward.14} parent=0 // pred_region
    _
  $region5: #{transformer_net_forward.14} parent=0 // pred_fallthru
    _
  // Predicated region
  $region6: #{transformer_net_forward.14} parent=0 // pred_check
    _
  $region7: #{transformer_net_forward.14} parent=0 // pred_check_branch
    %11 = sbr.rel (0) target = $region9
  $region8: #{transformer_net_forward.14} parent=0 // pred_region
    _
  $region9: #{transformer_net_forward.14} parent=0 // pred_fallthru
    _
  // Predicated region
  $region10: #{transformer_net_forward.14} parent=0 // pred_check
    _
  $region11: #{transformer_net_forward.14} parent=0 // pred_check_branch
    %13 = sbr.rel (0) target = $region13
  $region12: #{transformer_net_forward.14} parent=0 // pred_region
    _
  $region13: #{transformer_net_forward.14} parent=0 // pred_fallthru
    _
  %v15 = vld [vmem:[%s0] sm:$0xf]
  %v16 = vld [vmem:[%s0 + $0x4] sm:$0xf]
  %v17 = vld [vmem:[%s0 + $0x8] sm:$0xf]
  %v18 = vld [vmem:[%s0 + $0xc] sm:$0xf]
  %v19 = vld [vmem:[%s1] sm:$0xff]
  %v20 = vld [vmem:[%s1 + $0x8] sm:$0xf]
  %v21 = vld [vmem:[%s1 + $0xc] sm:$0xff]
  %v22 = vld [vmem:[%s1 + $0x14] sm:$0xf]
  %v23 = vld [vmem:[%s1 + $0x18] sm:$0xff]
  %v24 = vld [vmem:[%s1 + $0x20] sm:$0xf]
  %v25 = vld [vmem:[%s1 + $0x24] sm:$0xff]
  %v26 = vld [vmem:[%s1 + $0x2c] sm:$0xf]
  %v27 = vld [vmem:[%s1 + $0x30] sm:$0xff]
  %v28 = vld [vmem:[%s1 + $0x38] sm:$0xf]
  %v29 = vld [vmem:[%s1 + $0x3c] sm:$0xff]
  %v30 = vld [vmem:[%s1 + $0x44] sm:$0xf]
  %v31 = vld [vmem:[%s1 + $0x48] sm:$0xff]
  %v32 = vld [vmem:[%s1 + $0x50] sm:$0xf]
  %v33 = vld [vmem:[%s1 + $0x54] sm:$0xff]
  %v34 = vld [vmem:[%s1 + $0x5c] sm:$0xf]
  %v35 = vld [vmem:[%s1 + $0x60] sm:$0xff]
  %v36 = vld [vmem:[%s1 + $0x68] sm:$0xf]
  %v37 = vld [vmem:[%s1 + $0x6c] sm:$0xff]
  %v38 = vld [vmem:[%s1 + $0x74] sm:$0xf]
  %v39 = vld [vmem:[%s1 + $0x78] sm:$0xff]
  %v40 = vld [vmem:[%s1 + $0x80] sm:$0xf]
  %v41 = vld [vmem:[%s1 + $0x84] sm:$0xff]
  %v42 = vld [vmem:[%s1 + $0x8c] sm:$0xf]
  %v43 = vld [vmem:[%s1 + $0x90] sm:$0xff]
  %v44 = vld [vmem:[%s1 + $0x98] sm:$0xf]
  %v45 = vld [vmem:[%s1 + $0x9c] sm:$0xff]
  %v46 = vld [vmem:[%s1 + $0xa4] sm:$0xf]
  %v47 = vld [vmem:[%s1 + $0xa8] sm:$0xff]
  %v48 = vld [vmem:[%s1 + $0xb0] sm:$0xf]
  %v49 = vld [vmem:[%s1 + $0xb4] sm:$0xff]
  %v50 = vld [vmem:[%s1 + $0xbc] sm:$0xf]
  %v51 = vld [vmem:[%s2] sm:$0x7]
  %v53 = vlaneseq
  %v54 = vshrl.u32 %v53, 7
  %v55 = vsub.s32 0, %v54
  %v56 = vrot.slane %v51, %v55
  %v57 = vlaneseq
  %v58 = vshrl.u32 %v57, 7
  %v59 = vsub.s32 1, %v58
  %v60 = vrot.slane %v51, %v59
  %v61 = vlaneseq
  %v62 = vshrl.u32 %v61, 7
  %v63 = vsub.s32 2, %v62
  %v64 = vrot.slane %v51, %v63
  %v72 = vunpack.c.l.b16 %v15
  %v73 = vunpack.c.l.b16 %v16
  %v74 = vunpack.c.l.b16 %v17
  %v75 = vunpack.c.l.b16 %v18
  %v76 = vpack.c.b16 %v73, %v72
  %v77 = vpack.c.b16 %v75, %v74
  %v112 = vunpack.c.l.b16 %v19
  %v113 = vunpack.c.h.b16 %v19
  %v114 = vunpack.c.l.b16 %v20
  %v115 = vunpack.c.l.b16 %v21
  %v116 = vunpack.c.h.b16 %v21
  %v117 = vunpack.c.l.b16 %v22
  %v118 = vunpack.c.l.b16 %v23
  %v119 = vunpack.c.h.b16 %v23
  %v120 = vunpack.c.l.b16 %v24
  %v121 = vunpack.c.l.b16 %v25
  %v122 = vunpack.c.h.b16 %v25
  %v123 = vunpack.c.l.b16 %v26
  %v124 = vunpack.c.l.b16 %v27
  %v125 = vunpack.c.h.b16 %v27
  %v126 = vunpack.c.l.b16 %v28
  %v127 = vunpack.c.l.b16 %v29
  %v128 = vunpack.c.h.b16 %v29
  %v129 = vunpack.c.l.b16 %v30
  %v130 = vunpack.c.l.b16 %v31
  %v131 = vunpack.c.h.b16 %v31
  %v132 = vunpack.c.l.b16 %v32
  %v133 = vunpack.c.l.b16 %v33
  %v134 = vunpack.c.h.b16 %v33
  %v135 = vunpack.c.l.b16 %v34
  %v136 = vunpack.c.l.b16 %v35
  %v137 = vunpack.c.h.b16 %v35
  %v138 = vunpack.c.l.b16 %v36
  %v139 = vunpack.c.l.b16 %v37
  %v140 = vunpack.c.h.b16 %v37
  %v141 = vunpack.c.l.b16 %v38
  %v142 = vunpack.c.l.b16 %v39
  %v143 = vunpack.c.h.b16 %v39
  %v144 = vunpack.c.l.b16 %v40
  %v145 = vunpack.c.l.b16 %v41
  %v146 = vunpack.c.h.b16 %v41
  %v147 = vunpack.c.l.b16 %v42
  %v148 = vunpack.c.l.b16 %v43
  %v149 = vunpack.c.h.b16 %v43
  %v150 = vunpack.c.l.b16 %v44
  %v151 = vunpack.c.l.b16 %v45
  %v152 = vunpack.c.h.b16 %v45
  %v153 = vunpack.c.l.b16 %v46
  %v154 = vunpack.c.l.b16 %v47
  %v155 = vunpack.c.h.b16 %v47
  %v156 = vunpack.c.l.b16 %v48
  %v157 = vunpack.c.l.b16 %v49
  %v158 = vunpack.c.h.b16 %v49
  %v159 = vunpack.c.l.b16 %v50
  %v160 = vpack.c.b16 %v115, %v112
  %v161 = vpack.c.b16 %v116, %v113
  %v162 = vpack.c.b16 %v117, %v114
  %v163 = vpack.c.b16 %v121, %v118
  %v164 = vpack.c.b16 %v122, %v119
  %v165 = vpack.c.b16 %v123, %v120
  %v166 = vpack.c.b16 %v127, %v124
  %v167 = vpack.c.b16 %v128, %v125
  %v168 = vpack.c.b16 %v129, %v126
  %v169 = vpack.c.b16 %v133, %v130
  %v170 = vpack.c.b16 %v134, %v131
  %v171 = vpack.c.b16 %v135, %v132
  %v172 = vpack.c.b16 %v139, %v136
  %v173 = vpack.c.b16 %v140, %v137
  %v174 = vpack.c.b16 %v141, %v138
  %v175 = vpack.c.b16 %v145, %v142
  %v176 = vpack.c.b16 %v146, %v143
  %v177 = vpack.c.b16 %v147, %v144
  %v178 = vpack.c.b16 %v151, %v148
  %v179 = vpack.c.b16 %v152, %v149
  %v180 = vpack.c.b16 %v153, %v150
  %v181 = vpack.c.b16 %v157, %v154
  %v182 = vpack.c.b16 %v158, %v155
  %v183 = vpack.c.b16 %v159, %v156
  %208 = vmatprep.subr.bf16.mxu0 %v161
  %209 = vmatpush1.bf16.msra.mxu0 %v160
  %210 = vmatprep.subr.bf16.mxu0 %v164
  %211 = vmatpush1.bf16.msra.mxu0 %v163
  %212 = vmatprep.subr.bf16.mxu0 %v167
  %213 = vmatpush1.bf16.msra.mxu0 %v166
  %214 = vmatprep.subr.bf16.mxu0 %v170
  %215 = vmatpush1.bf16.msra.mxu0 %v169
  %216 = vmatprep.subr.bf16.mxu0 %v173
  %217 = vmatpush1.bf16.msra.mxu0 %v172
  %218 = vmatprep.subr.bf16.mxu0 %v176
  %219 = vmatpush1.bf16.msra.mxu0 %v175
  %220 = vmatprep.subr.bf16.mxu0 %v179
  %221 = vmatpush1.bf16.msra.mxu0 %v178
  %222 = vmatprep.subr.bf16.mxu0 %v182
  %223 = vmatpush1.bf16.msra.mxu0 %v181
  %224 = vmatprep.subr.bf16.mxu0 0
  %225 = vmatpush1.bf16.msra.mxu0 0
  %226 = vmatprep.subr.bf16.mxu0 0
  %227 = vmatpush1.bf16.msra.mxu0 0
  %228 = vmatprep.subr.bf16.mxu0 0
  %229 = vmatpush1.bf16.msra.mxu0 0
  %230 = vmatprep.subr.bf16.mxu0 0
  %231 = vmatpush1.bf16.msra.mxu0 0
  %232 = vmatprep.subr.bf16.mxu0 0
  %233 = vmatpush1.bf16.msra.mxu0 0
  %234 = vmatprep.subr.bf16.mxu0 0
  %235 = vmatpush1.bf16.msra.mxu0 0
  %236 = vmatprep.subr.bf16.mxu0 0
  %237 = vmatpush1.bf16.msra.mxu0 0
  %238 = vmatprep.subr.bf16.mxu0 0
  %239 = vmatpush1.bf16.msra.mxu0 0
  %240 = vmatprep.mubr.bf16.mxu0 0
  %241 = vmatmul.mubr.bf16.gmra.mrb[0].mxu0 %v76
  %v242 = vpop.f32.mrb[0].mxu0
  %v243 = vadd.f32 %v56, %v242
  %v244 = vpop.f32.mrb[0].mxu0
  %v245 = vadd.f32 %v60, %v244
  %v246 = vpop.f32.mrb[0].mxu0
  %v247 = vadd.f32 %v56, %v246
  %v248 = vpop.f32.mrb[0].mxu0
  %v249 = vadd.f32 %v60, %v248
  %250 = vmatprep.mubr.bf16.mxu0 0
  %251 = vmatmul.mubr.bf16.gmra.mrb[0].mxu0 %v77
  %v252 = vpop.f32.mrb[0].mxu0
  %v253 = vadd.f32 %v56, %v252
  %v254 = vpop.f32.mrb[0].mxu0
  %v255 = vadd.f32 %v60, %v254
  %v256 = vpop.f32.mrb[0].mxu0
  %v257 = vadd.f32 %v56, %v256
  %v258 = vpop.f32.mrb[0].mxu0
  %v259 = vadd.f32 %v60, %v258
  %260 = vdwg.mxu0
  %261 = vmatprep.subr.bf16.mxu0 0
  %262 = vmatpush1.bf16.msra.mxu0 %v162
  %263 = vmatprep.subr.bf16.mxu0 0
  %264 = vmatpush1.bf16.msra.mxu0 %v165
  %265 = vmatprep.subr.bf16.mxu0 0
  %266 = vmatpush1.bf16.msra.mxu0 %v168
  %267 = vmatprep.subr.bf16.mxu0 0
  %268 = vmatpush1.bf16.msra.mxu0 %v171
  %269 = vmatprep.subr.bf16.mxu0 0
  %270 = vmatpush1.bf16.msra.mxu0 %v174
  %271 = vmatprep.subr.bf16.mxu0 0
  %272 = vmatpush1.bf16.msra.mxu0 %v177
  %273 = vmatprep.subr.bf16.mxu0 0
  %274 = vmatpush1.bf16.msra.mxu0 %v180
  %275 = vmatprep.subr.bf16.mxu0 0
  %276 = vmatpush1.bf16.msra.mxu0 %v183
  %277 = vmatprep.subr.bf16.mxu0 0
  %278 = vmatpush1.bf16.msra.mxu0 0
  %279 = vmatprep.subr.bf16.mxu0 0
  %280 = vmatpush1.bf16.msra.mxu0 0
  %281 = vmatprep.subr.bf16.mxu0 0
  %282 = vmatpush1.bf16.msra.mxu0 0
  %283 = vmatprep.subr.bf16.mxu0 0
  %284 = vmatpush1.bf16.msra.mxu0 0
  %285 = vmatprep.subr.bf16.mxu0 0
  %286 = vmatpush1.bf16.msra.mxu0 0
  %287 = vmatprep.subr.bf16.mxu0 0
  %288 = vmatpush1.bf16.msra.mxu0 0
  %289 = vmatprep.subr.bf16.mxu0 0
  %290 = vmatpush1.bf16.msra.mxu0 0
  %291 = vmatprep.subr.bf16.mxu0 0
  %292 = vmatpush1.bf16.msra.mxu0 0
  %293 = vmatprep.mubr.bf16.mxu0 0
  %294 = vmatmul.mubr.bf16.gmra.mrb[0].mxu0 %v76
  %v295 = vpop.f32.mrb[0].mxu0
  %v296 = vadd.f32 %v64, %v295
  %v297 = vpop.f32.mrb[0].mxu0
  %v298 = vpop.f32.mrb[0].mxu0
  %v299 = vadd.f32 %v64, %v298
  %v300 = vpop.f32.mrb[0].mxu0
  %301 = vmatprep.mubr.bf16.mxu0 0
  %302 = vmatmul.mubr.bf16.gmra.mrb[0].mxu0 %v77
  %v303 = vpop.f32.mrb[0].mxu0
  %v304 = vadd.f32 %v64, %v303
  %v305 = vpop.f32.mrb[0].mxu0
  %v306 = vpop.f32.mrb[0].mxu0
  %v307 = vadd.f32 %v64, %v306
  %v308 = vpop.f32.mrb[0].mxu0
  %309 = vdwg.mxu0
  %v310 = vpack.c.bf16 %v247, %v243
  %v311 = vpack.c.bf16 %v249, %v245
  %v312 = vpack.c.bf16 %v299, %v296
  %v313 = vpack.c.bf16 %v257, %v253
  %v314 = vpack.c.bf16 %v259, %v255
  %v315 = vpack.c.bf16 %v307, %v304
  %v322 = vunpack.c.l.b16 %v310
  %v323 = vunpack.c.l.b16 %v311
  %v324 = vunpack.c.l.b16 %v312
  %v325 = vunpack.c.h.b16 %v310
  %v326 = vunpack.c.h.b16 %v311
  %v327 = vunpack.c.h.b16 %v312
  %v328 = vunpack.c.l.b16 %v313
  %v329 = vunpack.c.l.b16 %v314
  %v330 = vunpack.c.l.b16 %v315
  %v331 = vunpack.c.h.b16 %v313
  %v332 = vunpack.c.h.b16 %v314
  %v333 = vunpack.c.h.b16 %v315
  %v334 = vpack.c.b16 %v323, %v322
  %v335 = vpack.c.b16 %v324, %v324
  %v336 = vpack.c.b16 %v326, %v325
  %v337 = vpack.c.b16 %v327, %v327
  %v338 = vpack.c.b16 %v329, %v328
  %v339 = vpack.c.b16 %v330, %v330
  %v340 = vpack.c.b16 %v332, %v331
  %v341 = vpack.c.b16 %v333, %v333
  %350 = vst [vmem:[%s3] sm:$0xff] %v334
  %351 = vst [vmem:[%s3 + $0x8] sm:$0xf] %v335
  %352 = vst [vmem:[%s3 + $0xc] sm:$0xff] %v336
  %353 = vst [vmem:[%s3 + $0x14] sm:$0xf] %v337
  %354 = vst [vmem:[%s3 + $0x18] sm:$0xff] %v338
  %355 = vst [vmem:[%s3 + $0x20] sm:$0xf] %v339
  %356 = vst [vmem:[%s3 + $0x24] sm:$0xff] %v340
  %357 = vst [vmem:[%s3 + $0x2c] sm:$0xf] %v341
  // Predicated region
  $region14: #{transformer_net_forward.14} parent=0 // pred_check
    _
  $region15: #{transformer_net_forward.14} parent=0 // pred_check_branch
    %359 = sbr.rel (0) target = $region17
  $region16: #{transformer_net_forward.14} parent=0 // pred_region
    _
  $region17: #{transformer_net_forward.14} parent=0 // pred_fallthru
    _
  // Predicated region
  $region18: #{transformer_net_forward.14} parent=0 // pred_check
    _
  $region19: #{transformer_net_forward.14} parent=0 // pred_check_branch
    %361 = sbr.rel (0) target = $region21
  $region20: #{transformer_net_forward.14} parent=0 // pred_region
    _
  $region21: #{transformer_net_forward.14} parent=0 // pred_fallthru
    _

// kernel: transformer_net_forward.17
$region0: #{transformer_net_forward.17}
  #allocation0 [shape = 'u32[]', space=smem, size = 0x4, offset = 0x4, fixed_abs, tag = 'smem constant byte address 0x4 - core index']
  #allocation1 [shape = 'u32[144,128]{1,0:T(1,128)}', space=vmem, size = 0x12000, scoped, tag = 'internal scratch']
  %s0 = inlined_call_operand.vmem [shape: bf16[32,128], index: 0, kind: input, shape index: {}]
  %s1 = inlined_call_operand.vmem [shape: bf16[128,256], index: 1, kind: input, shape index: {}]
  %s2 = inlined_call_operand.vmem [shape: f32[1,256], index: 2, kind: input, shape index: {}]
  %s3 = inlined_call_operand.vmem [shape: bf16[32,256], index: 3, kind: output, shape index: {}]
  %s4 = sld [smem:[#allocation0]]
  $region22: #{transformer_net_forward.17} parent=0
    _
  %s6 = ssub.s32 1, %s4
  %s7 = scalar_select 0, %s6, %s4
  // Predicated region
  $region2: #{transformer_net_forward.17} parent=0 // pred_check
    _
  $region3: #{transformer_net_forward.17} parent=0 // pred_check_branch
    %9 = sbr.rel (0) target = $region5
  $region4: #{transformer_net_forward.17} parent=0 // pred_region
    _
  $region5: #{transformer_net_forward.17} parent=0 // pred_fallthru
    _
  // Predicated region
  $region6: #{transformer_net_forward.17} parent=0 // pred_check
    _
  $region7: #{transformer_net_forward.17} parent=0 // pred_check_branch
    %11 = sbr.rel (0) target = $region9
  $region8: #{transformer_net_forward.17} parent=0 // pred_region
    _
  $region9: #{transformer_net_forward.17} parent=0 // pred_fallthru
    _
  // Predicated region
  $region10: #{transformer_net_forward.17} parent=0 // pred_check
    _
  $region11: #{transformer_net_forward.17} parent=0 // pred_check_branch
    %13 = sbr.rel (0) target = $region13
  $region12: #{transformer_net_forward.17} parent=0 // pred_region
    _
  $region13: #{transformer_net_forward.17} parent=0 // pred_fallthru
    _
  %v15 = vld [vmem:[%s0] sm:$0xf]
  %v16 = vld [vmem:[%s0 + $0x4] sm:$0xf]
  %v17 = vld [vmem:[%s0 + $0x8] sm:$0xf]
  %v18 = vld [vmem:[%s0 + $0xc] sm:$0xf]
  %v19 = vld [vmem:[%s1] sm:$0xff]
  %v20 = vld [vmem:[%s1 + $0x8] sm:$0xff]
  %v21 = vld [vmem:[%s1 + $0x10] sm:$0xff]
  %v22 = vld [vmem:[%s1 + $0x18] sm:$0xff]
  %v23 = vld [vmem:[%s1 + $0x20] sm:$0xff]
  %v24 = vld [vmem:[%s1 + $0x28] sm:$0xff]
  %v25 = vld [vmem:[%s1 + $0x30] sm:$0xff]
  %v26 = vld [vmem:[%s1 + $0x38] sm:$0xff]
  %v27 = vld [vmem:[%s1 + $0x40] sm:$0xff]
  %v28 = vld [vmem:[%s1 + $0x48] sm:$0xff]
  %v29 = vld [vmem:[%s1 + $0x50] sm:$0xff]
  %v30 = vld [vmem:[%s1 + $0x58] sm:$0xff]
  %v31 = vld [vmem:[%s1 + $0x60] sm:$0xff]
  %v32 = vld [vmem:[%s1 + $0x68] sm:$0xff]
  %v33 = vld [vmem:[%s1 + $0x70] sm:$0xff]
  %v34 = vld [vmem:[%s1 + $0x78] sm:$0xff]
  %v35 = vld [vmem:[%s2] sm:$0x3]
  %v37 = vlaneseq
  %v38 = vshrl.u32 %v37, 7
  %v39 = vsub.s32 0, %v38
  %v40 = vrot.slane %v35, %v39
  %v41 = vlaneseq
  %v42 = vshrl.u32 %v41, 7
  %v43 = vsub.s32 1, %v42
  %v44 = vrot.slane %v35, %v43
  %v51 = vunpack.c.l.b16 %v15
  %v52 = vunpack.c.l.b16 %v16
  %v53 = vunpack.c.l.b16 %v17
  %v54 = vunpack.c.l.b16 %v18
  %v55 = vpack.c.b16 %v52, %v51
  %v56 = vpack.c.b16 %v54, %v53
  %v75 = vunpack.c.l.b16 %v19
  %v76 = vunpack.c.h.b16 %v19
  %v77 = vunpack.c.l.b16 %v20
  %v78 = vunpack.c.h.b16 %v20
  %v79 = vunpack.c.l.b16 %v21
  %v80 = vunpack.c.h.b16 %v21
  %v81 = vunpack.c.l.b16 %v22
  %v82 = vunpack.c.h.b16 %v22
  %v83 = vunpack.c.l.b16 %v23
  %v84 = vunpack.c.h.b16 %v23
  %v85 = vunpack.c.l.b16 %v24
  %v86 = vunpack.c.h.b16 %v24
  %v87 = vunpack.c.l.b16 %v25
  %v88 = vunpack.c.h.b16 %v25
  %v89 = vunpack.c.l.b16 %v26
  %v90 = vunpack.c.h.b16 %v26
  %v91 = vunpack.c.l.b16 %v27
  %v92 = vunpack.c.h.b16 %v27
  %v93 = vunpack.c.l.b16 %v28
  %v94 = vunpack.c.h.b16 %v28
  %v95 = vunpack.c.l.b16 %v29
  %v96 = vunpack.c.h.b16 %v29
  %v97 = vunpack.c.l.b16 %v30
  %v98 = vunpack.c.h.b16 %v30
  %v99 = vunpack.c.l.b16 %v31
  %v100 = vunpack.c.h.b16 %v31
  %v101 = vunpack.c.l.b16 %v32
  %v102 = vunpack.c.h.b16 %v32
  %v103 = vunpack.c.l.b16 %v33
  %v104 = vunpack.c.h.b16 %v33
  %v105 = vunpack.c.l.b16 %v34
  %v106 = vunpack.c.h.b16 %v34
  %v107 = vpack.c.b16 %v77, %v75
  %v108 = vpack.c.b16 %v78, %v76
  %v109 = vpack.c.b16 %v81, %v79
  %v110 = vpack.c.b16 %v82, %v80
  %v111 = vpack.c.b16 %v85, %v83
  %v112 = vpack.c.b16 %v86, %v84
  %v113 = vpack.c.b16 %v89, %v87
  %v114 = vpack.c.b16 %v90, %v88
  %v115 = vpack.c.b16 %v93, %v91
  %v116 = vpack.c.b16 %v94, %v92
  %v117 = vpack.c.b16 %v97, %v95
  %v118 = vpack.c.b16 %v98, %v96
  %v119 = vpack.c.b16 %v101, %v99
  %v120 = vpack.c.b16 %v102, %v100
  %v121 = vpack.c.b16 %v105, %v103
  %v122 = vpack.c.b16 %v106, %v104
  %139 = vmatprep.subr.bf16.mxu0 %v108
  %140 = vmatpush1.bf16.msra.mxu0 %v107
  %141 = vmatprep.subr.bf16.mxu0 %v110
  %142 = vmatpush1.bf16.msra.mxu0 %v109
  %143 = vmatprep.subr.bf16.mxu0 %v112
  %144 = vmatpush1.bf16.msra.mxu0 %v111
  %145 = vmatprep.subr.bf16.mxu0 %v114
  %146 = vmatpush1.bf16.msra.mxu0 %v113
  %147 = vmatprep.subr.bf16.mxu0 %v116
  %148 = vmatpush1.bf16.msra.mxu0 %v115
  %149 = vmatprep.subr.bf16.mxu0 %v118
  %150 = vmatpush1.bf16.msra.mxu0 %v117
  %151 = vmatprep.subr.bf16.mxu0 %v120
  %152 = vmatpush1.bf16.msra.mxu0 %v119
  %153 = vmatprep.subr.bf16.mxu0 %v122
  %154 = vmatpush1.bf16.msra.mxu0 %v121
  %155 = vmatprep.subr.bf16.mxu0 0
  %156 = vmatpush1.bf16.msra.mxu0 0
  %157 = vmatprep.subr.bf16.mxu0 0
  %158 = vmatpush1.bf16.msra.mxu0 0
  %159 = vmatprep.subr.bf16.mxu0 0
  %160 = vmatpush1.bf16.msra.mxu0 0
  %161 = vmatprep.subr.bf16.mxu0 0
  %162 = vmatpush1.bf16.msra.mxu0 0
  %163 = vmatprep.subr.bf16.mxu0 0
  %164 = vmatpush1.bf16.msra.mxu0 0
  %165 = vmatprep.subr.bf16.mxu0 0
  %166 = vmatpush1.bf16.msra.mxu0 0
  %167 = vmatprep.subr.bf16.mxu0 0
  %168 = vmatpush1.bf16.msra.mxu0 0
  %169 = vmatprep.subr.bf16.mxu0 0
  %170 = vmatpush1.bf16.msra.mxu0 0
  %171 = vmatprep.mubr.bf16.mxu0 0
  %172 = vmatmul.mubr.bf16.gmra.mrb[0].mxu0 %v55
  %v173 = vpop.f32.mrb[0].mxu0
  %v174 = vadd.f32 %v40, %v173
  %v175 = vpop.f32.mrb[0].mxu0
  %v176 = vadd.f32 %v44, %v175
  %v177 = vpop.f32.mrb[0].mxu0
  %v178 = vadd.f32 %v40, %v177
  %v179 = vpop.f32.mrb[0].mxu0
  %v180 = vadd.f32 %v44, %v179
  %181 = vmatprep.mubr.bf16.mxu0 0
  %182 = vmatmul.mubr.bf16.gmra.mrb[0].mxu0 %v56
  %v183 = vpop.f32.mrb[0].mxu0
  %v184 = vadd.f32 %v40, %v183
  %v185 = vpop.f32.mrb[0].mxu0
  %v186 = vadd.f32 %v44, %v185
  %v187 = vpop.f32.mrb[0].mxu0
  %v188 = vadd.f32 %v40, %v187
  %v189 = vpop.f32.mrb[0].mxu0
  %v190 = vadd.f32 %v44, %v189
  %191 = vdwg.mxu0
  %v192 = vmul.f32 %v174, 0.5
  %v193 = vmul.f32 %v176, 0.5
  %v194 = vmul.f32 %v178, 0.5
  %v195 = vmul.f32 %v180, 0.5
  %v196 = vmul.f32 %v184, 0.5
  %v197 = vmul.f32 %v186, 0.5
  %v198 = vmul.f32 %v188, 0.5
  %v199 = vmul.f32 %v190, 0.5
  %v200 = vmul.f32 %v174, 0.70710677
  %v201 = vmul.f32 %v176, 0.70710677
  %v202 = vmul.f32 %v178, 0.70710677
  %v203 = vmul.f32 %v180, 0.70710677
  %v204 = vmul.f32 %v184, 0.70710677
  %v205 = vmul.f32 %v186, 0.70710677
  %v206 = vmul.f32 %v188, 0.70710677
  %v207 = vmul.f32 %v190, 0.70710677
  %v208 = verf.f32.pop %v200
  %v209 = verf.f32.pop %v201
  %v210 = verf.f32.pop %v202
  %v211 = verf.f32.pop %v203
  %v212 = verf.f32.pop %v204
  %v213 = verf.f32.pop %v205
  %v214 = verf.f32.pop %v206
  %v215 = verf.f32.pop %v207
  %v216 = vadd.f32 %v208, 1.0
  %v217 = vadd.f32 %v209, 1.0
  %v218 = vadd.f32 %v210, 1.0
  %v219 = vadd.f32 %v211, 1.0
  %v220 = vadd.f32 %v212, 1.0
  %v221 = vadd.f32 %v213, 1.0
  %v222 = vadd.f32 %v214, 1.0
  %v223 = vadd.f32 %v215, 1.0
  %v224 = vmul.f32 %v192, %v216
  %v225 = vmul.f32 %v193, %v217
  %v226 = vmul.f32 %v194, %v218
  %v227 = vmul.f32 %v195, %v219
  %v228 = vmul.f32 %v196, %v220
  %v229 = vmul.f32 %v197, %v221
  %v230 = vmul.f32 %v198, %v222
  %v231 = vmul.f32 %v199, %v223
  %v232 = vpack.c.bf16 %v226, %v224
  %v233 = vpack.c.bf16 %v227, %v225
  %v234 = vpack.c.bf16 %v230, %v228
  %v235 = vpack.c.bf16 %v231, %v229
  %v240 = vunpack.c.l.b16 %v232
  %v241 = vunpack.c.l.b16 %v233
  %v242 = vunpack.c.h.b16 %v232
  %v243 = vunpack.c.h.b16 %v233
  %v244 = vunpack.c.l.b16 %v234
  %v245 = vunpack.c.l.b16 %v235
  %v246 = vunpack.c.h.b16 %v234
  %v247 = vunpack.c.h.b16 %v235
  %v248 = vpack.c.b16 %v241, %v240
  %v249 = vpack.c.b16 %v243, %v242
  %v250 = vpack.c.b16 %v245, %v244
  %v251 = vpack.c.b16 %v247, %v246
  %256 = vst [vmem:[%s3] sm:$0xff] %v248
  %257 = vst [vmem:[%s3 + $0x8] sm:$0xff] %v249
  %258 = vst [vmem:[%s3 + $0x10] sm:$0xff] %v250
  %259 = vst [vmem:[%s3 + $0x18] sm:$0xff] %v251
  // Predicated region
  $region14: #{transformer_net_forward.17} parent=0 // pred_check
    _
  $region15: #{transformer_net_forward.17} parent=0 // pred_check_branch
    %261 = sbr.rel (0) target = $region17
  $region16: #{transformer_net_forward.17} parent=0 // pred_region
    _
  $region17: #{transformer_net_forward.17} parent=0 // pred_fallthru
    _
  // Predicated region
  $region18: #{transformer_net_forward.17} parent=0 // pred_check
    _
  $region19: #{transformer_net_forward.17} parent=0 // pred_check_branch
    %263 = sbr.rel (0) target = $region21
  $region20: #{transformer_net_forward.17} parent=0 // pred_region
    _
  $region21: #{transformer_net_forward.17} parent=0 // pred_fallthru
    _

// kernel: transformer_net_forward.16
$region0: #{transformer_net_forward.16}
  #allocation0 [shape = 'u32[]', space=smem, size = 0x4, offset = 0x4, fixed_abs, tag = 'smem constant byte address 0x4 - core index']
  #allocation1 [shape = 'u32[144,128]{1,0:T(1,128)}', space=vmem, size = 0x12000, scoped, tag = 'internal scratch']
  %s0 = inlined_call_operand.vmem [shape: bf16[32,128], index: 0, kind: input, shape index: {}]
  %s1 = inlined_call_operand.vmem [shape: bf16[128,128], index: 1, kind: input, shape index: {}]
  %s2 = inlined_call_operand.vmem [shape: f32[1,128], index: 2, kind: input, shape index: {}]
  %s3 = inlined_call_operand.vmem [shape: bf16[32,128], index: 3, kind: input, shape index: {}]
  %s4 = inlined_call_operand.vmem [shape: f32[1,128], index: 4, kind: input, shape index: {}]
  %s5 = inlined_call_operand.vmem [shape: f32[1,128], index: 5, kind: input, shape index: {}]
  %s6 = inlined_call_operand.vmem [shape: bf16[32,128], index: 6, kind: output, shape index: {}]
  %s7 = sld [smem:[#allocation0]]
  $region34: #{transformer_net_forward.16} parent=0
    _
  %s9 = ssub.s32 1, %s7
  %s10 = scalar_select 0, %s9, %s7
  // Predicated region
  $region2: #{transformer_net_forward.16} parent=0 // pred_check
    _
  $region3: #{transformer_net_forward.16} parent=0 // pred_check_branch
    %12 = sbr.rel (0) target = $region5
  $region4: #{transformer_net_forward.16} parent=0 // pred_region
    _
  $region5: #{transformer_net_forward.16} parent=0 // pred_fallthru
    _
  // Predicated region
  $region6: #{transformer_net_forward.16} parent=0 // pred_check
    _
  $region7: #{transformer_net_forward.16} parent=0 // pred_check_branch
    %14 = sbr.rel (0) target = $region9
  $region8: #{transformer_net_forward.16} parent=0 // pred_region
    _
  $region9: #{transformer_net_forward.16} parent=0 // pred_fallthru
    _
  // Predicated region
  $region10: #{transformer_net_forward.16} parent=0 // pred_check
    _
  $region11: #{transformer_net_forward.16} parent=0 // pred_check_branch
    %16 = sbr.rel (0) target = $region13
  $region12: #{transformer_net_forward.16} parent=0 // pred_region
    _
  $region13: #{transformer_net_forward.16} parent=0 // pred_fallthru
    _
  // Predicated region
  $region14: #{transformer_net_forward.16} parent=0 // pred_check
    _
  $region15: #{transformer_net_forward.16} parent=0 // pred_check_branch
    %18 = sbr.rel (0) target = $region17
  $region16: #{transformer_net_forward.16} parent=0 // pred_region
    _
  $region17: #{transformer_net_forward.16} parent=0 // pred_fallthru
    _
  // Predicated region
  $region18: #{transformer_net_forward.16} parent=0 // pred_check
    _
  $region19: #{transformer_net_forward.16} parent=0 // pred_check_branch
    %20 = sbr.rel (0) target = $region21
  $region20: #{transformer_net_forward.16} parent=0 // pred_region
    _
  $region21: #{transformer_net_forward.16} parent=0 // pred_fallthru
    _
  // Predicated region
  $region22: #{transformer_net_forward.16} parent=0 // pred_check
    _
  $region23: #{transformer_net_forward.16} parent=0 // pred_check_branch
    %22 = sbr.rel (0) target = $region25
  $region24: #{transformer_net_forward.16} parent=0 // pred_region
    _
  $region25: #{transformer_net_forward.16} parent=0 // pred_fallthru
    _
  %v24 = vld [vmem:[%s0] sm:$0xf]
  %v25 = vld [vmem:[%s0 + $0x4] sm:$0xf]
  %v26 = vld [vmem:[%s0 + $0x8] sm:$0xf]
  %v27 = vld [vmem:[%s0 + $0xc] sm:$0xf]
  %v28 = vld [vmem:[%s1] sm:$0xf]
  %v29 = vld [vmem:[%s1 + $0x4] sm:$0xf]
  %v30 = vld [vmem:[%s1 + $0x8] sm:$0xf]
  %v31 = vld [vmem:[%s1 + $0xc] sm:$0xf]
  %v32 = vld [vmem:[%s1 + $0x10] sm:$0xf]
  %v33 = vld [vmem:[%s1 + $0x14] sm:$0xf]
  %v34 = vld [vmem:[%s1 + $0x18] sm:$0xf]
  %v35 = vld [vmem:[%s1 + $0x1c] sm:$0xf]
  %v36 = vld [vmem:[%s1 + $0x20] sm:$0xf]
  %v37 = vld [vmem:[%s1 + $0x24] sm:$0xf]
  %v38 = vld [vmem:[%s1 + $0x28] sm:$0xf]
  %v39 = vld [vmem:[%s1 + $0x2c] sm:$0xf]
  %v40 = vld [vmem:[%s1 + $0x30] sm:$0xf]
  %v41 = vld [vmem:[%s1 + $0x34] sm:$0xf]
  %v42 = vld [vmem:[%s1 + $0x38] sm:$0xf]
  %v43 = vld [vmem:[%s1 + $0x3c] sm:$0xf]
  %v44 = vld [vmem:[%s2] sm:$0x1]
  %v46 = vlaneseq
  %v47 = vshrl.u32 %v46, 7
  %v48 = vsub.s32 0, %v47
  %v49 = vrot.slane %v44, %v48
  %v55 = vunpack.c.l.b16 %v24
  %v56 = vunpack.c.l.b16 %v25
  %v57 = vunpack.c.l.b16 %v26
  %v58 = vunpack.c.l.b16 %v27
  %v59 = vpack.c.b16 %v56, %v55
  %v60 = vpack.c.b16 %v58, %v57
  %v79 = vunpack.c.l.b16 %v28
  %v80 = vunpack.c.l.b16 %v29
  %v81 = vunpack.c.l.b16 %v30
  %v82 = vunpack.c.l.b16 %v31
  %v83 = vunpack.c.l.b16 %v32
  %v84 = vunpack.c.l.b16 %v33
  %v85 = vunpack.c.l.b16 %v34
  %v86 = vunpack.c.l.b16 %v35
  %v87 = vunpack.c.l.b16 %v36
  %v88 = vunpack.c.l.b16 %v37
  %v89 = vunpack.c.l.b16 %v38
  %v90 = vunpack.c.l.b16 %v39
  %v91 = vunpack.c.l.b16 %v40
  %v92 = vunpack.c.l.b16 %v41
  %v93 = vunpack.c.l.b16 %v42
  %v94 = vunpack.c.l.b16 %v43
  %v95 = vpack.c.b16 %v80, %v79
  %v96 = vpack.c.b16 %v82, %v81
  %v97 = vpack.c.b16 %v84, %v83
  %v98 = vpack.c.b16 %v86, %v85
  %v99 = vpack.c.b16 %v88, %v87
  %v100 = vpack.c.b16 %v90, %v89
  %v101 = vpack.c.b16 %v92, %v91
  %v102 = vpack.c.b16 %v94, %v93
  %111 = vmatprep.subr.bf16.mxu0 0
  %112 = vmatpush1.bf16.msra.mxu0 %v95
  %113 = vmatprep.subr.bf16.mxu0 0
  %114 = vmatpush1.bf16.msra.mxu0 %v96
  %115 = vmatprep.subr.bf16.mxu0 0
  %116 = vmatpush1.bf16.msra.mxu0 %v97
  %117 = vmatprep.subr.bf16.mxu0 0
  %118 = vmatpush1.bf16.msra.mxu0 %v98
  %119 = vmatprep.subr.bf16.mxu0 0
  %120 = vmatpush1.bf16.msra.mxu0 %v99
  %121 = vmatprep.subr.bf16.mxu0 0
  %122 = vmatpush1.bf16.msra.mxu0 %v100
  %123 = vmatprep.subr.bf16.mxu0 0
  %124 = vmatpush1.bf16.msra.mxu0 %v101
  %125 = vmatprep.subr.bf16.mxu0 0
  %126 = vmatpush1.bf16.msra.mxu0 %v102
  %127 = vmatprep.subr.bf16.mxu0 0
  %128 = vmatpush1.bf16.msra.mxu0 0
  %129 = vmatprep.subr.bf16.mxu0 0
  %130 = vmatpush1.bf16.msra.mxu0 0
  %131 = vmatprep.subr.bf16.mxu0 0
  %132 = vmatpush1.bf16.msra.mxu0 0
  %133 = vmatprep.subr.bf16.mxu0 0
  %134 = vmatpush1.bf16.msra.mxu0 0
  %135 = vmatprep.subr.bf16.mxu0 0
  %136 = vmatpush1.bf16.msra.mxu0 0
  %137 = vmatprep.subr.bf16.mxu0 0
  %138 = vmatpush1.bf16.msra.mxu0 0
  %139 = vmatprep.subr.bf16.mxu0 0
  %140 = vmatpush1.bf16.msra.mxu0 0
  %141 = vmatprep.subr.bf16.mxu0 0
  %142 = vmatpush1.bf16.msra.mxu0 0
  %143 = vmatprep.mubr.bf16.mxu0 0
  %144 = vmatmul.mubr.bf16.gmra.mrb[0].mxu0 %v59
  %v145 = vpop.f32.mrb[0].mxu0
  %v146 = vadd.f32 %v49, %v145
  %v147 = vpop.f32.mrb[0].mxu0
  %v148 = vpop.f32.mrb[0].mxu0
  %v149 = vadd.f32 %v49, %v148
  %v150 = vpop.f32.mrb[0].mxu0
  %151 = vmatprep.mubr.bf16.mxu0 0
  %152 = vmatmul.mubr.bf16.gmra.mrb[0].mxu0 %v60
  %v153 = vpop.f32.mrb[0].mxu0
  %v154 = vadd.f32 %v49, %v153
  %v155 = vpop.f32.mrb[0].mxu0
  %v156 = vpop.f32.mrb[0].mxu0
  %v157 = vadd.f32 %v49, %v156
  %v158 = vpop.f32.mrb[0].mxu0
  %159 = vdwg.mxu0
  %v160 = vld [vmem:[%s3] sm:$0xf]
  %v161 = vld [vmem:[%s3 + $0x4] sm:$0xf]
  %v162 = vld [vmem:[%s3 + $0x8] sm:$0xf]
  %v163 = vld [vmem:[%s3 + $0xc] sm:$0xf]
  %v164 = vunpack.c.l.bf16 %v160
  %v165 = vunpack.c.l.bf16 %v161
  %v166 = vunpack.c.l.bf16 %v162
  %v167 = vunpack.c.l.bf16 %v163
  %v168 = vadd.f32 %v146, %v164
  %v169 = vadd.f32 %v149, %v165
  %v170 = vadd.f32 %v154, %v166
  %v171 = vadd.f32 %v157, %v167
  %172 = vadd.xlane.f32.xlu0 %v168
  %v173 = vpop.xlane.xlu0 %172
  %174 = vadd.xlane.f32.xlu0 %v169
  %v175 = vpop.xlane.xlu0 %174
  %176 = vadd.xlane.f32.xlu0 %v170
  %v177 = vpop.xlane.xlu0 %176
  %178 = vadd.xlane.f32.xlu0 %v171
  %v179 = vpop.xlane.xlu0 %178
  %v180 = vrcp.pop 128.0
  %v181 = vmul.f32 %v173, %v180
  %v182 = vmul.f32 %v175, %v180
  %v183 = vmul.f32 %v177, %v180
  %v184 = vmul.f32 %v179, %v180
  %v185 = vsub.f32 %v168, %v181
  %v186 = vsub.f32 %v169, %v182
  %v187 = vsub.f32 %v170, %v183
  %v188 = vsub.f32 %v171, %v184
  %v189 = vmul.f32 %v185, %v185
  %v190 = vmul.f32 %v186, %v186
  %v191 = vmul.f32 %v187, %v187
  %v192 = vmul.f32 %v188, %v188
  %193 = vadd.xlane.f32.xlu0 %v189
  %v194 = vpop.xlane.xlu0 %193
  %195 = vadd.xlane.f32.xlu0 %v190
  %v196 = vpop.xlane.xlu0 %195
  %197 = vadd.xlane.f32.xlu0 %v191
  %v198 = vpop.xlane.xlu0 %197
  %199 = vadd.xlane.f32.xlu0 %v192
  %v200 = vpop.xlane.xlu0 %199
  %v201 = vmul.f32 %v194, %v180
  %v202 = vmul.f32 %v196, %v180
  %v203 = vmul.f32 %v198, %v180
  %v204 = vmul.f32 %v200, %v180
  %v205 = vadd.f32 %v201, 1e-12
  %v206 = vadd.f32 %v202, 1e-12
  %v207 = vadd.f32 %v203, 1e-12
  %v208 = vadd.f32 %v204, 1e-12
  %v209 = vrsqrt.pop %v205
  %v210 = vrsqrt.pop %v206
  %v211 = vrsqrt.pop %v207
  %v212 = vrsqrt.pop %v208
  %v213 = vmul.f32 %v185, %v209
  %v214 = vmul.f32 %v186, %v210
  %v215 = vmul.f32 %v187, %v211
  %v216 = vmul.f32 %v188, %v212
  %v217 = vld [vmem:[%s4] sm:$0x1]
  %v219 = vlaneseq
  %v220 = vshrl.u32 %v219, 7
  %v221 = vsub.s32 0, %v220
  %v222 = vrot.slane %v217, %v221
  %v224 = vmul.f32 %v213, %v222
  %v225 = vmul.f32 %v214, %v222
  %v226 = vmul.f32 %v215, %v222
  %v227 = vmul.f32 %v216, %v222
  %v228 = vld [vmem:[%s5] sm:$0x1]
  %v230 = vlaneseq
  %v231 = vshrl.u32 %v230, 7
  %v232 = vsub.s32 0, %v231
  %v233 = vrot.slane %v228, %v232
  %v235 = vadd.f32 %v224, %v233
  %v236 = vadd.f32 %v225, %v233
  %v237 = vadd.f32 %v226, %v233
  %v238 = vadd.f32 %v227, %v233
  %v239 = vpack.c.bf16 %v236, %v235
  %v240 = vpack.c.bf16 %v238, %v237
  %v243 = vunpack.c.l.b16 %v239
  %v244 = vunpack.c.h.b16 %v239
  %v245 = vunpack.c.l.b16 %v240
  %v246 = vunpack.c.h.b16 %v240
  %v247 = vpack.c.b16 %v243, %v243
  %v248 = vpack.c.b16 %v244, %v244
  %v249 = vpack.c.b16 %v245, %v245
  %v250 = vpack.c.b16 %v246, %v246
  %255 = vst [vmem:[%s6] sm:$0xf] %v247
  %256 = vst [vmem:[%s6 + $0x4] sm:$0xf] %v248
  %257 = vst [vmem:[%s6 + $0x8] sm:$0xf] %v249
  %258 = vst [vmem:[%s6 + $0xc] sm:$0xf] %v250
  // Predicated region
  $region26: #{transformer_net_forward.16} parent=0 // pred_check
    _
  $region27: #{transformer_net_forward.16} parent=0 // pred_check_branch
    %260 = sbr.rel (0) target = $region29
  $region28: #{transformer_net_forward.16} parent=0 // pred_region
    _
  $region29: #{transformer_net_forward.16} parent=0 // pred_fallthru
    _
  // Predicated region
  $region30: #{transformer_net_forward.16} parent=0 // pred_check
    _
  $region31: #{transformer_net_forward.16} parent=0 // pred_check_branch
    %262 = sbr.rel (0) target = $region33
  $region32: #{transformer_net_forward.16} parent=0 // pred_region
    _
  $region33: #{transformer_net_forward.16} parent=0 // pred_fallthru
    _

// kernel: transformer_net_forward.18
$region0: #{transformer_net_forward.18}
  #allocation0 [shape = 'u32[]', space=smem, size = 0x4, offset = 0x4, fixed_abs, tag = 'smem constant byte address 0x4 - core index']
  #allocation1 [shape = 'u32[144,128]{1,0:T(1,128)}', space=vmem, size = 0x12000, scoped, tag = 'internal scratch']
  %s0 = inlined_call_operand.vmem [shape: bf16[32,256], index: 0, kind: input, shape index: {}]
  %s1 = inlined_call_operand.vmem [shape: bf16[256,128], index: 1, kind: input, shape index: {}]
  %s2 = inlined_call_operand.vmem [shape: f32[1,128], index: 2, kind: input, shape index: {}]
  %s3 = inlined_call_operand.vmem [shape: bf16[32,128], index: 3, kind: input, shape index: {}]
  %s4 = inlined_call_operand.vmem [shape: f32[1,128], index: 4, kind: input, shape index: {}]
  %s5 = inlined_call_operand.vmem [shape: f32[1,128], index: 5, kind: input, shape index: {}]
  %s6 = inlined_call_operand.vmem [shape: bf16[32,128], index: 6, kind: output, shape index: {}]
  %s7 = sld [smem:[#allocation0]]
  $region34: #{transformer_net_forward.18} parent=0
    _
  %s9 = ssub.s32 1, %s7
  %s10 = scalar_select 0, %s9, %s7
  // Predicated region
  $region2: #{transformer_net_forward.18} parent=0 // pred_check
    _
  $region3: #{transformer_net_forward.18} parent=0 // pred_check_branch
    %12 = sbr.rel (0) target = $region5
  $region4: #{transformer_net_forward.18} parent=0 // pred_region
    _
  $region5: #{transformer_net_forward.18} parent=0 // pred_fallthru
    _
  // Predicated region
  $region6: #{transformer_net_forward.18} parent=0 // pred_check
    _
  $region7: #{transformer_net_forward.18} parent=0 // pred_check_branch
    %14 = sbr.rel (0) target = $region9
  $region8: #{transformer_net_forward.18} parent=0 // pred_region
    _
  $region9: #{transformer_net_forward.18} parent=0 // pred_fallthru
    _
  // Predicated region
  $region10: #{transformer_net_forward.18} parent=0 // pred_check
    _
  $region11: #{transformer_net_forward.18} parent=0 // pred_check_branch
    %16 = sbr.rel (0) target = $region13
  $region12: #{transformer_net_forward.18} parent=0 // pred_region
    _
  $region13: #{transformer_net_forward.18} parent=0 // pred_fallthru
    _
  // Predicated region
  $region14: #{transformer_net_forward.18} parent=0 // pred_check
    _
  $region15: #{transformer_net_forward.18} parent=0 // pred_check_branch
    %18 = sbr.rel (0) target = $region17
  $region16: #{transformer_net_forward.18} parent=0 // pred_region
    _
  $region17: #{transformer_net_forward.18} parent=0 // pred_fallthru
    _
  // Predicated region
  $region18: #{transformer_net_forward.18} parent=0 // pred_check
    _
  $region19: #{transformer_net_forward.18} parent=0 // pred_check_branch
    %20 = sbr.rel (0) target = $region21
  $region20: #{transformer_net_forward.18} parent=0 // pred_region
    _
  $region21: #{transformer_net_forward.18} parent=0 // pred_fallthru
    _
  // Predicated region
  $region22: #{transformer_net_forward.18} parent=0 // pred_check
    _
  $region23: #{transformer_net_forward.18} parent=0 // pred_check_branch
    %22 = sbr.rel (0) target = $region25
  $region24: #{transformer_net_forward.18} parent=0 // pred_region
    _
  $region25: #{transformer_net_forward.18} parent=0 // pred_fallthru
    _
  %v24 = vld [vmem:[%s0] sm:$0xff]
  %v25 = vld [vmem:[%s0 + $0x8] sm:$0xff]
  %v26 = vld [vmem:[%s0 + $0x10] sm:$0xff]
  %v27 = vld [vmem:[%s0 + $0x18] sm:$0xff]
  %v28 = vld [vmem:[%s1] sm:$0xf]
  %v29 = vld [vmem:[%s1 + $0x4] sm:$0xf]
  %v30 = vld [vmem:[%s1 + $0x8] sm:$0xf]
  %v31 = vld [vmem:[%s1 + $0xc] sm:$0xf]
  %v32 = vld [vmem:[%s1 + $0x10] sm:$0xf]
  %v33 = vld [vmem:[%s1 + $0x14] sm:$0xf]
  %v34 = vld [vmem:[%s1 + $0x18] sm:$0xf]
  %v35 = vld [vmem:[%s1 + $0x1c] sm:$0xf]
  %v36 = vld [vmem:[%s1 + $0x20] sm:$0xf]
  %v37 = vld [vmem:[%s1 + $0x24] sm:$0xf]
  %v38 = vld [vmem:[%s1 + $0x28] sm:$0xf]
  %v39 = vld [vmem:[%s1 + $0x2c] sm:$0xf]
  %v40 = vld [vmem:[%s1 + $0x30] sm:$0xf]
  %v41 = vld [vmem:[%s1 + $0x34] sm:$0xf]
  %v42 = vld [vmem:[%s1 + $0x38] sm:$0xf]
  %v43 = vld [vmem:[%s1 + $0x3c] sm:$0xf]
  %v44 = vld [vmem:[%s1 + $0x40] sm:$0xf]
  %v45 = vld [vmem:[%s1 + $0x44] sm:$0xf]
  %v46 = vld [vmem:[%s1 + $0x48] sm:$0xf]
  %v47 = vld [vmem:[%s1 + $0x4c] sm:$0xf]
  %v48 = vld [vmem:[%s1 + $0x50] sm:$0xf]
  %v49 = vld [vmem:[%s1 + $0x54] sm:$0xf]
  %v50 = vld [vmem:[%s1 + $0x58] sm:$0xf]
  %v51 = vld [vmem:[%s1 + $0x5c] sm:$0xf]
  %v52 = vld [vmem:[%s1 + $0x60] sm:$0xf]
  %v53 = vld [vmem:[%s1 + $0x64] sm:$0xf]
  %v54 = vld [vmem:[%s1 + $0x68] sm:$0xf]
  %v55 = vld [vmem:[%s1 + $0x6c] sm:$0xf]
  %v56 = vld [vmem:[%s1 + $0x70] sm:$0xf]
  %v57 = vld [vmem:[%s1 + $0x74] sm:$0xf]
  %v58 = vld [vmem:[%s1 + $0x78] sm:$0xf]
  %v59 = vld [vmem:[%s1 + $0x7c] sm:$0xf]
  %v60 = vld [vmem:[%s2] sm:$0x1]
  %v62 = vlaneseq
  %v63 = vshrl.u32 %v62, 7
  %v64 = vsub.s32 0, %v63
  %v65 = vrot.slane %v60, %v64
  %v71 = vunpack.c.l.b16 %v24
  %v72 = vunpack.c.h.b16 %v24
  %v73 = vunpack.c.l.b16 %v25
  %v74 = vunpack.c.h.b16 %v25
  %v75 = vunpack.c.l.b16 %v26
  %v76 = vunpack.c.h.b16 %v26
  %v77 = vunpack.c.l.b16 %v27
  %v78 = vunpack.c.h.b16 %v27
  %v79 = vpack.c.b16 %v73, %v71
  %v80 = vpack.c.b16 %v74, %v72
  %v81 = vpack.c.b16 %v77, %v75
  %v82 = vpack.c.b16 %v78, %v76
  %v119 = vunpack.c.l.b16 %v28
  %v120 = vunpack.c.l.b16 %v29
  %v121 = vunpack.c.l.b16 %v30
  %v122 = vunpack.c.l.b16 %v31
  %v123 = vunpack.c.l.b16 %v32
  %v124 = vunpack.c.l.b16 %v33
  %v125 = vunpack.c.l.b16 %v34
  %v126 = vunpack.c.l.b16 %v35
  %v127 = vunpack.c.l.b16 %v36
  %v128 = vunpack.c.l.b16 %v37
  %v129 = vunpack.c.l.b16 %v38
  %v130 = vunpack.c.l.b16 %v39
  %v131 = vunpack.c.l.b16 %v40
  %v132 = vunpack.c.l.b16 %v41
  %v133 = vunpack.c.l.b16 %v42
  %v134 = vunpack.c.l.b16 %v43
  %v135 = vunpack.c.l.b16 %v44
  %v136 = vunpack.c.l.b16 %v45
  %v137 = vunpack.c.l.b16 %v46
  %v138 = vunpack.c.l.b16 %v47
  %v139 = vunpack.c.l.b16 %v48
  %v140 = vunpack.c.l.b16 %v49
  %v141 = vunpack.c.l.b16 %v50
  %v142 = vunpack.c.l.b16 %v51
  %v143 = vunpack.c.l.b16 %v52
  %v144 = vunpack.c.l.b16 %v53
  %v145 = vunpack.c.l.b16 %v54
  %v146 = vunpack.c.l.b16 %v55
  %v147 = vunpack.c.l.b16 %v56
  %v148 = vunpack.c.l.b16 %v57
  %v149 = vunpack.c.l.b16 %v58
  %v150 = vunpack.c.l.b16 %v59
  %v151 = vpack.c.b16 %v120, %v119
  %v152 = vpack.c.b16 %v122, %v121
  %v153 = vpack.c.b16 %v124, %v123
  %v154 = vpack.c.b16 %v126, %v125
  %v155 = vpack.c.b16 %v128, %v127
  %v156 = vpack.c.b16 %v130, %v129
  %v157 = vpack.c.b16 %v132, %v131
  %v158 = vpack.c.b16 %v134, %v133
  %v159 = vpack.c.b16 %v136, %v135
  %v160 = vpack.c.b16 %v138, %v137
  %v161 = vpack.c.b16 %v140, %v139
  %v162 = vpack.c.b16 %v142, %v141
  %v163 = vpack.c.b16 %v144, %v143
  %v164 = vpack.c.b16 %v146, %v145
  %v165 = vpack.c.b16 %v148, %v147
  %v166 = vpack.c.b16 %v150, %v149
  %183 = vmatprep.subr.bf16.mxu0 0
  %184 = vmatpush1.bf16.msra.mxu0 %v151
  %185 = vmatprep.subr.bf16.mxu0 0
  %186 = vmatpush1.bf16.msra.mxu0 %v152
  %187 = vmatprep.subr.bf16.mxu0 0
  %188 = vmatpush1.bf16.msra.mxu0 %v153
  %189 = vmatprep.subr.bf16.mxu0 0
  %190 = vmatpush1.bf16.msra.mxu0 %v154
  %191 = vmatprep.subr.bf16.mxu0 0
  %192 = vmatpush1.bf16.msra.mxu0 %v155
  %193 = vmatprep.subr.bf16.mxu0 0
  %194 = vmatpush1.bf16.msra.mxu0 %v156
  %195 = vmatprep.subr.bf16.mxu0 0
  %196 = vmatpush1.bf16.msra.mxu0 %v157
  %197 = vmatprep.subr.bf16.mxu0 0
  %198 = vmatpush1.bf16.msra.mxu0 %v158
  %199 = vmatprep.subr.bf16.mxu0 0
  %200 = vmatpush1.bf16.msra.mxu0 %v159
  %201 = vmatprep.subr.bf16.mxu0 0
  %202 = vmatpush1.bf16.msra.mxu0 %v160
  %203 = vmatprep.subr.bf16.mxu0 0
  %204 = vmatpush1.bf16.msra.mxu0 %v161
  %205 = vmatprep.subr.bf16.mxu0 0
  %206 = vmatpush1.bf16.msra.mxu0 %v162
  %207 = vmatprep.subr.bf16.mxu0 0
  %208 = vmatpush1.bf16.msra.mxu0 %v163
  %209 = vmatprep.subr.bf16.mxu0 0
  %210 = vmatpush1.bf16.msra.mxu0 %v164
  %211 = vmatprep.subr.bf16.mxu0 0
  %212 = vmatpush1.bf16.msra.mxu0 %v165
  %213 = vmatprep.subr.bf16.mxu0 0
  %214 = vmatpush1.bf16.msra.mxu0 %v166
  %215 = vmatprep.mubr.bf16.mxu0 %v80
  %216 = vmatmul.mubr.bf16.gmra.mrb[0].mxu0 %v79
  %v217 = vpop.f32.mrb[0].mxu0
  %v218 = vadd.f32 %v65, %v217
  %v219 = vpop.f32.mrb[0].mxu0
  %v220 = vpop.f32.mrb[0].mxu0
  %v221 = vadd.f32 %v65, %v220
  %v222 = vpop.f32.mrb[0].mxu0
  %223 = vmatprep.mubr.bf16.mxu0 %v82
  %224 = vmatmul.mubr.bf16.gmra.mrb[0].mxu0 %v81
  %v225 = vpop.f32.mrb[0].mxu0
  %v226 = vadd.f32 %v65, %v225
  %v227 = vpop.f32.mrb[0].mxu0
  %v228 = vpop.f32.mrb[0].mxu0
  %v229 = vadd.f32 %v65, %v228
  %v230 = vpop.f32.mrb[0].mxu0
  %231 = vdwg.mxu0
  %v232 = vld [vmem:[%s3] sm:$0xf]
  %v233 = vld [vmem:[%s3 + $0x4] sm:$0xf]
  %v234 = vld [vmem:[%s3 + $0x8] sm:$0xf]
  %v235 = vld [vmem:[%s3 + $0xc] sm:$0xf]
  %v236 = vunpack.c.l.bf16 %v232
  %v237 = vunpack.c.l.bf16 %v233
  %v238 = vunpack.c.l.bf16 %v234
  %v239 = vunpack.c.l.bf16 %v235
  %v240 = vadd.f32 %v218, %v236
  %v241 = vadd.f32 %v221, %v237
  %v242 = vadd.f32 %v226, %v238
  %v243 = vadd.f32 %v229, %v239
  %244 = vadd.xlane.f32.xlu0 %v240
  %v245 = vpop.xlane.xlu0 %244
  %246 = vadd.xlane.f32.xlu0 %v241
  %v247 = vpop.xlane.xlu0 %246
  %248 = vadd.xlane.f32.xlu0 %v242
  %v249 = vpop.xlane.xlu0 %248
  %250 = vadd.xlane.f32.xlu0 %v243
  %v251 = vpop.xlane.xlu0 %250
  %v252 = vrcp.pop 128.0
  %v253 = vmul.f32 %v245, %v252
  %v254 = vmul.f32 %v247, %v252
  %v255 = vmul.f32 %v249, %v252
  %v256 = vmul.f32 %v251, %v252
  %v257 = vsub.f32 %v240, %v253
  %v258 = vsub.f32 %v241, %v254
  %v259 = vsub.f32 %v242, %v255
  %v260 = vsub.f32 %v243, %v256
  %v261 = vmul.f32 %v257, %v257
  %v262 = vmul.f32 %v258, %v258
  %v263 = vmul.f32 %v259, %v259
  %v264 = vmul.f32 %v260, %v260
  %265 = vadd.xlane.f32.xlu0 %v261
  %v266 = vpop.xlane.xlu0 %265
  %267 = vadd.xlane.f32.xlu0 %v262
  %v268 = vpop.xlane.xlu0 %267
  %269 = vadd.xlane.f32.xlu0 %v263
  %v270 = vpop.xlane.xlu0 %269
  %271 = vadd.xlane.f32.xlu0 %v264
  %v272 = vpop.xlane.xlu0 %271
  %v273 = vmul.f32 %v266, %v252
  %v274 = vmul.f32 %v268, %v252
  %v275 = vmul.f32 %v270, %v252
  %v276 = vmul.f32 %v272, %v252
  %v277 = vadd.f32 %v273, 1e-12
  %v278 = vadd.f32 %v274, 1e-12
  %v279 = vadd.f32 %v275, 1e-12
  %v280 = vadd.f32 %v276, 1e-12
  %v281 = vrsqrt.pop %v277
  %v282 = vrsqrt.pop %v278
  %v283 = vrsqrt.pop %v279
  %v284 = vrsqrt.pop %v280
  %v285 = vmul.f32 %v257, %v281
  %v286 = vmul.f32 %v258, %v282
  %v287 = vmul.f32 %v259, %v283
  %v288 = vmul.f32 %v260, %v284
  %v289 = vld [vmem:[%s4] sm:$0x1]
  %v291 = vlaneseq
  %v292 = vshrl.u32 %v291, 7
  %v293 = vsub.s32 0, %v292
  %v294 = vrot.slane %v289, %v293
  %v296 = vmul.f32 %v285, %v294
  %v297 = vmul.f32 %v286, %v294
  %v298 = vmul.f32 %v287, %v294
  %v299 = vmul.f32 %v288, %v294
  %v300 = vld [vmem:[%s5] sm:$0x1]
  %v302 = vlaneseq
  %v303 = vshrl.u32 %v302, 7
  %v304 = vsub.s32 0, %v303
  %v305 = vrot.slane %v300, %v304
  %v307 = vadd.f32 %v296, %v305
  %v308 = vadd.f32 %v297, %v305
  %v309 = vadd.f32 %v298, %v305
  %v310 = vadd.f32 %v299, %v305
  %v311 = vpack.c.bf16 %v308, %v307
  %v312 = vpack.c.bf16 %v310, %v309
  %v315 = vunpack.c.l.b16 %v311
  %v316 = vunpack.c.h.b16 %v311
  %v317 = vunpack.c.l.b16 %v312
  %v318 = vunpack.c.h.b16 %v312
  %v319 = vpack.c.b16 %v315, %v315
  %v320 = vpack.c.b16 %v316, %v316
  %v321 = vpack.c.b16 %v317, %v317
  %v322 = vpack.c.b16 %v318, %v318
  %327 = vst [vmem:[%s6] sm:$0xf] %v319
  %328 = vst [vmem:[%s6 + $0x4] sm:$0xf] %v320
  %329 = vst [vmem:[%s6 + $0x8] sm:$0xf] %v321
  %330 = vst [vmem:[%s6 + $0xc] sm:$0xf] %v322
  // Predicated region
  $region26: #{transformer_net_forward.18} parent=0 // pred_check
    _
  $region27: #{transformer_net_forward.18} parent=0 // pred_check_branch
    %332 = sbr.rel (0) target = $region29
  $region28: #{transformer_net_forward.18} parent=0 // pred_region
    _
  $region29: #{transformer_net_forward.18} parent=0 // pred_fallthru
    _
  // Predicated region
  $region30: #{transformer_net_forward.18} parent=0 // pred_check
    _
  $region31: #{transformer_net_forward.18} parent=0 // pred_check_branch
    %334 = sbr.rel (0) target = $region33
  $region32: #{transformer_net_forward.18} parent=0 // pred_region
    _
  $region33: #{transformer_net_forward.18} parent=0 // pred_fallthru
    _

</llo_original>
